<compile_context>
chip_gen: v7x
topology: tpu7x:2x2x1
jax: 0.10.0
libtpu: 0.0.40
codegen_flags: <defaults>
</compile_context>

<pallas_src>
import math

import jax
import jax.numpy as jnp
from jax.experimental import pallas as pl
from jax.experimental.pallas import tpu as pltpu


# ---------------------------------------------------------------------------
# Fused kernel: 3-NN interpolation + skip concat + both MLP stacks
# ---------------------------------------------------------------------------
def _make_fused_kernel(num_layers, has_skip, fuse_first, exact_ties):
    f32 = jnp.float32
    bf16 = jnp.bfloat16

    def kernel(*refs):
        it = iter(refs)
        xyz1 = next(it)[0]       # [3, tN]   f32 query coords (streamed tile)
        xyz2 = next(it)[0]       # [S, 3]    f32 source coords (resident)
        src_p = next(it)[0]      # [Kp, S]   bf16 (fuse: W0p_int@points2, else points2)
        src_c = next(it)[0]      # [Kc, S]   bf16 (fuse: W0c_int@colors2, else colors2)
        if has_skip:
            p1 = next(it)[0]     # [D1, tN]  bf16 skip features, points stream
            c1 = next(it)[0]     # [D1, tN]  bf16 skip features, colors stream
        else:
            p1 = c1 = None

        def take_stream():
            w0_int = None if fuse_first else next(it)[...]   # [C0, D2] bf16
            w0_skip = next(it)[...] if has_skip else None    # [C0, D1] bf16
            b0 = next(it)[...]                               # [C0, 1]  f32
            rest = []
            for _ in range(num_layers - 1):
                w = next(it)[...]                            # [Ci, Ci-1] bf16
                b = next(it)[...]                            # [Ci, 1]    f32
                rest.append((w, b))
            return w0_int, w0_skip, b0, rest

        stream_p = take_stream()
        stream_c = take_stream()
        out_p_ref = next(it)
        out_c_ref = next(it)

        tn = xyz1.shape[1]
        s = xyz2.shape[0]

        # --- squared pairwise distances (f32, torch square_distance) --------
        # d[j, i] = |x2_j|^2 + |x1_i|^2 - 2 * x2_j . x1_i   -> [S, tN]
        cross = jax.lax.dot_general(
            xyz2, xyz1, (((1,), (0,)), ((), ())), preferred_element_type=f32)
        x2sq = jnp.sum(xyz2 * xyz2, axis=1, keepdims=True)    # [S, 1]
        x1sq = jnp.sum(xyz1 * xyz1, axis=0, keepdims=True)    # [1, tN]
        dd = -2.0 * cross + x2sq + x1sq                       # [S, tN]

        # --- 3-NN one-hot weights via iterative masked-min (f32) ------------
        # w_un accumulates the UN-normalised weights; norm the normaliser.
        # exact_ties=True reproduces torch's stable-sort first-index
        # tie-breaking; the fast path selects all tied minima (ties are
        # measure-zero for real float coordinates).
        w_un = jnp.zeros((s, tn), f32)
        norm = jnp.zeros((1, tn), f32)
        for _ in range(3):
            min_d = jnp.min(dd, axis=0, keepdims=True)                  # [1, tN]
            if exact_ties:
                iota = jax.lax.broadcasted_iota(jnp.int32, (s, tn), 0)
                sel = jnp.min(jnp.where(dd == min_d, iota, s),
                              axis=0, keepdims=True)
                onehot = iota == sel                                    # [S, tN]
            else:
                onehot = dd == min_d                                    # [S, tN]
            # clamp: FP cancellation in the distance formula can go slightly
            # negative, which would explode 1/(d + eps).
            recip = 1.0 / (jnp.maximum(min_d, 0.0) + 1e-8)              # [1, tN]
            w_un = w_un + onehot.astype(f32) * recip
            norm = norm + recip
            dd = jnp.where(onehot, jnp.inf, dd)
        w_bf = w_un.astype(bf16)                                        # [S, tN]
        inv_norm = pl.reciprocal(norm, approx=True)                     # [1, tN]

        # --- per-stream: interp matmul + Conv1d(k=1)+BN+ReLU stack ----------
        def run_stream(src, stream, skip, out_ref):
            w0_int, w0_skip, b0, rest = stream
            # bf16 MXU matmul, f32 accumulate; 1/norm applied to the (small)
            # result instead of the [S, tN] weight matrix.
            act = jnp.dot(src, w_bf, preferred_element_type=f32) * inv_norm
            if not fuse_first:
                act = jnp.dot(w0_int, act.astype(bf16),
                              preferred_element_type=f32)
            if skip is not None:
                act = act + jnp.dot(w0_skip, skip, preferred_element_type=f32)
            act = jnp.maximum(act + b0, 0.0)
            for wl, bl in rest:
                act = jnp.maximum(
                    jnp.dot(wl, act.astype(bf16),
                            preferred_element_type=f32) + bl, 0.0)
            out_ref[0] = act.astype(out_ref.dtype)

        run_stream(src_p, stream_p, p1, out_p_ref)
        run_stream(src_c, stream_c, c1, out_c_ref)

    return kernel


# ---------------------------------------------------------------------------
# Generation-aware tiling helpers
# ---------------------------------------------------------------------------
def _vmem_capacity_bytes():
    try:
        return int(pltpu.get_tpu_info().vmem_capacity_bytes)
    except Exception:
        return 64 * 1024 * 1024        # conservative (v7x-sized) fallback


def _choose_n_tile(n, s, vmem_cap, batch):
    """Largest multiple of 128 dividing n, capped by a generation-aware VMEM
    budget; prefers an even tile count on small-VMEM (dual-TC v7x) parts when
    the batch axis alone cannot feed both TensorCores."""
    big = vmem_cap >= 100 * (1 << 20)            # v5e/v6e (128 MiB) vs v7x (64 MiB)
    cap = 1024 if big else 512
    # Keep the ~5 live [S, tN] f32 slabs of the 3-NN stage well inside VMEM.
    slab_budget = vmem_cap // 4
    cap_s = (slab_budget // (5 * 4 * max(s, 8))) // 128 * 128
    cap = max(128, min(cap, max(cap_s, 128)))
    cands = [t for t in range(128, min(cap, n) + 1, 128) if n % t == 0]
    if not cands:
        return n
    if (not big) and batch % 2 == 1:
        even = [t for t in cands if (n // t) % 2 == 0]
        if even:
            return max(even)
    return max(cands)


# ---------------------------------------------------------------------------
# Parameter construction (deterministic, synthetic — mirrors __init__ shapes)
# ---------------------------------------------------------------------------
def init_params(key, in_channel, mlp):
    """Conv1d(last, out, 1) + BatchNorm1d(out), two parallel stacks.

    Weights stored [C_out, C_in] for channels-first y = W @ x.  BatchNorm uses
    eval-mode running stats (mean=0, var=1, gamma=1, beta=0, eps=1e-5) folded
    into the conv weight/bias."""
    bn_eps = 1e-5
    scale = 1.0 / math.sqrt(1.0 + bn_eps)
    params = {"points_layers": [], "colors_layers": []}
    last = in_channel
    for out_c in mlp:
        key, k1, k2, k3, k4 = jax.random.split(key, 5)
        bound = 1.0 / math.sqrt(last)
        w1 = jax.random.uniform(k1, (out_c, last), jnp.float32, -bound, bound)
        b1 = jax.random.uniform(k2, (out_c, 1), jnp.float32, -bound, bound)
        w2 = jax.random.uniform(k3, (out_c, last), jnp.float32, -bound, bound)
        b2 = jax.random.uniform(k4, (out_c, 1), jnp.float32, -bound, bound)
        params["points_layers"].append((w1 * scale, b1 * scale))
        params["colors_layers"].append((w2 * scale, b2 * scale))
        last = out_c
    return params


# ---------------------------------------------------------------------------
# Forward pass (matches PointNetFeaturePropagation.forward, eval-mode BN)
# ---------------------------------------------------------------------------
def pointnet_fp_forward(params, xyz1, xyz2, points1, points2, colors1, colors2,
                        *, n_tile=None, fuse_first=None, exact_ties=False,
                        single_buffer_resident=None):
    """Channels-first in/out: xyz1 [B,3,N], xyz2 [B,3,S],
    points1/colors1 [B,D1,N] or None, points2 [B,D2,S], colors2 [B,Dc,S].
    Returns two [B, C_out, N] float32 arrays."""
    f32, bf16 = jnp.float32, jnp.bfloat16
    B, _, N_in = xyz1.shape
    S = xyz2.shape[2]
    D2 = points2.shape[1]
    Dc = colors2.shape[1]
    Dtot = D2 + Dc
    has_skip = points1 is not None
    D1 = points1.shape[1] if has_skip else 0

    p_layers = params["points_layers"]
    c_layers = params["colors_layers"]
    num_layers = len(p_layers)
    c0 = p_layers[0][0].shape[0]
    c_last = p_layers[-1][0].shape[0]

    # --- pad N to a lane-dense multiple of 128 (outputs sliced back) --------
    if N_in % 128:
        pad = 128 - N_in % 128
        xyz1 = jnp.pad(xyz1, ((0, 0), (0, 0), (0, pad)))
        if has_skip:
            points1 = jnp.pad(points1, ((0, 0), (0, 0), (0, pad)))
            colors1 = jnp.pad(colors1, ((0, 0), (0, 0), (0, pad)))
    N = xyz1.shape[2]

    vmem_cap = _vmem_capacity_bytes()
    big_vmem = vmem_cap >= 100 * (1 << 20)
    tN = int(n_tile) if n_tile is not None else _choose_n_tile(N, S, vmem_cap, B)
    assert N % tN == 0 and (tN % 128 == 0 or tN == N), (N, tN)
    grid = (B, N // tN)

    # --- fuse the first MLP layer with the interpolation matmul? ------------
    # Per-column MXU cost: interp path = Dtot*S + C0*Dtot ; fused = 2*C0*S.
    if fuse_first is None:
        fuse_first = 2 * c0 * S < Dtot * (S + c0)

    # NOTE: S == 1 needs no special case — the 3-NN weights collapse to 1.0 on
    # the single source point, matching torch's `repeat` branch.
    xyz1 = xyz1.astype(f32)
    xyz2_t = jnp.transpose(xyz2, (0, 2, 1)).astype(f32)            # [B, S, 3]

    wp0 = p_layers[0][0]
    wc0 = c_layers[0][0]
    if fuse_first:
        # Pre-apply the interp half of the first-layer weights once per batch
        # ([C0, D*] @ [B, D*, S] -> [B, C0, S]); the in-kernel interp + first
        # layer then collapse to one [C0, S] x [S, tN] matmul per stream.
        src_p = jnp.einsum("od,bds->bos", wp0[:, D1:], points2.astype(f32))
        src_c = jnp.einsum("od,bds->bos", wc0[:, D1:], colors2.astype(f32))
    else:
        src_p, src_c = points2, colors2
    src_p = src_p.astype(bf16)
    src_c = src_c.astype(bf16)

    # --- assemble kernel arguments + spec descriptors ------------------------
    arg_list = []
    spec_kinds = []   # ('stream3' | 'res3' | 'res2', block_shape)

    def add(arr, kind, block=None):
        arg_list.append(arr)
        spec_kinds.append((kind, tuple(block) if block is not None
                           else tuple(arr.shape)))

    add(xyz1, "stream3", (1, 3, tN))
    add(xyz2_t, "res3", (1, S, 3))
    add(src_p, "res3", (1, src_p.shape[1], S))
    add(src_c, "res3", (1, src_c.shape[1], S))
    if has_skip:
        add(points1.astype(bf16), "stream3", (1, D1, tN))
        add(colors1.astype(bf16), "stream3", (1, D1, tN))

    def add_stream_weights(layers):
        w0, b0 = layers[0]
        if not fuse_first:
            add(w0[:, D1:].astype(bf16), "res2")     # interp half  [C0, D*]
        if has_skip:
            add(w0[:, :D1].astype(bf16), "res2")     # skip half    [C0, D1]
        add(b0.astype(f32), "res2")                  # biases stay f32
        for wl, bl in layers[1:]:
            add(wl.astype(bf16), "res2")
            add(bl.astype(f32), "res2")

    add_stream_weights(p_layers)
    add_stream_weights(c_layers)

    def build_specs(single_buffer):
        res_kw = dict(pipeline_mode=pl.Buffered(1)) if single_buffer else {}
        specs = []
        for kind, block in spec_kinds:
            if kind == "stream3":
                specs.append(pl.BlockSpec(block, lambda b, n: (b, 0, n)))
            elif kind == "res3":
                specs.append(pl.BlockSpec(block, lambda b, n: (b, 0, 0), **res_kw))
            else:   # 'res2' — weights / biases, grid-invariant
                specs.append(pl.BlockSpec(block, lambda b, n: (0, 0), **res_kw))
        return specs

    kernel = _make_fused_kernel(num_layers, has_skip, fuse_first, exact_ties)
    out_shapes = (jax.ShapeDtypeStruct((B, c_last, N), f32),
                  jax.ShapeDtypeStruct((B, c_last, N), f32))
    out_specs = (pl.BlockSpec((1, c_last, tN), lambda b, n: (b, 0, n)),
                 pl.BlockSpec((1, c_last, tN), lambda b, n: (b, 0, n)))
    cparams = pltpu.CompilerParams(
        dimension_semantics=("parallel", "parallel"),
        vmem_limit_bytes=(96 if big_vmem else 40) * (1 << 20))

    def call(single_buffer):
        return pl.pallas_call(
            kernel,
            out_shape=out_shapes,
            grid=grid,
            in_specs=build_specs(single_buffer),
            out_specs=out_specs,
            compiler_params=cparams,
        )(*arg_list)

    if single_buffer_resident is None:
        try:
            out_p, out_c = call(True)
        except Exception:          # pl.Buffered(1) unsupported -> default buffering
            out_p, out_c = call(False)
    else:
        out_p, out_c = call(bool(single_buffer_resident))

    if N != N_in:
        out_p = out_p[:, :, :N_in]
        out_c = out_c[:, :, :N_in]
    return out_p, out_c


# ---------------------------------------------------------------------------
# Pure-JAX reference (mirrors the PyTorch forward) for a numerics self-check
# ---------------------------------------------------------------------------
def _reference_forward(params, xyz1, xyz2, points1, points2, colors1, colors2):
    x1 = jnp.transpose(xyz1, (0, 2, 1))
    x2 = jnp.transpose(xyz2, (0, 2, 1))
    p2 = jnp.transpose(points2, (0, 2, 1))
    c2 = jnp.transpose(colors2, (0, 2, 1))
    d = (-2.0 * jnp.einsum("bnc,bsc->bns", x1, x2)
         + jnp.sum(x1 * x1, -1)[:, :, None]
         + jnp.sum(x2 * x2, -1)[:, None, :])
    idx = jnp.argsort(d, axis=-1)[:, :, :3]
    dists = jnp.take_along_axis(d, idx, axis=-1)
    recip = 1.0 / (dists + 1e-8)
    wgt = recip / jnp.sum(recip, -1, keepdims=True)
    gather = jax.vmap(lambda f, ix: f[ix])
    interp_p = jnp.sum(gather(p2, idx) * wgt[..., None], axis=2)
    interp_c = jnp.sum(gather(c2, idx) * wgt[..., None], axis=2)
    if points1 is not None:
        new_p = jnp.concatenate([jnp.transpose(points1, (0, 2, 1)), interp_p], -1)
        new_c = jnp.concatenate([jnp.transpose(colors1, (0, 2, 1)), interp_c], -1)
    else:
        new_p, new_c = interp_p, interp_c
    for w, b in params["points_layers"]:
        new_p = jnp.maximum(jnp.einsum("bnc,oc->bno", new_p, w) + b[:, 0], 0.0)
    for w, b in params["colors_layers"]:
        new_c = jnp.maximum(jnp.einsum("bnc,oc->bno", new_c, w) + b[:, 0], 0.0)
    return jnp.transpose(new_p, (0, 2, 1)), jnp.transpose(new_c, (0, 2, 1))


# ---------------------------------------------------------------------------
if __name__ == "__main__":
    def make_inputs(key, B, N, S, D1, D2, mlp):
        ks = jax.random.split(key, 7)
        xyz1 = jax.random.normal(ks[0], (B, 3, N), jnp.float32)
        xyz2 = jax.random.normal(ks[1], (B, 3, S), jnp.float32)
        points1 = jax.random.normal(ks[2], (B, D1, N), jnp.float32)
        points2 = jax.random.normal(ks[3], (B, D2, S), jnp.float32)
        colors1 = jax.random.normal(ks[4], (B, D1, N), jnp.float32)
        colors2 = jax.random.normal(ks[5], (B, D2, S), jnp.float32)
        params = init_params(ks[6], D1 + D2, mlp)
        return params, xyz1, xyz2, points1, points2, colors1, colors2

    def check(tag, params, *tensors, **kw):
        out_p, out_c = pointnet_fp_forward(params, *tensors, **kw)
        out_p = jax.block_until_ready(out_p)
        out_c = jax.block_until_ready(out_c)
        ref_p, ref_c = _reference_forward(params, *tensors)
        assert out_p.shape == ref_p.shape and out_c.shape == ref_c.shape
        assert bool(jnp.all(jnp.isfinite(out_p))) and bool(jnp.all(jnp.isfinite(out_c)))
        assert bool(jnp.all(out_p >= 0.0)) and bool(jnp.all(out_c >= 0.0))
        # bf16 MXU matmuls vs the f32 reference -> slightly looser tolerances.
        assert bool(jnp.allclose(out_p, ref_p, rtol=5e-2, atol=1e-2)), f"{tag}: points"
        assert bool(jnp.allclose(out_c, ref_c, rtol=5e-2, atol=1e-2)), f"{tag}: colors"

    key = jax.random.PRNGKey(0)
    k1, k2 = jax.random.split(key)

    # 1) small config: interp path, exact torch tie-breaking, forced tN=128 grid.
    args1 = make_inputs(k1, B=2, N=256, S=64, D1=4, D2=6, mlp=[16, 8])
    check("interp", *args1, n_tile=128, fuse_first=False, exact_ties=True)

    # 2) wide-feature config: fused first layer (auto), fast NN path,
    #    unaligned N exercises the pad-to-128 path.
    args2 = make_inputs(k2, B=1, N=200, S=64, D1=8, D2=96, mlp=[32, 16])
    check("fused", *args2)

    print("KERNEL_OK")
</pallas_src>

<mosaic_0001>
module attributes {stable_mosaic.version = 11 : i64} {
  func.func @kernel(%arg0: i32, %arg1: i32, %arg2: memref<1x3x128xf32, #tpu.memory_space<vmem>>, %arg3: memref<1x64x3xf32, #tpu.memory_space<vmem>>, %arg4: memref<1x6x64xbf16, #tpu.memory_space<vmem>>, %arg5: memref<1x6x64xbf16, #tpu.memory_space<vmem>>, %arg6: memref<1x4x128xbf16, #tpu.memory_space<vmem>>, %arg7: memref<1x4x128xbf16, #tpu.memory_space<vmem>>, %arg8: memref<16x6xbf16, #tpu.memory_space<vmem>>, %arg9: memref<16x4xbf16, #tpu.memory_space<vmem>>, %arg10: memref<16x1xf32, #tpu.memory_space<vmem>>, %arg11: memref<8x16xbf16, #tpu.memory_space<vmem>>, %arg12: memref<8x1xf32, #tpu.memory_space<vmem>>, %arg13: memref<16x6xbf16, #tpu.memory_space<vmem>>, %arg14: memref<16x4xbf16, #tpu.memory_space<vmem>>, %arg15: memref<16x1xf32, #tpu.memory_space<vmem>>, %arg16: memref<8x16xbf16, #tpu.memory_space<vmem>>, %arg17: memref<8x1xf32, #tpu.memory_space<vmem>>, %arg18: memref<1x8x128xf32, #tpu.memory_space<vmem>>, %arg19: memref<1x8x128xf32, #tpu.memory_space<vmem>>) attributes {dimension_semantics = [#tpu.dimension_semantics<parallel>, #tpu.dimension_semantics<parallel>], iteration_bounds = array<i64: 2, 2>, scalar_prefetch = 0 : i64, scratch_operands = 0 : i64, tpu.core_type = #tpu.core_type<tc>, window_params = [{transform_indices = @transform_0, window_bounds = array<i64: 1, 3, 128>}, {pipeline_mode = #tpu.pipeline_mode<synchronous>, transform_indices = @transform_1, window_bounds = array<i64: 1, 64, 3>}, {pipeline_mode = #tpu.pipeline_mode<synchronous>, transform_indices = @transform_2, window_bounds = array<i64: 1, 6, 64>}, {pipeline_mode = #tpu.pipeline_mode<synchronous>, transform_indices = @transform_3, window_bounds = array<i64: 1, 6, 64>}, {transform_indices = @transform_4, window_bounds = array<i64: 1, 4, 128>}, {transform_indices = @transform_5, window_bounds = array<i64: 1, 4, 128>}, {pipeline_mode = #tpu.pipeline_mode<synchronous>, transform_indices = @transform_6, window_bounds = array<i64: 16, 6>}, {pipeline_mode = #tpu.pipeline_mode<synchronous>, transform_indices = @transform_7, window_bounds = array<i64: 16, 4>}, {pipeline_mode = #tpu.pipeline_mode<synchronous>, transform_indices = @transform_8, window_bounds = array<i64: 16, 1>}, {pipeline_mode = #tpu.pipeline_mode<synchronous>, transform_indices = @transform_9, window_bounds = array<i64: 8, 16>}, {pipeline_mode = #tpu.pipeline_mode<synchronous>, transform_indices = @transform_10, window_bounds = array<i64: 8, 1>}, {pipeline_mode = #tpu.pipeline_mode<synchronous>, transform_indices = @transform_11, window_bounds = array<i64: 16, 6>}, {pipeline_mode = #tpu.pipeline_mode<synchronous>, transform_indices = @transform_12, window_bounds = array<i64: 16, 4>}, {pipeline_mode = #tpu.pipeline_mode<synchronous>, transform_indices = @transform_13, window_bounds = array<i64: 16, 1>}, {pipeline_mode = #tpu.pipeline_mode<synchronous>, transform_indices = @transform_14, window_bounds = array<i64: 8, 16>}, {pipeline_mode = #tpu.pipeline_mode<synchronous>, transform_indices = @transform_15, window_bounds = array<i64: 8, 1>}, {transform_indices = @transform_16, window_bounds = array<i64: 1, 8, 128>}, {transform_indices = @transform_17, window_bounds = array<i64: 1, 8, 128>}]} {
    %c0 = arith.constant 0 : index
    %c0_0 = arith.constant 0 : index
    %c0_1 = arith.constant 0 : index
    %0 = vector.load %arg2[%c0, %c0_0, %c0_1] : memref<1x3x128xf32, #tpu.memory_space<vmem>>, vector<1x3x128xf32>
    %1 = vector.shape_cast %0 : vector<1x3x128xf32> to vector<3x128xf32>
    %c0_2 = arith.constant 0 : index
    %c0_3 = arith.constant 0 : index
    %c0_4 = arith.constant 0 : index
    %2 = vector.load %arg3[%c0_2, %c0_3, %c0_4] : memref<1x64x3xf32, #tpu.memory_space<vmem>>, vector<1x64x3xf32>
    %3 = vector.shape_cast %2 : vector<1x64x3xf32> to vector<64x3xf32>
    %c0_5 = arith.constant 0 : index
    %c0_6 = arith.constant 0 : index
    %c0_7 = arith.constant 0 : index
    %4 = vector.load %arg4[%c0_5, %c0_6, %c0_7] : memref<1x6x64xbf16, #tpu.memory_space<vmem>>, vector<1x6x64xbf16>
    %5 = vector.shape_cast %4 : vector<1x6x64xbf16> to vector<6x64xbf16>
    %c0_8 = arith.constant 0 : index
    %c0_9 = arith.constant 0 : index
    %c0_10 = arith.constant 0 : index
    %6 = vector.load %arg5[%c0_8, %c0_9, %c0_10] : memref<1x6x64xbf16, #tpu.memory_space<vmem>>, vector<1x6x64xbf16>
    %7 = vector.shape_cast %6 : vector<1x6x64xbf16> to vector<6x64xbf16>
    %c0_11 = arith.constant 0 : index
    %c0_12 = arith.constant 0 : index
    %c0_13 = arith.constant 0 : index
    %8 = vector.load %arg6[%c0_11, %c0_12, %c0_13] : memref<1x4x128xbf16, #tpu.memory_space<vmem>>, vector<1x4x128xbf16>
    %9 = vector.shape_cast %8 : vector<1x4x128xbf16> to vector<4x128xbf16>
    %c0_14 = arith.constant 0 : index
    %c0_15 = arith.constant 0 : index
    %c0_16 = arith.constant 0 : index
    %10 = vector.load %arg7[%c0_14, %c0_15, %c0_16] : memref<1x4x128xbf16, #tpu.memory_space<vmem>>, vector<1x4x128xbf16>
    %11 = vector.shape_cast %10 : vector<1x4x128xbf16> to vector<4x128xbf16>
    %c0_17 = arith.constant 0 : index
    %c0_18 = arith.constant 0 : index
    %12 = vector.load %arg8[%c0_17, %c0_18] : memref<16x6xbf16, #tpu.memory_space<vmem>>, vector<16x6xbf16>
    %c0_19 = arith.constant 0 : index
    %c0_20 = arith.constant 0 : index
    %13 = vector.load %arg9[%c0_19, %c0_20] : memref<16x4xbf16, #tpu.memory_space<vmem>>, vector<16x4xbf16>
    %c0_21 = arith.constant 0 : index
    %c0_22 = arith.constant 0 : index
    %14 = vector.load %arg10[%c0_21, %c0_22] : memref<16x1xf32, #tpu.memory_space<vmem>>, vector<16x1xf32>
    %c0_23 = arith.constant 0 : index
    %c0_24 = arith.constant 0 : index
    %15 = vector.load %arg11[%c0_23, %c0_24] : memref<8x16xbf16, #tpu.memory_space<vmem>>, vector<8x16xbf16>
    %c0_25 = arith.constant 0 : index
    %c0_26 = arith.constant 0 : index
    %16 = vector.load %arg12[%c0_25, %c0_26] : memref<8x1xf32, #tpu.memory_space<vmem>>, vector<8x1xf32>
    %c0_27 = arith.constant 0 : index
    %c0_28 = arith.constant 0 : index
    %17 = vector.load %arg13[%c0_27, %c0_28] : memref<16x6xbf16, #tpu.memory_space<vmem>>, vector<16x6xbf16>
    %c0_29 = arith.constant 0 : index
    %c0_30 = arith.constant 0 : index
    %18 = vector.load %arg14[%c0_29, %c0_30] : memref<16x4xbf16, #tpu.memory_space<vmem>>, vector<16x4xbf16>
    %c0_31 = arith.constant 0 : index
    %c0_32 = arith.constant 0 : index
    %19 = vector.load %arg15[%c0_31, %c0_32] : memref<16x1xf32, #tpu.memory_space<vmem>>, vector<16x1xf32>
    %c0_33 = arith.constant 0 : index
    %c0_34 = arith.constant 0 : index
    %20 = vector.load %arg16[%c0_33, %c0_34] : memref<8x16xbf16, #tpu.memory_space<vmem>>, vector<8x16xbf16>
    %c0_35 = arith.constant 0 : index
    %c0_36 = arith.constant 0 : index
    %21 = vector.load %arg17[%c0_35, %c0_36] : memref<8x1xf32, #tpu.memory_space<vmem>>, vector<8x1xf32>
    %cst = arith.constant dense<0.000000e+00> : vector<64x128xf32>
    %22 = tpu.matmul %3, %1, %cst {dimension_numbers = #tpu.dot_dimension_numbers<[1], [0], [0], [1], [0, 0, 1, 1], [], []>} : vector<64x3xf32>, vector<3x128xf32>, vector<64x128xf32> -> vector<64x128xf32>
    %23 = arith.mulf %3, %3 : vector<64x3xf32>
    %cst_37 = arith.constant dense<0.000000e+00> : vector<64xf32>
    %24 = vector.multi_reduction <add>, %23, %cst_37 [1] : vector<64x3xf32> to vector<64xf32>
    %25 = vector.shape_cast %24 : vector<64xf32> to vector<64x1xf32>
    %26 = arith.mulf %1, %1 : vector<3x128xf32>
    %cst_38 = arith.constant dense<0.000000e+00> : vector<128xf32>
    %27 = vector.multi_reduction <add>, %26, %cst_38 [0] : vector<3x128xf32> to vector<128xf32>
    %28 = vector.shape_cast %27 : vector<128xf32> to vector<1x128xf32>
    %cst_39 = arith.constant -2.000000e+00 : f32
    %29 = vector.broadcast %cst_39 : f32 to vector<64x128xf32>
    %30 = arith.mulf %29, %22 : vector<64x128xf32>
    %31 = vector.broadcast %25 : vector<64x1xf32> to vector<64x128xf32>
    %32 = arith.addf %30, %31 : vector<64x128xf32>
    %33 = vector.broadcast %28 : vector<1x128xf32> to vector<64x128xf32>
    %34 = arith.addf %32, %33 : vector<64x128xf32>
    %cst_40 = arith.constant 0.000000e+00 : f32
    %35 = vector.broadcast %cst_40 : f32 to vector<64x128xf32>
    %cst_41 = arith.constant 0.000000e+00 : f32
    %36 = vector.broadcast %cst_41 : f32 to vector<1x128xf32>
    %cst_42 = arith.constant dense<0x7F800000> : vector<128xf32>
    %37 = vector.multi_reduction <minimumf>, %34, %cst_42 [0] : vector<64x128xf32> to vector<128xf32>
    %38 = vector.shape_cast %37 : vector<128xf32> to vector<1x128xf32>
    %39 = tpu.iota {dimensions = array<i32: 0>} : vector<64x128xi32>
    %40 = vector.broadcast %38 : vector<1x128xf32> to vector<64x128xf32>
    %41 = arith.cmpf oeq, %34, %40 : vector<64x128xf32>
    %c64_i32 = arith.constant 64 : i32
    %42 = vector.broadcast %c64_i32 : i32 to vector<64x128xi32>
    %43 = arith.select %41, %39, %42 : vector<64x128xi1>, vector<64x128xi32>
    %cst_43 = arith.constant dense<2147483647> : vector<128xi32>
    %44 = vector.multi_reduction <minsi>, %43, %cst_43 [0] : vector<64x128xi32> to vector<128xi32>
    %45 = vector.shape_cast %44 : vector<128xi32> to vector<1x128xi32>
    %46 = vector.broadcast %45 : vector<1x128xi32> to vector<64x128xi32>
    %47 = arith.cmpi eq, %39, %46 : vector<64x128xi32>
    %cst_44 = arith.constant 0.000000e+00 : f32
    %48 = vector.broadcast %cst_44 : f32 to vector<1x128xf32>
    %49 = arith.maximumf %38, %48 : vector<1x128xf32>
    %cst_45 = arith.constant 9.99999993E-9 : f32
    %50 = vector.broadcast %cst_45 : f32 to vector<1x128xf32>
    %51 = arith.addf %49, %50 : vector<1x128xf32>
    %cst_46 = arith.constant 1.000000e+00 : f32
    %52 = vector.broadcast %cst_46 : f32 to vector<1x128xf32>
    %53 = arith.divf %52, %51 : vector<1x128xf32>
    %54 = arith.extui %47 : vector<64x128xi1> to vector<64x128xi32>
    %55 = arith.sitofp %54 : vector<64x128xi32> to vector<64x128xf32>
    %56 = vector.broadcast %53 : vector<1x128xf32> to vector<64x128xf32>
    %57 = arith.mulf %55, %56 : vector<64x128xf32>
    %58 = arith.addf %35, %57 : vector<64x128xf32>
    %59 = arith.addf %36, %53 : vector<1x128xf32>
    %cst_47 = arith.constant 0x7F800000 : f32
    %60 = vector.broadcast %cst_47 : f32 to vector<64x128xf32>
    %61 = arith.select %47, %60, %34 : vector<64x128xi1>, vector<64x128xf32>
    %cst_48 = arith.constant dense<0x7F800000> : vector<128xf32>
    %62 = vector.multi_reduction <minimumf>, %61, %cst_48 [0] : vector<64x128xf32> to vector<128xf32>
    %63 = vector.shape_cast %62 : vector<128xf32> to vector<1x128xf32>
    %64 = tpu.iota {dimensions = array<i32: 0>} : vector<64x128xi32>
    %65 = vector.broadcast %63 : vector<1x128xf32> to vector<64x128xf32>
    %66 = arith.cmpf oeq, %61, %65 : vector<64x128xf32>
    %c64_i32_49 = arith.constant 64 : i32
    %67 = vector.broadcast %c64_i32_49 : i32 to vector<64x128xi32>
    %68 = arith.select %66, %64, %67 : vector<64x128xi1>, vector<64x128xi32>
    %cst_50 = arith.constant dense<2147483647> : vector<128xi32>
    %69 = vector.multi_reduction <minsi>, %68, %cst_50 [0] : vector<64x128xi32> to vector<128xi32>
    %70 = vector.shape_cast %69 : vector<128xi32> to vector<1x128xi32>
    %71 = vector.broadcast %70 : vector<1x128xi32> to vector<64x128xi32>
    %72 = arith.cmpi eq, %64, %71 : vector<64x128xi32>
    %cst_51 = arith.constant 0.000000e+00 : f32
    %73 = vector.broadcast %cst_51 : f32 to vector<1x128xf32>
    %74 = arith.maximumf %63, %73 : vector<1x128xf32>
    %cst_52 = arith.constant 9.99999993E-9 : f32
    %75 = vector.broadcast %cst_52 : f32 to vector<1x128xf32>
    %76 = arith.addf %74, %75 : vector<1x128xf32>
    %cst_53 = arith.constant 1.000000e+00 : f32
    %77 = vector.broadcast %cst_53 : f32 to vector<1x128xf32>
    %78 = arith.divf %77, %76 : vector<1x128xf32>
    %79 = arith.extui %72 : vector<64x128xi1> to vector<64x128xi32>
    %80 = arith.sitofp %79 : vector<64x128xi32> to vector<64x128xf32>
    %81 = vector.broadcast %78 : vector<1x128xf32> to vector<64x128xf32>
    %82 = arith.mulf %80, %81 : vector<64x128xf32>
    %83 = arith.addf %58, %82 : vector<64x128xf32>
    %84 = arith.addf %59, %78 : vector<1x128xf32>
    %cst_54 = arith.constant 0x7F800000 : f32
    %85 = vector.broadcast %cst_54 : f32 to vector<64x128xf32>
    %86 = arith.select %72, %85, %61 : vector<64x128xi1>, vector<64x128xf32>
    %cst_55 = arith.constant dense<0x7F800000> : vector<128xf32>
    %87 = vector.multi_reduction <minimumf>, %86, %cst_55 [0] : vector<64x128xf32> to vector<128xf32>
    %88 = vector.shape_cast %87 : vector<128xf32> to vector<1x128xf32>
    %89 = tpu.iota {dimensions = array<i32: 0>} : vector<64x128xi32>
    %90 = vector.broadcast %88 : vector<1x128xf32> to vector<64x128xf32>
    %91 = arith.cmpf oeq, %86, %90 : vector<64x128xf32>
    %c64_i32_56 = arith.constant 64 : i32
    %92 = vector.broadcast %c64_i32_56 : i32 to vector<64x128xi32>
    %93 = arith.select %91, %89, %92 : vector<64x128xi1>, vector<64x128xi32>
    %cst_57 = arith.constant dense<2147483647> : vector<128xi32>
    %94 = vector.multi_reduction <minsi>, %93, %cst_57 [0] : vector<64x128xi32> to vector<128xi32>
    %95 = vector.shape_cast %94 : vector<128xi32> to vector<1x128xi32>
    %96 = vector.broadcast %95 : vector<1x128xi32> to vector<64x128xi32>
    %97 = arith.cmpi eq, %89, %96 : vector<64x128xi32>
    %cst_58 = arith.constant 0.000000e+00 : f32
    %98 = vector.broadcast %cst_58 : f32 to vector<1x128xf32>
    %99 = arith.maximumf %88, %98 : vector<1x128xf32>
    %cst_59 = arith.constant 9.99999993E-9 : f32
    %100 = vector.broadcast %cst_59 : f32 to vector<1x128xf32>
    %101 = arith.addf %99, %100 : vector<1x128xf32>
    %cst_60 = arith.constant 1.000000e+00 : f32
    %102 = vector.broadcast %cst_60 : f32 to vector<1x128xf32>
    %103 = arith.divf %102, %101 : vector<1x128xf32>
    %104 = arith.extui %97 : vector<64x128xi1> to vector<64x128xi32>
    %105 = arith.sitofp %104 : vector<64x128xi32> to vector<64x128xf32>
    %106 = vector.broadcast %103 : vector<1x128xf32> to vector<64x128xf32>
    %107 = arith.mulf %105, %106 : vector<64x128xf32>
    %108 = arith.addf %83, %107 : vector<64x128xf32>
    %109 = arith.addf %84, %103 : vector<1x128xf32>
    %110 = arith.truncf %108 : vector<64x128xf32> to vector<64x128xbf16>
    %111 = tpu.reciprocal %109 {approx = true} : vector<1x128xf32> -> vector<1x128xf32>
    %cst_61 = arith.constant dense<0.000000e+00> : vector<6x128xf32>
    %112 = tpu.matmul %5, %110, %cst_61 {dimension_numbers = #tpu.dot_dimension_numbers<[1], [0], [0], [1], [0, 0, 1, 1], [], []>} : vector<6x64xbf16>, vector<64x128xbf16>, vector<6x128xf32> -> vector<6x128xf32>
    %113 = vector.broadcast %111 : vector<1x128xf32> to vector<6x128xf32>
    %114 = arith.mulf %112, %113 : vector<6x128xf32>
    %115 = arith.truncf %114 : vector<6x128xf32> to vector<6x128xbf16>
    %cst_62 = arith.constant dense<0.000000e+00> : vector<16x128xf32>
    %116 = tpu.matmul %12, %115, %cst_62 {dimension_numbers = #tpu.dot_dimension_numbers<[1], [0], [0], [1], [0, 0, 1, 1], [], []>} : vector<16x6xbf16>, vector<6x128xbf16>, vector<16x128xf32> -> vector<16x128xf32>
    %cst_63 = arith.constant dense<0.000000e+00> : vector<16x128xf32>
    %117 = tpu.matmul %13, %9, %cst_63 {dimension_numbers = #tpu.dot_dimension_numbers<[1], [0], [0], [1], [0, 0, 1, 1], [], []>} : vector<16x4xbf16>, vector<4x128xbf16>, vector<16x128xf32> -> vector<16x128xf32>
    %118 = arith.addf %116, %117 : vector<16x128xf32>
    %119 = vector.broadcast %14 : vector<16x1xf32> to vector<16x128xf32>
    %120 = arith.addf %118, %119 : vector<16x128xf32>
    %cst_64 = arith.constant 0.000000e+00 : f32
    %121 = vector.broadcast %cst_64 : f32 to vector<16x128xf32>
    %122 = arith.maximumf %120, %121 : vector<16x128xf32>
    %123 = arith.truncf %122 : vector<16x128xf32> to vector<16x128xbf16>
    %cst_65 = arith.constant dense<0.000000e+00> : vector<8x128xf32>
    %124 = tpu.matmul %15, %123, %cst_65 {dimension_numbers = #tpu.dot_dimension_numbers<[1], [0], [0], [1], [0, 0, 1, 1], [], []>} : vector<8x16xbf16>, vector<16x128xbf16>, vector<8x128xf32> -> vector<8x128xf32>
    %125 = vector.broadcast %16 : vector<8x1xf32> to vector<8x128xf32>
    %126 = arith.addf %124, %125 : vector<8x128xf32>
    %cst_66 = arith.constant 0.000000e+00 : f32
    %127 = vector.broadcast %cst_66 : f32 to vector<8x128xf32>
    %128 = arith.maximumf %126, %127 : vector<8x128xf32>
    %c0_67 = arith.constant 0 : index
    %c0_68 = arith.constant 0 : index
    %c0_69 = arith.constant 0 : index
    %129 = vector.load %arg18[%c0_67, %c0_68, %c0_69] : memref<1x8x128xf32, #tpu.memory_space<vmem>>, vector<1x8x128xf32>
    %130 = vector.shape_cast %129 : vector<1x8x128xf32> to vector<8x128xf32>
    %131 = vector.shape_cast %128 : vector<8x128xf32> to vector<1x8x128xf32>
    tpu.vector_store %arg18[%c0_67, %c0_68, %c0_69], %131 {strides = array<i32>} : memref<1x8x128xf32, #tpu.memory_space<vmem>>, vector<1x8x128xf32>,
    %cst_70 = arith.constant dense<0.000000e+00> : vector<6x128xf32>
    %132 = tpu.matmul %7, %110, %cst_70 {dimension_numbers = #tpu.dot_dimension_numbers<[1], [0], [0], [1], [0, 0, 1, 1], [], []>} : vector<6x64xbf16>, vector<64x128xbf16>, vector<6x128xf32> -> vector<6x128xf32>
    %133 = vector.broadcast %111 : vector<1x128xf32> to vector<6x128xf32>
    %134 = arith.mulf %132, %133 : vector<6x128xf32>
    %135 = arith.truncf %134 : vector<6x128xf32> to vector<6x128xbf16>
    %cst_71 = arith.constant dense<0.000000e+00> : vector<16x128xf32>
    %136 = tpu.matmul %17, %135, %cst_71 {dimension_numbers = #tpu.dot_dimension_numbers<[1], [0], [0], [1], [0, 0, 1, 1], [], []>} : vector<16x6xbf16>, vector<6x128xbf16>, vector<16x128xf32> -> vector<16x128xf32>
    %cst_72 = arith.constant dense<0.000000e+00> : vector<16x128xf32>
    %137 = tpu.matmul %18, %11, %cst_72 {dimension_numbers = #tpu.dot_dimension_numbers<[1], [0], [0], [1], [0, 0, 1, 1], [], []>} : vector<16x4xbf16>, vector<4x128xbf16>, vector<16x128xf32> -> vector<16x128xf32>
    %138 = arith.addf %136, %137 : vector<16x128xf32>
    %139 = vector.broadcast %19 : vector<16x1xf32> to vector<16x128xf32>
    %140 = arith.addf %138, %139 : vector<16x128xf32>
    %cst_73 = arith.constant 0.000000e+00 : f32
    %141 = vector.broadcast %cst_73 : f32 to vector<16x128xf32>
    %142 = arith.maximumf %140, %141 : vector<16x128xf32>
    %143 = arith.truncf %142 : vector<16x128xf32> to vector<16x128xbf16>
    %cst_74 = arith.constant dense<0.000000e+00> : vector<8x128xf32>
    %144 = tpu.matmul %20, %143, %cst_74 {dimension_numbers = #tpu.dot_dimension_numbers<[1], [0], [0], [1], [0, 0, 1, 1], [], []>} : vector<8x16xbf16>, vector<16x128xbf16>, vector<8x128xf32> -> vector<8x128xf32>
    %145 = vector.broadcast %21 : vector<8x1xf32> to vector<8x128xf32>
    %146 = arith.addf %144, %145 : vector<8x128xf32>
    %cst_75 = arith.constant 0.000000e+00 : f32
    %147 = vector.broadcast %cst_75 : f32 to vector<8x128xf32>
    %148 = arith.maximumf %146, %147 : vector<8x128xf32>
    %c0_76 = arith.constant 0 : index
    %c0_77 = arith.constant 0 : index
    %c0_78 = arith.constant 0 : index
    %149 = vector.load %arg19[%c0_76, %c0_77, %c0_78] : memref<1x8x128xf32, #tpu.memory_space<vmem>>, vector<1x8x128xf32>
    %150 = vector.shape_cast %149 : vector<1x8x128xf32> to vector<8x128xf32>
    %151 = vector.shape_cast %148 : vector<8x128xf32> to vector<1x8x128xf32>
    tpu.vector_store %arg19[%c0_76, %c0_77, %c0_78], %151 {strides = array<i32>} : memref<1x8x128xf32, #tpu.memory_space<vmem>>, vector<1x8x128xf32>,
    return
  }
  func.func @transform_0(%arg0: i32, %arg1: i32) -> (i32, i32, i32) {
    %c0_i32 = arith.constant 0 : i32
    %c0_i32_0 = arith.constant 0 : i32
    return %arg0, %c0_i32, %arg1 : i32, i32, i32
  }
  func.func @transform_1(%arg0: i32, %arg1: i32) -> (i32, i32, i32) {
    %c0_i32 = arith.constant 0 : i32
    %c0_i32_0 = arith.constant 0 : i32
    %c0_i32_1 = arith.constant 0 : i32
    return %arg0, %c0_i32, %c0_i32_0 : i32, i32, i32
  }
  func.func @transform_2(%arg0: i32, %arg1: i32) -> (i32, i32, i32) {
    %c0_i32 = arith.constant 0 : i32
    %c0_i32_0 = arith.constant 0 : i32
    %c0_i32_1 = arith.constant 0 : i32
    return %arg0, %c0_i32, %c0_i32_0 : i32, i32, i32
  }
  func.func @transform_3(%arg0: i32, %arg1: i32) -> (i32, i32, i32) {
    %c0_i32 = arith.constant 0 : i32
    %c0_i32_0 = arith.constant 0 : i32
    %c0_i32_1 = arith.constant 0 : i32
    return %arg0, %c0_i32, %c0_i32_0 : i32, i32, i32
  }
  func.func @transform_4(%arg0: i32, %arg1: i32) -> (i32, i32, i32) {
    %c0_i32 = arith.constant 0 : i32
    %c0_i32_0 = arith.constant 0 : i32
    return %arg0, %c0_i32, %arg1 : i32, i32, i32
  }
  func.func @transform_5(%arg0: i32, %arg1: i32) -> (i32, i32, i32) {
    %c0_i32 = arith.constant 0 : i32
    %c0_i32_0 = arith.constant 0 : i32
    return %arg0, %c0_i32, %arg1 : i32, i32, i32
  }
  func.func @transform_6(%arg0: i32, %arg1: i32) -> (i32, i32) {
    %c0_i32 = arith.constant 0 : i32
    %c0_i32_0 = arith.constant 0 : i32
    %c0_i32_1 = arith.constant 0 : i32
    return %c0_i32, %c0_i32_0 : i32, i32
  }
  func.func @transform_7(%arg0: i32, %arg1: i32) -> (i32, i32) {
    %c0_i32 = arith.constant 0 : i32
    %c0_i32_0 = arith.constant 0 : i32
    %c0_i32_1 = arith.constant 0 : i32
    return %c0_i32, %c0_i32_0 : i32, i32
  }
  func.func @transform_8(%arg0: i32, %arg1: i32) -> (i32, i32) {
    %c0_i32 = arith.constant 0 : i32
    %c0_i32_0 = arith.constant 0 : i32
    %c0_i32_1 = arith.constant 0 : i32
    return %c0_i32, %c0_i32_0 : i32, i32
  }
  func.func @transform_9(%arg0: i32, %arg1: i32) -> (i32, i32) {
    %c0_i32 = arith.constant 0 : i32
    %c0_i32_0 = arith.constant 0 : i32
    %c0_i32_1 = arith.constant 0 : i32
    return %c0_i32, %c0_i32_0 : i32, i32
  }
  func.func @transform_10(%arg0: i32, %arg1: i32) -> (i32, i32) {
    %c0_i32 = arith.constant 0 : i32
    %c0_i32_0 = arith.constant 0 : i32
    %c0_i32_1 = arith.constant 0 : i32
    return %c0_i32, %c0_i32_0 : i32, i32
  }
  func.func @transform_11(%arg0: i32, %arg1: i32) -> (i32, i32) {
    %c0_i32 = arith.constant 0 : i32
    %c0_i32_0 = arith.constant 0 : i32
    %c0_i32_1 = arith.constant 0 : i32
    return %c0_i32, %c0_i32_0 : i32, i32
  }
  func.func @transform_12(%arg0: i32, %arg1: i32) -> (i32, i32) {
    %c0_i32 = arith.constant 0 : i32
    %c0_i32_0 = arith.constant 0 : i32
    %c0_i32_1 = arith.constant 0 : i32
    return %c0_i32, %c0_i32_0 : i32, i32
  }
  func.func @transform_13(%arg0: i32, %arg1: i32) -> (i32, i32) {
    %c0_i32 = arith.constant 0 : i32
    %c0_i32_0 = arith.constant 0 : i32
    %c0_i32_1 = arith.constant 0 : i32
    return %c0_i32, %c0_i32_0 : i32, i32
  }
  func.func @transform_14(%arg0: i32, %arg1: i32) -> (i32, i32) {
    %c0_i32 = arith.constant 0 : i32
    %c0_i32_0 = arith.constant 0 : i32
    %c0_i32_1 = arith.constant 0 : i32
    return %c0_i32, %c0_i32_0 : i32, i32
  }
  func.func @transform_15(%arg0: i32, %arg1: i32) -> (i32, i32) {
    %c0_i32 = arith.constant 0 : i32
    %c0_i32_0 = arith.constant 0 : i32
    %c0_i32_1 = arith.constant 0 : i32
    return %c0_i32, %c0_i32_0 : i32, i32
  }
  func.func @transform_16(%arg0: i32, %arg1: i32) -> (i32, i32, i32) {
    %c0_i32 = arith.constant 0 : i32
    %c0_i32_0 = arith.constant 0 : i32
    return %arg0, %c0_i32, %arg1 : i32, i32, i32
  }
  func.func @transform_17(%arg0: i32, %arg1: i32) -> (i32, i32, i32) {
    %c0_i32 = arith.constant 0 : i32
    %c0_i32_0 = arith.constant 0 : i32
    return %arg0, %c0_i32, %arg1 : i32, i32, i32
  }
}

module attributes {stable_mosaic.version = 11 : i64} {
  func.func @kernel(%arg0: i32, %arg1: i32, %arg2: memref<1x3x128xf32, #tpu.memory_space<vmem>>, %arg3: memref<1x64x3xf32, #tpu.memory_space<vmem>>, %arg4: memref<1x6x64xbf16, #tpu.memory_space<vmem>>, %arg5: memref<1x6x64xbf16, #tpu.memory_space<vmem>>, %arg6: memref<1x4x128xbf16, #tpu.memory_space<vmem>>, %arg7: memref<1x4x128xbf16, #tpu.memory_space<vmem>>, %arg8: memref<16x6xbf16, #tpu.memory_space<vmem>>, %arg9: memref<16x4xbf16, #tpu.memory_space<vmem>>, %arg10: memref<16x1xf32, #tpu.memory_space<vmem>>, %arg11: memref<8x16xbf16, #tpu.memory_space<vmem>>, %arg12: memref<8x1xf32, #tpu.memory_space<vmem>>, %arg13: memref<16x6xbf16, #tpu.memory_space<vmem>>, %arg14: memref<16x4xbf16, #tpu.memory_space<vmem>>, %arg15: memref<16x1xf32, #tpu.memory_space<vmem>>, %arg16: memref<8x16xbf16, #tpu.memory_space<vmem>>, %arg17: memref<8x1xf32, #tpu.memory_space<vmem>>, %arg18: memref<1x8x128xf32, #tpu.memory_space<vmem>>, %arg19: memref<1x8x128xf32, #tpu.memory_space<vmem>>) attributes {dimension_semantics = [#tpu.dimension_semantics<parallel>, #tpu.dimension_semantics<parallel>], iteration_bounds = array<i64: 2, 2>, scalar_prefetch = 0 : i64, scratch_operands = 0 : i64, tpu.core_type = #tpu.core_type<tc>, window_params = [{transform_indices = @transform_0, window_bounds = array<i64: 1, 3, 128>}, {transform_indices = @transform_1, window_bounds = array<i64: 1, 64, 3>}, {transform_indices = @transform_2, window_bounds = array<i64: 1, 6, 64>}, {transform_indices = @transform_3, window_bounds = array<i64: 1, 6, 64>}, {transform_indices = @transform_4, window_bounds = array<i64: 1, 4, 128>}, {transform_indices = @transform_5, window_bounds = array<i64: 1, 4, 128>}, {pipeline_mode = #tpu.pipeline_mode<synchronous>, transform_indices = @transform_6, window_bounds = array<i64: 16, 6>}, {pipeline_mode = #tpu.pipeline_mode<synchronous>, transform_indices = @transform_7, window_bounds = array<i64: 16, 4>}, {pipeline_mode = #tpu.pipeline_mode<synchronous>, transform_indices = @transform_8, window_bounds = array<i64: 16, 1>}, {pipeline_mode = #tpu.pipeline_mode<synchronous>, transform_indices = @transform_9, window_bounds = array<i64: 8, 16>}, {pipeline_mode = #tpu.pipeline_mode<synchronous>, transform_indices = @transform_10, window_bounds = array<i64: 8, 1>}, {pipeline_mode = #tpu.pipeline_mode<synchronous>, transform_indices = @transform_11, window_bounds = array<i64: 16, 6>}, {pipeline_mode = #tpu.pipeline_mode<synchronous>, transform_indices = @transform_12, window_bounds = array<i64: 16, 4>}, {pipeline_mode = #tpu.pipeline_mode<synchronous>, transform_indices = @transform_13, window_bounds = array<i64: 16, 1>}, {pipeline_mode = #tpu.pipeline_mode<synchronous>, transform_indices = @transform_14, window_bounds = array<i64: 8, 16>}, {pipeline_mode = #tpu.pipeline_mode<synchronous>, transform_indices = @transform_15, window_bounds = array<i64: 8, 1>}, {transform_indices = @transform_16, window_bounds = array<i64: 1, 8, 128>}, {transform_indices = @transform_17, window_bounds = array<i64: 1, 8, 128>}]} {
    %c0 = arith.constant 0 : index
    %c0_0 = arith.constant 0 : index
    %c0_1 = arith.constant 0 : index
    %0 = vector.load %arg2[%c0, %c0_0, %c0_1] : memref<1x3x128xf32, #tpu.memory_space<vmem>>, vector<1x3x128xf32>
    %1 = vector.shape_cast %0 : vector<1x3x128xf32> to vector<3x128xf32>
    %c0_2 = arith.constant 0 : index
    %c0_3 = arith.constant 0 : index
    %c0_4 = arith.constant 0 : index
    %2 = vector.load %arg3[%c0_2, %c0_3, %c0_4] : memref<1x64x3xf32, #tpu.memory_space<vmem>>, vector<1x64x3xf32>
    %3 = vector.shape_cast %2 : vector<1x64x3xf32> to vector<64x3xf32>
    %c0_5 = arith.constant 0 : index
    %c0_6 = arith.constant 0 : index
    %c0_7 = arith.constant 0 : index
    %4 = vector.load %arg4[%c0_5, %c0_6, %c0_7] : memref<1x6x64xbf16, #tpu.memory_space<vmem>>, vector<1x6x64xbf16>
    %5 = vector.shape_cast %4 : vector<1x6x64xbf16> to vector<6x64xbf16>
    %c0_8 = arith.constant 0 : index
    %c0_9 = arith.constant 0 : index
    %c0_10 = arith.constant 0 : index
    %6 = vector.load %arg5[%c0_8, %c0_9, %c0_10] : memref<1x6x64xbf16, #tpu.memory_space<vmem>>, vector<1x6x64xbf16>
    %7 = vector.shape_cast %6 : vector<1x6x64xbf16> to vector<6x64xbf16>
    %c0_11 = arith.constant 0 : index
    %c0_12 = arith.constant 0 : index
    %c0_13 = arith.constant 0 : index
    %8 = vector.load %arg6[%c0_11, %c0_12, %c0_13] : memref<1x4x128xbf16, #tpu.memory_space<vmem>>, vector<1x4x128xbf16>
    %9 = vector.shape_cast %8 : vector<1x4x128xbf16> to vector<4x128xbf16>
    %c0_14 = arith.constant 0 : index
    %c0_15 = arith.constant 0 : index
    %c0_16 = arith.constant 0 : index
    %10 = vector.load %arg7[%c0_14, %c0_15, %c0_16] : memref<1x4x128xbf16, #tpu.memory_space<vmem>>, vector<1x4x128xbf16>
    %11 = vector.shape_cast %10 : vector<1x4x128xbf16> to vector<4x128xbf16>
    %c0_17 = arith.constant 0 : index
    %c0_18 = arith.constant 0 : index
    %12 = vector.load %arg8[%c0_17, %c0_18] : memref<16x6xbf16, #tpu.memory_space<vmem>>, vector<16x6xbf16>
    %c0_19 = arith.constant 0 : index
    %c0_20 = arith.constant 0 : index
    %13 = vector.load %arg9[%c0_19, %c0_20] : memref<16x4xbf16, #tpu.memory_space<vmem>>, vector<16x4xbf16>
    %c0_21 = arith.constant 0 : index
    %c0_22 = arith.constant 0 : index
    %14 = vector.load %arg10[%c0_21, %c0_22] : memref<16x1xf32, #tpu.memory_space<vmem>>, vector<16x1xf32>
    %c0_23 = arith.constant 0 : index
    %c0_24 = arith.constant 0 : index
    %15 = vector.load %arg11[%c0_23, %c0_24] : memref<8x16xbf16, #tpu.memory_space<vmem>>, vector<8x16xbf16>
    %c0_25 = arith.constant 0 : index
    %c0_26 = arith.constant 0 : index
    %16 = vector.load %arg12[%c0_25, %c0_26] : memref<8x1xf32, #tpu.memory_space<vmem>>, vector<8x1xf32>
    %c0_27 = arith.constant 0 : index
    %c0_28 = arith.constant 0 : index
    %17 = vector.load %arg13[%c0_27, %c0_28] : memref<16x6xbf16, #tpu.memory_space<vmem>>, vector<16x6xbf16>
    %c0_29 = arith.constant 0 : index
    %c0_30 = arith.constant 0 : index
    %18 = vector.load %arg14[%c0_29, %c0_30] : memref<16x4xbf16, #tpu.memory_space<vmem>>, vector<16x4xbf16>
    %c0_31 = arith.constant 0 : index
    %c0_32 = arith.constant 0 : index
    %19 = vector.load %arg15[%c0_31, %c0_32] : memref<16x1xf32, #tpu.memory_space<vmem>>, vector<16x1xf32>
    %c0_33 = arith.constant 0 : index
    %c0_34 = arith.constant 0 : index
    %20 = vector.load %arg16[%c0_33, %c0_34] : memref<8x16xbf16, #tpu.memory_space<vmem>>, vector<8x16xbf16>
    %c0_35 = arith.constant 0 : index
    %c0_36 = arith.constant 0 : index
    %21 = vector.load %arg17[%c0_35, %c0_36] : memref<8x1xf32, #tpu.memory_space<vmem>>, vector<8x1xf32>
    %cst = arith.constant dense<0.000000e+00> : vector<64x128xf32>
    %22 = tpu.matmul %3, %1, %cst {dimension_numbers = #tpu.dot_dimension_numbers<[1], [0], [0], [1], [0, 0, 1, 1], [], []>} : vector<64x3xf32>, vector<3x128xf32>, vector<64x128xf32> -> vector<64x128xf32>
    %23 = arith.mulf %3, %3 : vector<64x3xf32>
    %cst_37 = arith.constant dense<0.000000e+00> : vector<64xf32>
    %24 = vector.multi_reduction <add>, %23, %cst_37 [1] : vector<64x3xf32> to vector<64xf32>
    %25 = vector.shape_cast %24 : vector<64xf32> to vector<64x1xf32>
    %26 = arith.mulf %1, %1 : vector<3x128xf32>
    %cst_38 = arith.constant dense<0.000000e+00> : vector<128xf32>
    %27 = vector.multi_reduction <add>, %26, %cst_38 [0] : vector<3x128xf32> to vector<128xf32>
    %28 = vector.shape_cast %27 : vector<128xf32> to vector<1x128xf32>
    %cst_39 = arith.constant -2.000000e+00 : f32
    %29 = vector.broadcast %cst_39 : f32 to vector<64x128xf32>
    %30 = arith.mulf %29, %22 : vector<64x128xf32>
    %31 = vector.broadcast %25 : vector<64x1xf32> to vector<64x128xf32>
    %32 = arith.addf %30, %31 : vector<64x128xf32>
    %33 = vector.broadcast %28 : vector<1x128xf32> to vector<64x128xf32>
    %34 = arith.addf %32, %33 : vector<64x128xf32>
    %cst_40 = arith.constant 0.000000e+00 : f32
    %35 = vector.broadcast %cst_40 : f32 to vector<64x128xf32>
    %cst_41 = arith.constant 0.000000e+00 : f32
    %36 = vector.broadcast %cst_41 : f32 to vector<1x128xf32>
    %cst_42 = arith.constant dense<0x7F800000> : vector<128xf32>
    %37 = vector.multi_reduction <minimumf>, %34, %cst_42 [0] : vector<64x128xf32> to vector<128xf32>
    %38 = vector.shape_cast %37 : vector<128xf32> to vector<1x128xf32>
    %39 = tpu.iota {dimensions = array<i32: 0>} : vector<64x128xi32>
    %40 = vector.broadcast %38 : vector<1x128xf32> to vector<64x128xf32>
    %41 = arith.cmpf oeq, %34, %40 : vector<64x128xf32>
    %c64_i32 = arith.constant 64 : i32
    %42 = vector.broadcast %c64_i32 : i32 to vector<64x128xi32>
    %43 = arith.select %41, %39, %42 : vector<64x128xi1>, vector<64x128xi32>
    %cst_43 = arith.constant dense<2147483647> : vector<128xi32>
    %44 = vector.multi_reduction <minsi>, %43, %cst_43 [0] : vector<64x128xi32> to vector<128xi32>
    %45 = vector.shape_cast %44 : vector<128xi32> to vector<1x128xi32>
    %46 = vector.broadcast %45 : vector<1x128xi32> to vector<64x128xi32>
    %47 = arith.cmpi eq, %39, %46 : vector<64x128xi32>
    %cst_44 = arith.constant 0.000000e+00 : f32
    %48 = vector.broadcast %cst_44 : f32 to vector<1x128xf32>
    %49 = arith.maximumf %38, %48 : vector<1x128xf32>
    %cst_45 = arith.constant 9.99999993E-9 : f32
    %50 = vector.broadcast %cst_45 : f32 to vector<1x128xf32>
    %51 = arith.addf %49, %50 : vector<1x128xf32>
    %cst_46 = arith.constant 1.000000e+00 : f32
    %52 = vector.broadcast %cst_46 : f32 to vector<1x128xf32>
    %53 = arith.divf %52, %51 : vector<1x128xf32>
    %54 = arith.extui %47 : vector<64x128xi1> to vector<64x128xi32>
    %55 = arith.sitofp %54 : vector<64x128xi32> to vector<64x128xf32>
    %56 = vector.broadcast %53 : vector<1x128xf32> to vector<64x128xf32>
    %57 = arith.mulf %55, %56 : vector<64x128xf32>
    %58 = arith.addf %35, %57 : vector<64x128xf32>
    %59 = arith.addf %36, %53 : vector<1x128xf32>
    %cst_47 = arith.constant 0x7F800000 : f32
    %60 = vector.broadcast %cst_47 : f32 to vector<64x128xf32>
    %61 = arith.select %47, %60, %34 : vector<64x128xi1>, vector<64x128xf32>
    %cst_48 = arith.constant dense<0x7F800000> : vector<128xf32>
    %62 = vector.multi_reduction <minimumf>, %61, %cst_48 [0] : vector<64x128xf32> to vector<128xf32>
    %63 = vector.shape_cast %62 : vector<128xf32> to vector<1x128xf32>
    %64 = tpu.iota {dimensions = array<i32: 0>} : vector<64x128xi32>
    %65 = vector.broadcast %63 : vector<1x128xf32> to vector<64x128xf32>
    %66 = arith.cmpf oeq, %61, %65 : vector<64x128xf32>
    %c64_i32_49 = arith.constant 64 : i32
    %67 = vector.broadcast %c64_i32_49 : i32 to vector<64x128xi32>
    %68 = arith.select %66, %64, %67 : vector<64x128xi1>, vector<64x128xi32>
    %cst_50 = arith.constant dense<2147483647> : vector<128xi32>
    %69 = vector.multi_reduction <minsi>, %68, %cst_50 [0] : vector<64x128xi32> to vector<128xi32>
    %70 = vector.shape_cast %69 : vector<128xi32> to vector<1x128xi32>
    %71 = vector.broadcast %70 : vector<1x128xi32> to vector<64x128xi32>
    %72 = arith.cmpi eq, %64, %71 : vector<64x128xi32>
    %cst_51 = arith.constant 0.000000e+00 : f32
    %73 = vector.broadcast %cst_51 : f32 to vector<1x128xf32>
    %74 = arith.maximumf %63, %73 : vector<1x128xf32>
    %cst_52 = arith.constant 9.99999993E-9 : f32
    %75 = vector.broadcast %cst_52 : f32 to vector<1x128xf32>
    %76 = arith.addf %74, %75 : vector<1x128xf32>
    %cst_53 = arith.constant 1.000000e+00 : f32
    %77 = vector.broadcast %cst_53 : f32 to vector<1x128xf32>
    %78 = arith.divf %77, %76 : vector<1x128xf32>
    %79 = arith.extui %72 : vector<64x128xi1> to vector<64x128xi32>
    %80 = arith.sitofp %79 : vector<64x128xi32> to vector<64x128xf32>
    %81 = vector.broadcast %78 : vector<1x128xf32> to vector<64x128xf32>
    %82 = arith.mulf %80, %81 : vector<64x128xf32>
    %83 = arith.addf %58, %82 : vector<64x128xf32>
    %84 = arith.addf %59, %78 : vector<1x128xf32>
    %cst_54 = arith.constant 0x7F800000 : f32
    %85 = vector.broadcast %cst_54 : f32 to vector<64x128xf32>
    %86 = arith.select %72, %85, %61 : vector<64x128xi1>, vector<64x128xf32>
    %cst_55 = arith.constant dense<0x7F800000> : vector<128xf32>
    %87 = vector.multi_reduction <minimumf>, %86, %cst_55 [0] : vector<64x128xf32> to vector<128xf32>
    %88 = vector.shape_cast %87 : vector<128xf32> to vector<1x128xf32>
    %89 = tpu.iota {dimensions = array<i32: 0>} : vector<64x128xi32>
    %90 = vector.broadcast %88 : vector<1x128xf32> to vector<64x128xf32>
    %91 = arith.cmpf oeq, %86, %90 : vector<64x128xf32>
    %c64_i32_56 = arith.constant 64 : i32
    %92 = vector.broadcast %c64_i32_56 : i32 to vector<64x128xi32>
    %93 = arith.select %91, %89, %92 : vector<64x128xi1>, vector<64x128xi32>
    %cst_57 = arith.constant dense<2147483647> : vector<128xi32>
    %94 = vector.multi_reduction <minsi>, %93, %cst_57 [0] : vector<64x128xi32> to vector<128xi32>
    %95 = vector.shape_cast %94 : vector<128xi32> to vector<1x128xi32>
    %96 = vector.broadcast %95 : vector<1x128xi32> to vector<64x128xi32>
    %97 = arith.cmpi eq, %89, %96 : vector<64x128xi32>
    %cst_58 = arith.constant 0.000000e+00 : f32
    %98 = vector.broadcast %cst_58 : f32 to vector<1x128xf32>
    %99 = arith.maximumf %88, %98 : vector<1x128xf32>
    %cst_59 = arith.constant 9.99999993E-9 : f32
    %100 = vector.broadcast %cst_59 : f32 to vector<1x128xf32>
    %101 = arith.addf %99, %100 : vector<1x128xf32>
    %cst_60 = arith.constant 1.000000e+00 : f32
    %102 = vector.broadcast %cst_60 : f32 to vector<1x128xf32>
    %103 = arith.divf %102, %101 : vector<1x128xf32>
    %104 = arith.extui %97 : vector<64x128xi1> to vector<64x128xi32>
    %105 = arith.sitofp %104 : vector<64x128xi32> to vector<64x128xf32>
    %106 = vector.broadcast %103 : vector<1x128xf32> to vector<64x128xf32>
    %107 = arith.mulf %105, %106 : vector<64x128xf32>
    %108 = arith.addf %83, %107 : vector<64x128xf32>
    %109 = arith.addf %84, %103 : vector<1x128xf32>
    %110 = arith.truncf %108 : vector<64x128xf32> to vector<64x128xbf16>
    %111 = tpu.reciprocal %109 {approx = true} : vector<1x128xf32> -> vector<1x128xf32>
    %cst_61 = arith.constant dense<0.000000e+00> : vector<6x128xf32>
    %112 = tpu.matmul %5, %110, %cst_61 {dimension_numbers = #tpu.dot_dimension_numbers<[1], [0], [0], [1], [0, 0, 1, 1], [], []>} : vector<6x64xbf16>, vector<64x128xbf16>, vector<6x128xf32> -> vector<6x128xf32>
    %113 = vector.broadcast %111 : vector<1x128xf32> to vector<6x128xf32>
    %114 = arith.mulf %112, %113 : vector<6x128xf32>
    %115 = arith.truncf %114 : vector<6x128xf32> to vector<6x128xbf16>
    %cst_62 = arith.constant dense<0.000000e+00> : vector<16x128xf32>
    %116 = tpu.matmul %12, %115, %cst_62 {dimension_numbers = #tpu.dot_dimension_numbers<[1], [0], [0], [1], [0, 0, 1, 1], [], []>} : vector<16x6xbf16>, vector<6x128xbf16>, vector<16x128xf32> -> vector<16x128xf32>
    %cst_63 = arith.constant dense<0.000000e+00> : vector<16x128xf32>
    %117 = tpu.matmul %13, %9, %cst_63 {dimension_numbers = #tpu.dot_dimension_numbers<[1], [0], [0], [1], [0, 0, 1, 1], [], []>} : vector<16x4xbf16>, vector<4x128xbf16>, vector<16x128xf32> -> vector<16x128xf32>
    %118 = arith.addf %116, %117 : vector<16x128xf32>
    %119 = vector.broadcast %14 : vector<16x1xf32> to vector<16x128xf32>
    %120 = arith.addf %118, %119 : vector<16x128xf32>
    %cst_64 = arith.constant 0.000000e+00 : f32
    %121 = vector.broadcast %cst_64 : f32 to vector<16x128xf32>
    %122 = arith.maximumf %120, %121 : vector<16x128xf32>
    %123 = arith.truncf %122 : vector<16x128xf32> to vector<16x128xbf16>
    %cst_65 = arith.constant dense<0.000000e+00> : vector<8x128xf32>
    %124 = tpu.matmul %15, %123, %cst_65 {dimension_numbers = #tpu.dot_dimension_numbers<[1], [0], [0], [1], [0, 0, 1, 1], [], []>} : vector<8x16xbf16>, vector<16x128xbf16>, vector<8x128xf32> -> vector<8x128xf32>
    %125 = vector.broadcast %16 : vector<8x1xf32> to vector<8x128xf32>
    %126 = arith.addf %124, %125 : vector<8x128xf32>
    %cst_66 = arith.constant 0.000000e+00 : f32
    %127 = vector.broadcast %cst_66 : f32 to vector<8x128xf32>
    %128 = arith.maximumf %126, %127 : vector<8x128xf32>
    %c0_67 = arith.constant 0 : index
    %c0_68 = arith.constant 0 : index
    %c0_69 = arith.constant 0 : index
    %129 = vector.load %arg18[%c0_67, %c0_68, %c0_69] : memref<1x8x128xf32, #tpu.memory_space<vmem>>, vector<1x8x128xf32>
    %130 = vector.shape_cast %129 : vector<1x8x128xf32> to vector<8x128xf32>
    %131 = vector.shape_cast %128 : vector<8x128xf32> to vector<1x8x128xf32>
    tpu.vector_store %arg18[%c0_67, %c0_68, %c0_69], %131 {strides = array<i32>} : memref<1x8x128xf32, #tpu.memory_space<vmem>>, vector<1x8x128xf32>,
    %cst_70 = arith.constant dense<0.000000e+00> : vector<6x128xf32>
    %132 = tpu.matmul %7, %110, %cst_70 {dimension_numbers = #tpu.dot_dimension_numbers<[1], [0], [0], [1], [0, 0, 1, 1], [], []>} : vector<6x64xbf16>, vector<64x128xbf16>, vector<6x128xf32> -> vector<6x128xf32>
    %133 = vector.broadcast %111 : vector<1x128xf32> to vector<6x128xf32>
    %134 = arith.mulf %132, %133 : vector<6x128xf32>
    %135 = arith.truncf %134 : vector<6x128xf32> to vector<6x128xbf16>
    %cst_71 = arith.constant dense<0.000000e+00> : vector<16x128xf32>
    %136 = tpu.matmul %17, %135, %cst_71 {dimension_numbers = #tpu.dot_dimension_numbers<[1], [0], [0], [1], [0, 0, 1, 1], [], []>} : vector<16x6xbf16>, vector<6x128xbf16>, vector<16x128xf32> -> vector<16x128xf32>
    %cst_72 = arith.constant dense<0.000000e+00> : vector<16x128xf32>
    %137 = tpu.matmul %18, %11, %cst_72 {dimension_numbers = #tpu.dot_dimension_numbers<[1], [0], [0], [1], [0, 0, 1, 1], [], []>} : vector<16x4xbf16>, vector<4x128xbf16>, vector<16x128xf32> -> vector<16x128xf32>
    %138 = arith.addf %136, %137 : vector<16x128xf32>
    %139 = vector.broadcast %19 : vector<16x1xf32> to vector<16x128xf32>
    %140 = arith.addf %138, %139 : vector<16x128xf32>
    %cst_73 = arith.constant 0.000000e+00 : f32
    %141 = vector.broadcast %cst_73 : f32 to vector<16x128xf32>
    %142 = arith.maximumf %140, %141 : vector<16x128xf32>
    %143 = arith.truncf %142 : vector<16x128xf32> to vector<16x128xbf16>
    %cst_74 = arith.constant dense<0.000000e+00> : vector<8x128xf32>
    %144 = tpu.matmul %20, %143, %cst_74 {dimension_numbers = #tpu.dot_dimension_numbers<[1], [0], [0], [1], [0, 0, 1, 1], [], []>} : vector<8x16xbf16>, vector<16x128xbf16>, vector<8x128xf32> -> vector<8x128xf32>
    %145 = vector.broadcast %21 : vector<8x1xf32> to vector<8x128xf32>
    %146 = arith.addf %144, %145 : vector<8x128xf32>
    %cst_75 = arith.constant 0.000000e+00 : f32
    %147 = vector.broadcast %cst_75 : f32 to vector<8x128xf32>
    %148 = arith.maximumf %146, %147 : vector<8x128xf32>
    %c0_76 = arith.constant 0 : index
    %c0_77 = arith.constant 0 : index
    %c0_78 = arith.constant 0 : index
    %149 = vector.load %arg19[%c0_76, %c0_77, %c0_78] : memref<1x8x128xf32, #tpu.memory_space<vmem>>, vector<1x8x128xf32>
    %150 = vector.shape_cast %149 : vector<1x8x128xf32> to vector<8x128xf32>
    %151 = vector.shape_cast %148 : vector<8x128xf32> to vector<1x8x128xf32>
    tpu.vector_store %arg19[%c0_76, %c0_77, %c0_78], %151 {strides = array<i32>} : memref<1x8x128xf32, #tpu.memory_space<vmem>>, vector<1x8x128xf32>,
    return
  }
  func.func @transform_0(%arg0: i32, %arg1: i32) -> (i32, i32, i32) {
    %c0_i32 = arith.constant 0 : i32
    %c0_i32_0 = arith.constant 0 : i32
    return %arg0, %c0_i32, %arg1 : i32, i32, i32
  }
  func.func @transform_1(%arg0: i32, %arg1: i32) -> (i32, i32, i32) {
    %c0_i32 = arith.constant 0 : i32
    %c0_i32_0 = arith.constant 0 : i32
    %c0_i32_1 = arith.constant 0 : i32
    return %arg0, %c0_i32, %c0_i32_0 : i32, i32, i32
  }
  func.func @transform_2(%arg0: i32, %arg1: i32) -> (i32, i32, i32) {
    %c0_i32 = arith.constant 0 : i32
    %c0_i32_0 = arith.constant 0 : i32
    %c0_i32_1 = arith.constant 0 : i32
    return %arg0, %c0_i32, %c0_i32_0 : i32, i32, i32
  }
  func.func @transform_3(%arg0: i32, %arg1: i32) -> (i32, i32, i32) {
    %c0_i32 = arith.constant 0 : i32
    %c0_i32_0 = arith.constant 0 : i32
    %c0_i32_1 = arith.constant 0 : i32
    return %arg0, %c0_i32, %c0_i32_0 : i32, i32, i32
  }
  func.func @transform_4(%arg0: i32, %arg1: i32) -> (i32, i32, i32) {
    %c0_i32 = arith.constant 0 : i32
    %c0_i32_0 = arith.constant 0 : i32
    return %arg0, %c0_i32, %arg1 : i32, i32, i32
  }
  func.func @transform_5(%arg0: i32, %arg1: i32) -> (i32, i32, i32) {
    %c0_i32 = arith.constant 0 : i32
    %c0_i32_0 = arith.constant 0 : i32
    return %arg0, %c0_i32, %arg1 : i32, i32, i32
  }
  func.func @transform_6(%arg0: i32, %arg1: i32) -> (i32, i32) {
    %c0_i32 = arith.constant 0 : i32
    %c0_i32_0 = arith.constant 0 : i32
    %c0_i32_1 = arith.constant 0 : i32
    return %c0_i32, %c0_i32_0 : i32, i32
  }
  func.func @transform_7(%arg0: i32, %arg1: i32) -> (i32, i32) {
    %c0_i32 = arith.constant 0 : i32
    %c0_i32_0 = arith.constant 0 : i32
    %c0_i32_1 = arith.constant 0 : i32
    return %c0_i32, %c0_i32_0 : i32, i32
  }
  func.func @transform_8(%arg0: i32, %arg1: i32) -> (i32, i32) {
    %c0_i32 = arith.constant 0 : i32
    %c0_i32_0 = arith.constant 0 : i32
    %c0_i32_1 = arith.constant 0 : i32
    return %c0_i32, %c0_i32_0 : i32, i32
  }
  func.func @transform_9(%arg0: i32, %arg1: i32) -> (i32, i32) {
    %c0_i32 = arith.constant 0 : i32
    %c0_i32_0 = arith.constant 0 : i32
    %c0_i32_1 = arith.constant 0 : i32
    return %c0_i32, %c0_i32_0 : i32, i32
  }
  func.func @transform_10(%arg0: i32, %arg1: i32) -> (i32, i32) {
    %c0_i32 = arith.constant 0 : i32
    %c0_i32_0 = arith.constant 0 : i32
    %c0_i32_1 = arith.constant 0 : i32
    return %c0_i32, %c0_i32_0 : i32, i32
  }
  func.func @transform_11(%arg0: i32, %arg1: i32) -> (i32, i32) {
    %c0_i32 = arith.constant 0 : i32
    %c0_i32_0 = arith.constant 0 : i32
    %c0_i32_1 = arith.constant 0 : i32
    return %c0_i32, %c0_i32_0 : i32, i32
  }
  func.func @transform_12(%arg0: i32, %arg1: i32) -> (i32, i32) {
    %c0_i32 = arith.constant 0 : i32
    %c0_i32_0 = arith.constant 0 : i32
    %c0_i32_1 = arith.constant 0 : i32
    return %c0_i32, %c0_i32_0 : i32, i32
  }
  func.func @transform_13(%arg0: i32, %arg1: i32) -> (i32, i32) {
    %c0_i32 = arith.constant 0 : i32
    %c0_i32_0 = arith.constant 0 : i32
    %c0_i32_1 = arith.constant 0 : i32
    return %c0_i32, %c0_i32_0 : i32, i32
  }
  func.func @transform_14(%arg0: i32, %arg1: i32) -> (i32, i32) {
    %c0_i32 = arith.constant 0 : i32
    %c0_i32_0 = arith.constant 0 : i32
    %c0_i32_1 = arith.constant 0 : i32
    return %c0_i32, %c0_i32_0 : i32, i32
  }
  func.func @transform_15(%arg0: i32, %arg1: i32) -> (i32, i32) {
    %c0_i32 = arith.constant 0 : i32
    %c0_i32_0 = arith.constant 0 : i32
    %c0_i32_1 = arith.constant 0 : i32
    return %c0_i32, %c0_i32_0 : i32, i32
  }
  func.func @transform_16(%arg0: i32, %arg1: i32) -> (i32, i32, i32) {
    %c0_i32 = arith.constant 0 : i32
    %c0_i32_0 = arith.constant 0 : i32
    return %arg0, %c0_i32, %arg1 : i32, i32, i32
  }
  func.func @transform_17(%arg0: i32, %arg1: i32) -> (i32, i32, i32) {
    %c0_i32 = arith.constant 0 : i32
    %c0_i32_0 = arith.constant 0 : i32
    return %arg0, %c0_i32, %arg1 : i32, i32, i32
  }
}

</mosaic_0001>

<llo_original>
// kernel: tpu_custom_call.1
$region0: #{tpu_custom_call.1}
  #allocation0 [shape = 'u32[]', space=smem, size = 0x4, offset = 0x4, fixed_abs, tag = 'smem constant byte address 0x4 - core index']
  #allocation1 [shape = 'u32[144,128]{1,0:T(1,128)}', space=vmem, size = 0x12000, scoped, tag = 'internal scratch']
  %s0 = inlined_call_operand.vmem [shape: f32[2,3,256], index: 0, kind: input, shape index: {}]
  %s1 = inlined_call_operand.vmem [shape: f32[2,64,3], index: 1, kind: input, shape index: {}]
  %s2 = inlined_call_operand.vmem [shape: bf16[2,6,64], index: 2, kind: input, shape index: {}]
  %s3 = inlined_call_operand.vmem [shape: bf16[2,6,64], index: 3, kind: input, shape index: {}]
  %s4 = inlined_call_operand.vmem [shape: bf16[2,4,256], index: 4, kind: input, shape index: {}]
  %s5 = inlined_call_operand.vmem [shape: bf16[2,4,256], index: 5, kind: input, shape index: {}]
  %s6 = inlined_call_operand.vmem [shape: bf16[16,6], index: 6, kind: input, shape index: {}]
  %s7 = inlined_call_operand.vmem [shape: bf16[16,4], index: 7, kind: input, shape index: {}]
  %s8 = inlined_call_operand.vmem [shape: f32[16,1], index: 8, kind: input, shape index: {}]
  %s9 = inlined_call_operand.vmem [shape: bf16[8,16], index: 9, kind: input, shape index: {}]
  %s10 = inlined_call_operand.vmem [shape: f32[8,1], index: 10, kind: input, shape index: {}]
  %s11 = inlined_call_operand.vmem [shape: bf16[16,6], index: 11, kind: input, shape index: {}]
  %s12 = inlined_call_operand.vmem [shape: bf16[16,4], index: 12, kind: input, shape index: {}]
  %s13 = inlined_call_operand.vmem [shape: f32[16,1], index: 13, kind: input, shape index: {}]
  %s14 = inlined_call_operand.vmem [shape: bf16[8,16], index: 14, kind: input, shape index: {}]
  %s15 = inlined_call_operand.vmem [shape: f32[8,1], index: 15, kind: input, shape index: {}]
  %s16 = inlined_call_operand.hbm [shape: f32[2,8,256], index: 16, kind: output, shape index: {0}]
  %s17 = inlined_call_operand.hbm [shape: f32[2,8,256], index: 17, kind: output, shape index: {1}]
  %18 = xla_tuple %s16, %s17
  %s19 = sld [smem:[#allocation0]]
  $region105: #{tpu_custom_call.1} parent=0
    _
  %s21 = ssub.s32 1, %s19
  %s22 = scalar_select 0, %s21, %s19
  $region1: #{tpu_custom_call.1} parent=0
    #allocation2 [shape = 'u8[8192]{0}', space=vmem, size = 0x2000, scoped, tag = 'output window, operand 0']
    #allocation3 [shape = 's32[2]{0}', space=sflag, size = 0x8, scoped, tag = 'scoped memory for tpu_custom_call.1']
    #allocation4 [shape = 'u8[8192]{0}', space=vmem, size = 0x2000, scoped, tag = 'output window, operand 1']
    #allocation5 [shape = 's32[2]{0}', space=sflag, size = 0x8, scoped, tag = 'scoped memory for tpu_custom_call.1']
    %23 = vsyncpa [#allocation3], 0
    %s24 = scalar_lea.sflag [#allocation3], 1
    %25 = vsyncpa %s24, 0
    %26 = vsyncpa [#allocation5], 0
    %s27 = scalar_lea.sflag [#allocation5], 1
    %28 = vsyncpa %s27, 0
    loop: start=0, step=1, limit=6
    $region2: #{tpu_custom_call.1} parent=1 // loop_pre_header
      _
    $region3: #{tpu_custom_call.1} parent=1 // loop_header
      %s30 = sphi 0, %s34
      %p31 = scmp.ge.s32.totalorder %s30, 6
      %s37 = sphi 0, %s49
      %s38 = sphi 0, %s45
      %s39 = sphi 0, %s37
      %s40 = sphi 0, %s38
      %s41 = sphi 0, %s39
      %s42 = sphi 0, %s40
      %s54 = sphi 0, %s56
      %s57 = sphi 0, %s54
      %s58 = sphi 0, %s57
      %s74 = sphi 0, %s58
      %s80 = sphi 0, %s82
      %s83 = sphi 0, %s80
      %s84 = sphi 0, %s83
      %s100 = sphi 0, %s84
      %s106 = sphi 0, %s108
      %s109 = sphi 0, %s106
      %s110 = sphi 0, %s109
      %s126 = sphi 0, %s110
      %s132 = sphi 0, %s134
      %s135 = sphi 0, %s132
      %s136 = sphi 0, %s135
      %s152 = sphi 0, %s136
      %s160 = sphi 0, %s162
      %s163 = sphi 0, %s160
      %s164 = sphi 0, %s163
      %s180 = sphi 0, %s164
      %s188 = sphi 0, %s190
      %s191 = sphi 0, %s188
      %s192 = sphi 0, %s191
      %s208 = sphi 0, %s192
      %s212 = sphi 0, %s212
      %s214 = sphi 0, %s212
      %s215 = sphi 0, %s214
      %s229 = sphi 0, %s215
      %s233 = sphi 0, %s233
      %s235 = sphi 0, %s233
      %s236 = sphi 0, %s235
      %s250 = sphi 0, %s236
      %s254 = sphi 0, %s254
      %s256 = sphi 0, %s254
      %s257 = sphi 0, %s256
      %s271 = sphi 0, %s257
      %s275 = sphi 0, %s275
      %s277 = sphi 0, %s275
      %s278 = sphi 0, %s277
      %s292 = sphi 0, %s278
      %s296 = sphi 0, %s296
      %s298 = sphi 0, %s296
      %s299 = sphi 0, %s298
      %s313 = sphi 0, %s299
      %s317 = sphi 0, %s317
      %s319 = sphi 0, %s317
      %s320 = sphi 0, %s319
      %s334 = sphi 0, %s320
      %s338 = sphi 0, %s338
      %s340 = sphi 0, %s338
      %s341 = sphi 0, %s340
      %s355 = sphi 0, %s341
      %s359 = sphi 0, %s359
      %s361 = sphi 0, %s359
      %s362 = sphi 0, %s361
      %s376 = sphi 0, %s362
      %s380 = sphi 0, %s380
      %s382 = sphi 0, %s380
      %s383 = sphi 0, %s382
      %s397 = sphi 0, %s383
      %s401 = sphi 0, %s401
      %s403 = sphi 0, %s401
      %s404 = sphi 0, %s403
      %s418 = sphi 0, %s404
      %s426 = sphi 0, %s428
      %s429 = sphi 0, %s426
      %s430 = sphi 0, %s429
      %s446 = sphi 0, %s430
      %s454 = sphi 0, %s456
      %s457 = sphi 0, %s454
      %s458 = sphi 0, %s457
      %s474 = sphi 0, %s458
    $region4: #{tpu_custom_call.1} parent=1 // loop_header_branch
      %33 = sbr.rel (%p31) target = $region8
    $region5: #{tpu_custom_call.1} parent=1 // loop_body
      %s35 = ssub.s32 %s30, 1
      %s36 = ssub.s32 %s30, 2
      %s43 = sadd.s32 1, %s38
      %p44 = scmp.ge.s32.totalorder %s43, 2
      %s45 = scalar_select %p44, 0, %s43
      %s46 = sadd.s32 1, %s37
      %s47 = scalar_select %p44, %s46, %s37
      %p48 = scmp.ge.s32.totalorder %s47, 2
      %s49 = scalar_select %p48, 0, %s47
      %s50 = ssub.s32 %s37, %s49
      %s51 = ssub.s32 %s38, %s45
      %s52 = sor.u32 %s50, %s51
      %p53 = scmp.eq.s32.totalorder %s52, 0
      %s55 = sadd.s32 %s54, 1
      %s56 = scalar_select %p53, %s54, %s55
      %p59 = pneg %p53
      %p60 = scmp.eq.s32.totalorder %s30, 3
      %p61 = por %p59, %p60
      %p62 = scmp.ne.s32.totalorder %s54, %s57
      %p63 = scmp.eq.s32.totalorder %s30, 0
      %p64 = por %p62, %p63
      %p65 = scmp.ne.s32.totalorder %s54, %s57
      %p66 = scmp.eq.s32.totalorder %s35, 3
      %p67 = por %p65, %p66
      %p68 = scmp.ne.s32.totalorder %s57, %s58
      %p69 = scmp.eq.s32.totalorder %s35, 0
      %p70 = por %p68, %p69
      %p71 = scmp.ne.s32.totalorder %s57, %s58
      %p72 = scmp.eq.s32.totalorder %s36, 3
      %p73 = por %p71, %p72
      %p75 = scmp.ne.s32.totalorder %s58, %s74
      %p76 = scmp.eq.s32.totalorder %s36, 0
      %p77 = por %p75, %p76
      %s78 = ssub.s32 %s37, %s49
      %p79 = scmp.eq.s32.totalorder %s78, 0
      %s81 = sadd.s32 %s80, 1
      %s82 = scalar_select %p79, %s80, %s81
      %p85 = pneg %p79
      %p86 = scmp.eq.s32.totalorder %s30, 3
      %p87 = por %p85, %p86
      %p88 = scmp.ne.s32.totalorder %s80, %s83
      %p89 = scmp.eq.s32.totalorder %s30, 0
      %p90 = por %p88, %p89
      %p91 = scmp.ne.s32.totalorder %s80, %s83
      %p92 = scmp.eq.s32.totalorder %s35, 3
      %p93 = por %p91, %p92
      %p94 = scmp.ne.s32.totalorder %s83, %s84
      %p95 = scmp.eq.s32.totalorder %s35, 0
      %p96 = por %p94, %p95
      %p97 = scmp.ne.s32.totalorder %s83, %s84
      %p98 = scmp.eq.s32.totalorder %s36, 3
      %p99 = por %p97, %p98
      %p101 = scmp.ne.s32.totalorder %s84, %s100
      %p102 = scmp.eq.s32.totalorder %s36, 0
      %p103 = por %p101, %p102
      %s104 = ssub.s32 %s37, %s49
      %p105 = scmp.eq.s32.totalorder %s104, 0
      %s107 = sadd.s32 %s106, 1
      %s108 = scalar_select %p105, %s106, %s107
      %p111 = pneg %p105
      %p112 = scmp.eq.s32.totalorder %s30, 3
      %p113 = por %p111, %p112
      %p114 = scmp.ne.s32.totalorder %s106, %s109
      %p115 = scmp.eq.s32.totalorder %s30, 0
      %p116 = por %p114, %p115
      %p117 = scmp.ne.s32.totalorder %s106, %s109
      %p118 = scmp.eq.s32.totalorder %s35, 3
      %p119 = por %p117, %p118
      %p120 = scmp.ne.s32.totalorder %s109, %s110
      %p121 = scmp.eq.s32.totalorder %s35, 0
      %p122 = por %p120, %p121
      %p123 = scmp.ne.s32.totalorder %s109, %s110
      %p124 = scmp.eq.s32.totalorder %s36, 3
      %p125 = por %p123, %p124
      %p127 = scmp.ne.s32.totalorder %s110, %s126
      %p128 = scmp.eq.s32.totalorder %s36, 0
      %p129 = por %p127, %p128
      %s130 = ssub.s32 %s37, %s49
      %p131 = scmp.eq.s32.totalorder %s130, 0
      %s133 = sadd.s32 %s132, 1
      %s134 = scalar_select %p131, %s132, %s133
      %p137 = pneg %p131
      %p138 = scmp.eq.s32.totalorder %s30, 3
      %p139 = por %p137, %p138
      %p140 = scmp.ne.s32.totalorder %s132, %s135
      %p141 = scmp.eq.s32.totalorder %s30, 0
      %p142 = por %p140, %p141
      %p143 = scmp.ne.s32.totalorder %s132, %s135
      %p144 = scmp.eq.s32.totalorder %s35, 3
      %p145 = por %p143, %p144
      %p146 = scmp.ne.s32.totalorder %s135, %s136
      %p147 = scmp.eq.s32.totalorder %s35, 0
      %p148 = por %p146, %p147
      %p149 = scmp.ne.s32.totalorder %s135, %s136
      %p150 = scmp.eq.s32.totalorder %s36, 3
      %p151 = por %p149, %p150
      %p153 = scmp.ne.s32.totalorder %s136, %s152
      %p154 = scmp.eq.s32.totalorder %s36, 0
      %p155 = por %p153, %p154
      %s156 = ssub.s32 %s37, %s49
      %s157 = ssub.s32 %s38, %s45
      %s158 = sor.u32 %s156, %s157
      %p159 = scmp.eq.s32.totalorder %s158, 0
      %s161 = sadd.s32 %s160, 1
      %s162 = scalar_select %p159, %s160, %s161
      %p165 = pneg %p159
      %p166 = scmp.eq.s32.totalorder %s30, 3
      %p167 = por %p165, %p166
      %p168 = scmp.ne.s32.totalorder %s160, %s163
      %p169 = scmp.eq.s32.totalorder %s30, 0
      %p170 = por %p168, %p169
      %p171 = scmp.ne.s32.totalorder %s160, %s163
      %p172 = scmp.eq.s32.totalorder %s35, 3
      %p173 = por %p171, %p172
      %p174 = scmp.ne.s32.totalorder %s163, %s164
      %p175 = scmp.eq.s32.totalorder %s35, 0
      %p176 = por %p174, %p175
      %p177 = scmp.ne.s32.totalorder %s163, %s164
      %p178 = scmp.eq.s32.totalorder %s36, 3
      %p179 = por %p177, %p178
      %p181 = scmp.ne.s32.totalorder %s164, %s180
      %p182 = scmp.eq.s32.totalorder %s36, 0
      %p183 = por %p181, %p182
      %s184 = ssub.s32 %s37, %s49
      %s185 = ssub.s32 %s38, %s45
      %s186 = sor.u32 %s184, %s185
      %p187 = scmp.eq.s32.totalorder %s186, 0
      %s189 = sadd.s32 %s188, 1
      %s190 = scalar_select %p187, %s188, %s189
      %p193 = pneg %p187
      %p194 = scmp.eq.s32.totalorder %s30, 3
      %p195 = por %p193, %p194
      %p196 = scmp.ne.s32.totalorder %s188, %s191
      %p197 = scmp.eq.s32.totalorder %s30, 0
      %p198 = por %p196, %p197
      %p199 = scmp.ne.s32.totalorder %s188, %s191
      %p200 = scmp.eq.s32.totalorder %s35, 3
      %p201 = por %p199, %p200
      %p202 = scmp.ne.s32.totalorder %s191, %s192
      %p203 = scmp.eq.s32.totalorder %s35, 0
      %p204 = por %p202, %p203
      %p205 = scmp.ne.s32.totalorder %s191, %s192
      %p206 = scmp.eq.s32.totalorder %s36, 3
      %p207 = por %p205, %p206
      %p209 = scmp.ne.s32.totalorder %s192, %s208
      %p210 = scmp.eq.s32.totalorder %s36, 0
      %p211 = por %p209, %p210
      %s213 = sadd.s32 %s212, 1
      %p216 = scmp.eq.s32.totalorder %s30, 3
      %p217 = scmp.ne.s32.totalorder %s212, %s214
      %p218 = scmp.eq.s32.totalorder %s30, 0
      %p219 = por %p217, %p218
      %p220 = scmp.ne.s32.totalorder %s212, %s214
      %p221 = scmp.eq.s32.totalorder %s35, 3
      %p222 = por %p220, %p221
      %p223 = scmp.ne.s32.totalorder %s214, %s215
      %p224 = scmp.eq.s32.totalorder %s35, 0
      %p225 = por %p223, %p224
      %p226 = scmp.ne.s32.totalorder %s214, %s215
      %p227 = scmp.eq.s32.totalorder %s36, 3
      %p228 = por %p226, %p227
      %p230 = scmp.ne.s32.totalorder %s215, %s229
      %p231 = scmp.eq.s32.totalorder %s36, 0
      %p232 = por %p230, %p231
      %s234 = sadd.s32 %s233, 1
      %p237 = scmp.eq.s32.totalorder %s30, 3
      %p238 = scmp.ne.s32.totalorder %s233, %s235
      %p239 = scmp.eq.s32.totalorder %s30, 0
      %p240 = por %p238, %p239
      %p241 = scmp.ne.s32.totalorder %s233, %s235
      %p242 = scmp.eq.s32.totalorder %s35, 3
      %p243 = por %p241, %p242
      %p244 = scmp.ne.s32.totalorder %s235, %s236
      %p245 = scmp.eq.s32.totalorder %s35, 0
      %p246 = por %p244, %p245
      %p247 = scmp.ne.s32.totalorder %s235, %s236
      %p248 = scmp.eq.s32.totalorder %s36, 3
      %p249 = por %p247, %p248
      %p251 = scmp.ne.s32.totalorder %s236, %s250
      %p252 = scmp.eq.s32.totalorder %s36, 0
      %p253 = por %p251, %p252
      %s255 = sadd.s32 %s254, 1
      %p258 = scmp.eq.s32.totalorder %s30, 3
      %p259 = scmp.ne.s32.totalorder %s254, %s256
      %p260 = scmp.eq.s32.totalorder %s30, 0
      %p261 = por %p259, %p260
      %p262 = scmp.ne.s32.totalorder %s254, %s256
      %p263 = scmp.eq.s32.totalorder %s35, 3
      %p264 = por %p262, %p263
      %p265 = scmp.ne.s32.totalorder %s256, %s257
      %p266 = scmp.eq.s32.totalorder %s35, 0
      %p267 = por %p265, %p266
      %p268 = scmp.ne.s32.totalorder %s256, %s257
      %p269 = scmp.eq.s32.totalorder %s36, 3
      %p270 = por %p268, %p269
      %p272 = scmp.ne.s32.totalorder %s257, %s271
      %p273 = scmp.eq.s32.totalorder %s36, 0
      %p274 = por %p272, %p273
      %s276 = sadd.s32 %s275, 1
      %p279 = scmp.eq.s32.totalorder %s30, 3
      %p280 = scmp.ne.s32.totalorder %s275, %s277
      %p281 = scmp.eq.s32.totalorder %s30, 0
      %p282 = por %p280, %p281
      %p283 = scmp.ne.s32.totalorder %s275, %s277
      %p284 = scmp.eq.s32.totalorder %s35, 3
      %p285 = por %p283, %p284
      %p286 = scmp.ne.s32.totalorder %s277, %s278
      %p287 = scmp.eq.s32.totalorder %s35, 0
      %p288 = por %p286, %p287
      %p289 = scmp.ne.s32.totalorder %s277, %s278
      %p290 = scmp.eq.s32.totalorder %s36, 3
      %p291 = por %p289, %p290
      %p293 = scmp.ne.s32.totalorder %s278, %s292
      %p294 = scmp.eq.s32.totalorder %s36, 0
      %p295 = por %p293, %p294
      %s297 = sadd.s32 %s296, 1
      %p300 = scmp.eq.s32.totalorder %s30, 3
      %p301 = scmp.ne.s32.totalorder %s296, %s298
      %p302 = scmp.eq.s32.totalorder %s30, 0
      %p303 = por %p301, %p302
      %p304 = scmp.ne.s32.totalorder %s296, %s298
      %p305 = scmp.eq.s32.totalorder %s35, 3
      %p306 = por %p304, %p305
      %p307 = scmp.ne.s32.totalorder %s298, %s299
      %p308 = scmp.eq.s32.totalorder %s35, 0
      %p309 = por %p307, %p308
      %p310 = scmp.ne.s32.totalorder %s298, %s299
      %p311 = scmp.eq.s32.totalorder %s36, 3
      %p312 = por %p310, %p311
      %p314 = scmp.ne.s32.totalorder %s299, %s313
      %p315 = scmp.eq.s32.totalorder %s36, 0
      %p316 = por %p314, %p315
      %s318 = sadd.s32 %s317, 1
      %p321 = scmp.eq.s32.totalorder %s30, 3
      %p322 = scmp.ne.s32.totalorder %s317, %s319
      %p323 = scmp.eq.s32.totalorder %s30, 0
      %p324 = por %p322, %p323
      %p325 = scmp.ne.s32.totalorder %s317, %s319
      %p326 = scmp.eq.s32.totalorder %s35, 3
      %p327 = por %p325, %p326
      %p328 = scmp.ne.s32.totalorder %s319, %s320
      %p329 = scmp.eq.s32.totalorder %s35, 0
      %p330 = por %p328, %p329
      %p331 = scmp.ne.s32.totalorder %s319, %s320
      %p332 = scmp.eq.s32.totalorder %s36, 3
      %p333 = por %p331, %p332
      %p335 = scmp.ne.s32.totalorder %s320, %s334
      %p336 = scmp.eq.s32.totalorder %s36, 0
      %p337 = por %p335, %p336
      %s339 = sadd.s32 %s338, 1
      %p342 = scmp.eq.s32.totalorder %s30, 3
      %p343 = scmp.ne.s32.totalorder %s338, %s340
      %p344 = scmp.eq.s32.totalorder %s30, 0
      %p345 = por %p343, %p344
      %p346 = scmp.ne.s32.totalorder %s338, %s340
      %p347 = scmp.eq.s32.totalorder %s35, 3
      %p348 = por %p346, %p347
      %p349 = scmp.ne.s32.totalorder %s340, %s341
      %p350 = scmp.eq.s32.totalorder %s35, 0
      %p351 = por %p349, %p350
      %p352 = scmp.ne.s32.totalorder %s340, %s341
      %p353 = scmp.eq.s32.totalorder %s36, 3
      %p354 = por %p352, %p353
      %p356 = scmp.ne.s32.totalorder %s341, %s355
      %p357 = scmp.eq.s32.totalorder %s36, 0
      %p358 = por %p356, %p357
      %s360 = sadd.s32 %s359, 1
      %p363 = scmp.eq.s32.totalorder %s30, 3
      %p364 = scmp.ne.s32.totalorder %s359, %s361
      %p365 = scmp.eq.s32.totalorder %s30, 0
      %p366 = por %p364, %p365
      %p367 = scmp.ne.s32.totalorder %s359, %s361
      %p368 = scmp.eq.s32.totalorder %s35, 3
      %p369 = por %p367, %p368
      %p370 = scmp.ne.s32.totalorder %s361, %s362
      %p371 = scmp.eq.s32.totalorder %s35, 0
      %p372 = por %p370, %p371
      %p373 = scmp.ne.s32.totalorder %s361, %s362
      %p374 = scmp.eq.s32.totalorder %s36, 3
      %p375 = por %p373, %p374
      %p377 = scmp.ne.s32.totalorder %s362, %s376
      %p378 = scmp.eq.s32.totalorder %s36, 0
      %p379 = por %p377, %p378
      %s381 = sadd.s32 %s380, 1
      %p384 = scmp.eq.s32.totalorder %s30, 3
      %p385 = scmp.ne.s32.totalorder %s380, %s382
      %p386 = scmp.eq.s32.totalorder %s30, 0
      %p387 = por %p385, %p386
      %p388 = scmp.ne.s32.totalorder %s380, %s382
      %p389 = scmp.eq.s32.totalorder %s35, 3
      %p390 = por %p388, %p389
      %p391 = scmp.ne.s32.totalorder %s382, %s383
      %p392 = scmp.eq.s32.totalorder %s35, 0
      %p393 = por %p391, %p392
      %p394 = scmp.ne.s32.totalorder %s382, %s383
      %p395 = scmp.eq.s32.totalorder %s36, 3
      %p396 = por %p394, %p395
      %p398 = scmp.ne.s32.totalorder %s383, %s397
      %p399 = scmp.eq.s32.totalorder %s36, 0
      %p400 = por %p398, %p399
      %s402 = sadd.s32 %s401, 1
      %p405 = scmp.eq.s32.totalorder %s30, 3
      %p406 = scmp.ne.s32.totalorder %s401, %s403
      %p407 = scmp.eq.s32.totalorder %s30, 0
      %p408 = por %p406, %p407
      %p409 = scmp.ne.s32.totalorder %s401, %s403
      %p410 = scmp.eq.s32.totalorder %s35, 3
      %p411 = por %p409, %p410
      %p412 = scmp.ne.s32.totalorder %s403, %s404
      %p413 = scmp.eq.s32.totalorder %s35, 0
      %p414 = por %p412, %p413
      %p415 = scmp.ne.s32.totalorder %s403, %s404
      %p416 = scmp.eq.s32.totalorder %s36, 3
      %p417 = por %p415, %p416
      %p419 = scmp.ne.s32.totalorder %s404, %s418
      %p420 = scmp.eq.s32.totalorder %s36, 0
      %p421 = por %p419, %p420
      %s422 = ssub.s32 %s37, %s49
      %s423 = ssub.s32 %s38, %s45
      %s424 = sor.u32 %s422, %s423
      %p425 = scmp.eq.s32.totalorder %s424, 0
      %s427 = sadd.s32 %s426, 1
      %s428 = scalar_select %p425, %s426, %s427
      %p431 = pneg %p425
      %p432 = scmp.eq.s32.totalorder %s30, 3
      %p433 = por %p431, %p432
      %p434 = scmp.ne.s32.totalorder %s426, %s429
      %p435 = scmp.eq.s32.totalorder %s30, 0
      %p436 = por %p434, %p435
      %p437 = scmp.ne.s32.totalorder %s426, %s429
      %p438 = scmp.eq.s32.totalorder %s35, 3
      %p439 = por %p437, %p438
      %p440 = scmp.ne.s32.totalorder %s429, %s430
      %p441 = scmp.eq.s32.totalorder %s35, 0
      %p442 = por %p440, %p441
      %p443 = scmp.ne.s32.totalorder %s429, %s430
      %p444 = scmp.eq.s32.totalorder %s36, 3
      %p445 = por %p443, %p444
      %p447 = scmp.ne.s32.totalorder %s430, %s446
      %p448 = scmp.eq.s32.totalorder %s36, 0
      %p449 = por %p447, %p448
      %s450 = ssub.s32 %s37, %s49
      %s451 = ssub.s32 %s38, %s45
      %s452 = sor.u32 %s450, %s451
      %p453 = scmp.eq.s32.totalorder %s452, 0
      %s455 = sadd.s32 %s454, 1
      %s456 = scalar_select %p453, %s454, %s455
      %p459 = pneg %p453
      %p460 = scmp.eq.s32.totalorder %s30, 3
      %p461 = por %p459, %p460
      %p462 = scmp.ne.s32.totalorder %s454, %s457
      %p463 = scmp.eq.s32.totalorder %s30, 0
      %p464 = por %p462, %p463
      %p465 = scmp.ne.s32.totalorder %s454, %s457
      %p466 = scmp.eq.s32.totalorder %s35, 3
      %p467 = por %p465, %p466
      %p468 = scmp.ne.s32.totalorder %s457, %s458
      %p469 = scmp.eq.s32.totalorder %s35, 0
      %p470 = por %p468, %p469
      %p471 = scmp.ne.s32.totalorder %s457, %s458
      %p472 = scmp.eq.s32.totalorder %s36, 3
      %p473 = por %p471, %p472
      %p475 = scmp.ne.s32.totalorder %s458, %s474
      %p476 = scmp.eq.s32.totalorder %s36, 0
      %p477 = por %p475, %p476
      %p478 = scmp.le.s32.totalorder 1, %s30
      %p479 = scmp.lt.s32.totalorder %s30, 5
      %p480 = pnand %p478, %p479
      %p481 = pneg %p480
      // Predicated region
      $region9: #{tpu_custom_call.1} parent=5 // pred_check
        _
      $region10: #{tpu_custom_call.1} parent=5 // pred_check_branch
        %483 = sbr.rel (%p480) target = $region12
      $region11: #{tpu_custom_call.1} parent=5 // pred_region
        %s484 = ssub.s32 %s30, 1
        // Predicated region
        $region13: #{tpu_custom_call.1} parent=11 // pred_check
          %p485 = pneg %p96
        $region14: #{tpu_custom_call.1} parent=11 // pred_check_branch
          %487 = sbr.rel (%p485) target = $region16
        $region15: #{tpu_custom_call.1} parent=11 // pred_region
          %p488 = scmp.lt.s32.totalorder %s39, 1
          %s489 = scalar_select %p488, %s39, 1
          %s490 = smul.addr %s489, 8
          %s491 = smul.addr %s490, 8
          %s492 = scalar_lea.vmem %s1, %s491
        $region16: #{tpu_custom_call.1} parent=11 // pred_fallthru
          _
        // Predicated region
        $region17: #{tpu_custom_call.1} parent=11 // pred_check
          %p493 = pneg %p122
        $region18: #{tpu_custom_call.1} parent=11 // pred_check_branch
          %495 = sbr.rel (%p493) target = $region20
        $region19: #{tpu_custom_call.1} parent=11 // pred_region
          %p496 = scmp.lt.s32.totalorder %s39, 1
          %s497 = scalar_select %p496, %s39, 1
          %s498 = smul.addr %s497, 4
          %s499 = scalar_lea.vmem %s2, %s498
        $region20: #{tpu_custom_call.1} parent=11 // pred_fallthru
          _
        // Predicated region
        $region21: #{tpu_custom_call.1} parent=11 // pred_check
          %p500 = pneg %p148
        $region22: #{tpu_custom_call.1} parent=11 // pred_check_branch
          %502 = sbr.rel (%p500) target = $region24
        $region23: #{tpu_custom_call.1} parent=11 // pred_region
          %p503 = scmp.lt.s32.totalorder %s39, 1
          %s504 = scalar_select %p503, %s39, 1
          %s505 = smul.addr %s504, 4
          %s506 = scalar_lea.vmem %s3, %s505
        $region24: #{tpu_custom_call.1} parent=11 // pred_fallthru
          _
        // Predicated region
        $region25: #{tpu_custom_call.1} parent=11 // pred_check
          %p507 = pneg %p225
        $region26: #{tpu_custom_call.1} parent=11 // pred_check_branch
          %509 = sbr.rel (%p507) target = $region28
        $region27: #{tpu_custom_call.1} parent=11 // pred_region
          _
        $region28: #{tpu_custom_call.1} parent=11 // pred_fallthru
          _
        // Predicated region
        $region29: #{tpu_custom_call.1} parent=11 // pred_check
          %p510 = pneg %p246
        $region30: #{tpu_custom_call.1} parent=11 // pred_check_branch
          %512 = sbr.rel (%p510) target = $region32
        $region31: #{tpu_custom_call.1} parent=11 // pred_region
          _
        $region32: #{tpu_custom_call.1} parent=11 // pred_fallthru
          _
        // Predicated region
        $region33: #{tpu_custom_call.1} parent=11 // pred_check
          %p513 = pneg %p267
        $region34: #{tpu_custom_call.1} parent=11 // pred_check_branch
          %515 = sbr.rel (%p513) target = $region36
        $region35: #{tpu_custom_call.1} parent=11 // pred_region
          _
        $region36: #{tpu_custom_call.1} parent=11 // pred_fallthru
          _
        // Predicated region
        $region37: #{tpu_custom_call.1} parent=11 // pred_check
          %p516 = pneg %p288
        $region38: #{tpu_custom_call.1} parent=11 // pred_check_branch
          %518 = sbr.rel (%p516) target = $region40
        $region39: #{tpu_custom_call.1} parent=11 // pred_region
          _
        $region40: #{tpu_custom_call.1} parent=11 // pred_fallthru
          _
        // Predicated region
        $region41: #{tpu_custom_call.1} parent=11 // pred_check
          %p519 = pneg %p309
        $region42: #{tpu_custom_call.1} parent=11 // pred_check_branch
          %521 = sbr.rel (%p519) target = $region44
        $region43: #{tpu_custom_call.1} parent=11 // pred_region
          _
        $region44: #{tpu_custom_call.1} parent=11 // pred_fallthru
          _
        // Predicated region
        $region45: #{tpu_custom_call.1} parent=11 // pred_check
          %p522 = pneg %p330
        $region46: #{tpu_custom_call.1} parent=11 // pred_check_branch
          %524 = sbr.rel (%p522) target = $region48
        $region47: #{tpu_custom_call.1} parent=11 // pred_region
          _
        $region48: #{tpu_custom_call.1} parent=11 // pred_fallthru
          _
        // Predicated region
        $region49: #{tpu_custom_call.1} parent=11 // pred_check
          %p525 = pneg %p351
        $region50: #{tpu_custom_call.1} parent=11 // pred_check_branch
          %527 = sbr.rel (%p525) target = $region52
        $region51: #{tpu_custom_call.1} parent=11 // pred_region
          _
        $region52: #{tpu_custom_call.1} parent=11 // pred_fallthru
          _
        // Predicated region
        $region53: #{tpu_custom_call.1} parent=11 // pred_check
          %p528 = pneg %p372
        $region54: #{tpu_custom_call.1} parent=11 // pred_check_branch
          %530 = sbr.rel (%p528) target = $region56
        $region55: #{tpu_custom_call.1} parent=11 // pred_region
          _
        $region56: #{tpu_custom_call.1} parent=11 // pred_fallthru
          _
        // Predicated region
        $region57: #{tpu_custom_call.1} parent=11 // pred_check
          %p531 = pneg %p393
        $region58: #{tpu_custom_call.1} parent=11 // pred_check_branch
          %533 = sbr.rel (%p531) target = $region60
        $region59: #{tpu_custom_call.1} parent=11 // pred_region
          _
        $region60: #{tpu_custom_call.1} parent=11 // pred_fallthru
          _
        // Predicated region
        $region61: #{tpu_custom_call.1} parent=11 // pred_check
          %p534 = pneg %p414
        $region62: #{tpu_custom_call.1} parent=11 // pred_check_branch
          %536 = sbr.rel (%p534) target = $region64
        $region63: #{tpu_custom_call.1} parent=11 // pred_region
          _
        $region64: #{tpu_custom_call.1} parent=11 // pred_fallthru
          _
      $region12: #{tpu_custom_call.1} parent=5 // pred_fallthru
        _
      %p537 = scmp.lt.s32.totalorder %s30, 4
      // Predicated region
      $region65: #{tpu_custom_call.1} parent=5 // pred_check
        %p538 = pneg %p537
      $region66: #{tpu_custom_call.1} parent=5 // pred_check_branch
        %540 = sbr.rel (%p538) target = $region68
      $region67: #{tpu_custom_call.1} parent=5 // pred_region
        // Predicated region
        $region69: #{tpu_custom_call.1} parent=67 // pred_check
          %p541 = pneg %p64
        $region70: #{tpu_custom_call.1} parent=67 // pred_check_branch
          %543 = sbr.rel (%p541) target = $region72
        $region71: #{tpu_custom_call.1} parent=67 // pred_region
          %p544 = scmp.lt.s32.totalorder %s37, 1
          %s545 = scalar_select %p544, %s37, 1
          %p546 = scmp.lt.s32.totalorder %s38, 1
          %s547 = scalar_select %p546, %s38, 1
          %s548 = smul.addr %s545, 2
          %s549 = sadd.s32 %s547, %s548
          %s550 = smul.addr %s549, 4
          %s551 = scalar_lea.vmem %s0, %s550
        $region72: #{tpu_custom_call.1} parent=67 // pred_fallthru
          _
        // Predicated region
        $region73: #{tpu_custom_call.1} parent=67 // pred_check
          %p552 = pneg %p170
        $region74: #{tpu_custom_call.1} parent=67 // pred_check_branch
          %554 = sbr.rel (%p552) target = $region76
        $region75: #{tpu_custom_call.1} parent=67 // pred_region
          %p555 = scmp.lt.s32.totalorder %s37, 1
          %s556 = scalar_select %p555, %s37, 1
          %p557 = scmp.lt.s32.totalorder %s38, 1
          %s558 = scalar_select %p557, %s38, 1
          %s559 = smul.addr %s556, 2
          %s560 = sadd.s32 %s558, %s559
          %s561 = smul.addr %s560, 2
          %s562 = scalar_lea.vmem %s4, %s561
        $region76: #{tpu_custom_call.1} parent=67 // pred_fallthru
          _
        // Predicated region
        $region77: #{tpu_custom_call.1} parent=67 // pred_check
          %p563 = pneg %p198
        $region78: #{tpu_custom_call.1} parent=67 // pred_check_branch
          %565 = sbr.rel (%p563) target = $region80
        $region79: #{tpu_custom_call.1} parent=67 // pred_region
          %p566 = scmp.lt.s32.totalorder %s37, 1
          %s567 = scalar_select %p566, %s37, 1
          %p568 = scmp.lt.s32.totalorder %s38, 1
          %s569 = scalar_select %p568, %s38, 1
          %s570 = smul.addr %s567, 2
          %s571 = sadd.s32 %s569, %s570
          %s572 = smul.addr %s571, 2
          %s573 = scalar_lea.vmem %s5, %s572
        $region80: #{tpu_custom_call.1} parent=67 // pred_fallthru
          _
      $region68: #{tpu_custom_call.1} parent=5 // pred_fallthru
        _
      %p574 = scmp.le.s32.totalorder 1, %s30
      %p575 = scmp.lt.s32.totalorder %s30, 5
      %p576 = pnand %p574, %p575
      %p577 = pneg %p576
      // Predicated region
      $region81: #{tpu_custom_call.1} parent=5 // pred_check
        _
      $region82: #{tpu_custom_call.1} parent=5 // pred_check_branch
        %579 = sbr.rel (%p576) target = $region84
      $region83: #{tpu_custom_call.1} parent=5 // pred_region
        %s580 = ssub.s32 %s30, 1
        %p581 = scmp.lt.s32.totalorder %s39, 1
        %s582 = scalar_select %p581, %s39, 1
        %p583 = scmp.lt.s32.totalorder %s40, 1
        %s584 = scalar_select %p583, %s40, 1
        %s585 = smul.addr %s582, 2
        %s586 = sadd.s32 %s584, %s585
        %s587 = smul.addr %s586, 4
        %s588 = scalar_lea.vmem %s0, %s587
        %p589 = pneg %p70
        %p590 = pneg %p67
        %p591 = scmp.lt.s32.totalorder %s39, 1
        %s592 = scalar_select %p591, %s39, 1
        %s593 = smul.addr %s592, 8
        %s594 = smul.addr %s593, 8
        %s595 = scalar_lea.vmem %s1, %s594
        %p596 = pneg %p96
        %p597 = pneg %p93
        %p598 = scmp.lt.s32.totalorder %s39, 1
        %s599 = scalar_select %p598, %s39, 1
        %s600 = smul.addr %s599, 4
        %s601 = scalar_lea.vmem %s2, %s600
        %p602 = pneg %p122
        %p603 = pneg %p119
        %p604 = scmp.lt.s32.totalorder %s39, 1
        %s605 = scalar_select %p604, %s39, 1
        %s606 = smul.addr %s605, 4
        %s607 = scalar_lea.vmem %s3, %s606
        %p608 = pneg %p148
        %p609 = pneg %p145
        %p610 = scmp.lt.s32.totalorder %s39, 1
        %s611 = scalar_select %p610, %s39, 1
        %p612 = scmp.lt.s32.totalorder %s40, 1
        %s613 = scalar_select %p612, %s40, 1
        %s614 = smul.addr %s611, 2
        %s615 = sadd.s32 %s613, %s614
        %s616 = smul.addr %s615, 2
        %s617 = scalar_lea.vmem %s4, %s616
        %p618 = pneg %p176
        %p619 = pneg %p173
        %p620 = scmp.lt.s32.totalorder %s39, 1
        %s621 = scalar_select %p620, %s39, 1
        %p622 = scmp.lt.s32.totalorder %s40, 1
        %s623 = scalar_select %p622, %s40, 1
        %s624 = smul.addr %s621, 2
        %s625 = sadd.s32 %s623, %s624
        %s626 = smul.addr %s625, 2
        %s627 = scalar_lea.vmem %s5, %s626
        %p628 = pneg %p204
        %p629 = pneg %p201
        %p630 = pneg %p225
        %p631 = pneg %p222
        %p632 = pneg %p246
        %p633 = pneg %p243
        %p634 = pneg %p267
        %p635 = pneg %p264
        %p636 = pneg %p288
        %p637 = pneg %p285
        %p638 = pneg %p309
        %p639 = pneg %p306
        %p640 = pneg %p330
        %p641 = pneg %p327
        %p642 = pneg %p351
        %p643 = pneg %p348
        %p644 = pneg %p372
        %p645 = pneg %p369
        %p646 = pneg %p393
        %p647 = pneg %p390
        %p648 = pneg %p414
        %p649 = pneg %p411
        %p650 = pneg %p442
        %p651 = pneg %p439
        %s652 = sand.u32 %s429, 1
        %s653 = scalar_lea.sflag [#allocation3], %s652
        %s654 = sand.u32 %s429, 1
        %s655 = smul.addr %s654, 8
        %s656 = scalar_lea.vmem [#allocation2], %s655
        %p657 = pneg %p470
        %p658 = pneg %p467
        %s659 = sand.u32 %s457, 1
        %s660 = scalar_lea.sflag [#allocation5], %s659
        %s661 = sand.u32 %s457, 1
        %s662 = smul.addr %s661, 8
        %s663 = scalar_lea.vmem [#allocation4], %s662
        %p664 = scmp.lt.s32.totalorder %s39, 1
        %s665 = scalar_select %p664, %s39, 1
        %p666 = scmp.lt.s32.totalorder %s40, 1
        %s667 = scalar_select %p666, %s40, 1
        %s668 = smul.addr %s665, 2
        %s669 = sadd.s32 %s667, %s668
        %s670 = smul.addr %s669, 4
        %s671 = scalar_lea.vmem %s0, %s670
        %p672 = scmp.lt.s32.totalorder %s39, 1
        %s673 = scalar_select %p672, %s39, 1
        %s674 = smul.addr %s673, 8
        %s675 = smul.addr %s674, 8
        %s676 = scalar_lea.vmem %s1, %s675
        %p677 = scmp.lt.s32.totalorder %s39, 1
        %s678 = scalar_select %p677, %s39, 1
        %s679 = smul.addr %s678, 4
        %s680 = scalar_lea.vmem %s2, %s679
        %p681 = scmp.lt.s32.totalorder %s39, 1
        %s682 = scalar_select %p681, %s39, 1
        %s683 = smul.addr %s682, 4
        %s684 = scalar_lea.vmem %s3, %s683
        %p685 = scmp.lt.s32.totalorder %s39, 1
        %s686 = scalar_select %p685, %s39, 1
        %p687 = scmp.lt.s32.totalorder %s40, 1
        %s688 = scalar_select %p687, %s40, 1
        %s689 = smul.addr %s686, 2
        %s690 = sadd.s32 %s688, %s689
        %s691 = smul.addr %s690, 2
        %s692 = scalar_lea.vmem %s4, %s691
        %p693 = scmp.lt.s32.totalorder %s39, 1
        %s694 = scalar_select %p693, %s39, 1
        %p695 = scmp.lt.s32.totalorder %s40, 1
        %s696 = scalar_select %p695, %s40, 1
        %s697 = smul.addr %s694, 2
        %s698 = sadd.s32 %s696, %s697
        %s699 = smul.addr %s698, 2
        %s700 = scalar_lea.vmem %s5, %s699
        %v702 = vld [vmem:[%s671] sm:$0x7]
        %v703 = vld [vmem:[%s676] sm:$0xff]
        %v704 = vld [vmem:[%s676 + $0x8] sm:$0xff]
        %v705 = vld [vmem:[%s676 + $0x10] sm:$0xff]
        %v706 = vld [vmem:[%s676 + $0x18] sm:$0xff]
        %v707 = vld [vmem:[%s676 + $0x20] sm:$0xff]
        %v708 = vld [vmem:[%s676 + $0x28] sm:$0xff]
        %v709 = vld [vmem:[%s676 + $0x30] sm:$0xff]
        %v710 = vld [vmem:[%s676 + $0x38] sm:$0xff]
        %v711 = vld [vmem:[%s680] sm:$0x7]
        %v712 = vld [vmem:[%s684] sm:$0x7]
        %v713 = vld [vmem:[%s692] sm:$0x3]
        %v714 = vld [vmem:[%s700] sm:$0x3]
        %v715 = vld [vmem:[%s6] sm:$0xf]
        %v716 = vld [vmem:[%s6 + $0x4] sm:$0xf]
        %v717 = vld [vmem:[%s7] sm:$0xf]
        %v718 = vld [vmem:[%s7 + $0x4] sm:$0xf]
        %v719 = vld [vmem:[%s8] sm:$0xff]
        %v720 = vld [vmem:[%s8 + $0x8] sm:$0xff]
        %v721 = vld [vmem:[%s9] sm:$0xf]
        %v722 = vld [vmem:[%s10] sm:$0xff]
        %v723 = vld [vmem:[%s11] sm:$0xf]
        %v724 = vld [vmem:[%s11 + $0x4] sm:$0xf]
        %v725 = vld [vmem:[%s12] sm:$0xf]
        %v726 = vld [vmem:[%s12 + $0x4] sm:$0xf]
        %v727 = vld [vmem:[%s13] sm:$0xff]
        %v728 = vld [vmem:[%s13 + $0x8] sm:$0xff]
        %v729 = vld [vmem:[%s14] sm:$0xf]
        %v730 = vld [vmem:[%s15] sm:$0xff]
        %vm731 = vcmask 23552
        %v733 = vsel %vm731, %v703, 0
        %v736 = vsel %vm731, %v704, 0
        %v739 = vsel %vm731, %v705, 0
        %v742 = vsel %vm731, %v706, 0
        %v745 = vsel %vm731, %v707, 0
        %v748 = vsel %vm731, %v708, 0
        %v751 = vsel %vm731, %v709, 0
        %v754 = vsel %vm731, %v710, 0
        %vm756 = vcmask 1042432
        %v758 = vsel %vm756, %v702, 0
        %760 = vmatprep.subr.mxu0 0.0
        %761 = vmatpush1.msra.mxu0 %v758
        %762 = vmatprep.subr.mxu0 0.0
        %763 = vmatpush1.msra.mxu0 0.0
        %764 = vmatprep.subr.mxu0 0.0
        %765 = vmatpush1.msra.mxu0 0.0
        %766 = vmatprep.subr.mxu0 0.0
        %767 = vmatpush1.msra.mxu0 0.0
        %768 = vmatprep.subr.mxu0 0.0
        %769 = vmatpush1.msra.mxu0 0.0
        %770 = vmatprep.subr.mxu0 0.0
        %771 = vmatpush1.msra.mxu0 0.0
        %772 = vmatprep.subr.mxu0 0.0
        %773 = vmatpush1.msra.mxu0 0.0
        %774 = vmatprep.subr.mxu0 0.0
        %775 = vmatpush1.msra.mxu0 0.0
        %776 = vmatprep.subr.mxu0 0.0
        %777 = vmatpush1.msra.mxu0 0.0
        %778 = vmatprep.subr.mxu0 0.0
        %779 = vmatpush1.msra.mxu0 0.0
        %780 = vmatprep.subr.mxu0 0.0
        %781 = vmatpush1.msra.mxu0 0.0
        %782 = vmatprep.subr.mxu0 0.0
        %783 = vmatpush1.msra.mxu0 0.0
        %784 = vmatprep.subr.mxu0 0.0
        %785 = vmatpush1.msra.mxu0 0.0
        %786 = vmatprep.subr.mxu0 0.0
        %787 = vmatpush1.msra.mxu0 0.0
        %788 = vmatprep.subr.mxu0 0.0
        %789 = vmatpush1.msra.mxu0 0.0
        %790 = vmatprep.subr.mxu0 0.0
        %791 = vmatpush1.msra.mxu0 0.0
        %792 = vmatprep.subr.mxu0 0.0
        %793 = vmatpush1.msra.mxu0 0.0
        %794 = vmatprep.subr.mxu0 0.0
        %795 = vmatpush1.msra.mxu0 0.0
        %796 = vmatprep.subr.mxu0 0.0
        %797 = vmatpush1.msra.mxu0 0.0
        %798 = vmatprep.subr.mxu0 0.0
        %799 = vmatpush1.msra.mxu0 0.0
        %800 = vmatprep.subr.mxu0 0.0
        %801 = vmatpush1.msra.mxu0 0.0
        %802 = vmatprep.subr.mxu0 0.0
        %803 = vmatpush1.msra.mxu0 0.0
        %804 = vmatprep.subr.mxu0 0.0
        %805 = vmatpush1.msra.mxu0 0.0
        %806 = vmatprep.subr.mxu0 0.0
        %807 = vmatpush1.msra.mxu0 0.0
        %808 = vmatprep.subr.mxu0 0.0
        %809 = vmatpush1.msra.mxu0 0.0
        %810 = vmatprep.subr.mxu0 0.0
        %811 = vmatpush1.msra.mxu0 0.0
        %812 = vmatprep.subr.mxu0 0.0
        %813 = vmatpush1.msra.mxu0 0.0
        %814 = vmatprep.subr.mxu0 0.0
        %815 = vmatpush1.msra.mxu0 0.0
        %816 = vmatprep.subr.mxu0 0.0
        %817 = vmatpush1.msra.mxu0 0.0
        %818 = vmatprep.subr.mxu0 0.0
        %819 = vmatpush1.msra.mxu0 0.0
        %820 = vmatprep.subr.mxu0 0.0
        %821 = vmatpush1.msra.mxu0 0.0
        %822 = vmatprep.subr.mxu0 0.0
        %823 = vmatpush1.msra.mxu0 0.0
        %824 = vmatprep.mubr.f32.mxu0 0.0
        %825 = vmatmul.mubr.f32.gmra.mrb[0].mxu0 %v733
        %v826 = vpop.f32.mrb[0].mxu0
        %v827 = vadd.f32 0.0, %v826
        %v828 = vpop.f32.mrb[0].mxu0
        %829 = vmatprep.mubr.f32.mxu0 0.0
        %830 = vmatmul.mubr.f32.gmra.mrb[0].mxu0 %v736
        %v831 = vpop.f32.mrb[0].mxu0
        %v832 = vadd.f32 0.0, %v831
        %v833 = vpop.f32.mrb[0].mxu0
        %834 = vmatprep.mubr.f32.mxu0 0.0
        %835 = vmatmul.mubr.f32.gmra.mrb[0].mxu0 %v739
        %v836 = vpop.f32.mrb[0].mxu0
        %v837 = vadd.f32 0.0, %v836
        %v838 = vpop.f32.mrb[0].mxu0
        %839 = vmatprep.mubr.f32.mxu0 0.0
        %840 = vmatmul.mubr.f32.gmra.mrb[0].mxu0 %v742
        %v841 = vpop.f32.mrb[0].mxu0
        %v842 = vadd.f32 0.0, %v841
        %v843 = vpop.f32.mrb[0].mxu0
        %844 = vmatprep.mubr.f32.mxu0 0.0
        %845 = vmatmul.mubr.f32.gmra.mrb[0].mxu0 %v745
        %v846 = vpop.f32.mrb[0].mxu0
        %v847 = vadd.f32 0.0, %v846
        %v848 = vpop.f32.mrb[0].mxu0
        %849 = vmatprep.mubr.f32.mxu0 0.0
        %850 = vmatmul.mubr.f32.gmra.mrb[0].mxu0 %v748
        %v851 = vpop.f32.mrb[0].mxu0
        %v852 = vadd.f32 0.0, %v851
        %v853 = vpop.f32.mrb[0].mxu0
        %854 = vmatprep.mubr.f32.mxu0 0.0
        %855 = vmatmul.mubr.f32.gmra.mrb[0].mxu0 %v751
        %v856 = vpop.f32.mrb[0].mxu0
        %v857 = vadd.f32 0.0, %v856
        %v858 = vpop.f32.mrb[0].mxu0
        %859 = vmatprep.mubr.f32.mxu0 0.0
        %860 = vmatmul.mubr.f32.gmra.mrb[0].mxu0 %v754
        %v861 = vpop.f32.mrb[0].mxu0
        %v862 = vadd.f32 0.0, %v861
        %v863 = vpop.f32.mrb[0].mxu0
        %864 = vdwg.mxu0
        %v865 = vmul.f32 %v703, %v703
        %v866 = vmul.f32 %v704, %v704
        %v867 = vmul.f32 %v705, %v705
        %v868 = vmul.f32 %v706, %v706
        %v869 = vmul.f32 %v707, %v707
        %v870 = vmul.f32 %v708, %v708
        %v871 = vmul.f32 %v709, %v709
        %v872 = vmul.f32 %v710, %v710
        %v873 = vsel %vm731, %v865, 0.0
        %874 = vadd.xlane.f32.xlu0 %v873
        %v875 = vpop.xlane.xlu0 %874
        %v876 = vsel %vm731, %v866, 0.0
        %877 = vadd.xlane.f32.xlu0 %v876
        %v878 = vpop.xlane.xlu0 %877
        %v879 = vsel %vm731, %v867, 0.0
        %880 = vadd.xlane.f32.xlu0 %v879
        %v881 = vpop.xlane.xlu0 %880
        %v882 = vsel %vm731, %v868, 0.0
        %883 = vadd.xlane.f32.xlu0 %v882
        %v884 = vpop.xlane.xlu0 %883
        %v885 = vsel %vm731, %v869, 0.0
        %886 = vadd.xlane.f32.xlu0 %v885
        %v887 = vpop.xlane.xlu0 %886
        %v888 = vsel %vm731, %v870, 0.0
        %889 = vadd.xlane.f32.xlu0 %v888
        %v890 = vpop.xlane.xlu0 %889
        %v891 = vsel %vm731, %v871, 0.0
        %892 = vadd.xlane.f32.xlu0 %v891
        %v893 = vpop.xlane.xlu0 %892
        %v894 = vsel %vm731, %v872, 0.0
        %895 = vadd.xlane.f32.xlu0 %v894
        %v896 = vpop.xlane.xlu0 %895
        %v897 = vmul.f32 %v702, %v702
        %v898 = vsel %vm756, %v897, 0.0
        %v899 = vrot.slane %v898, 4
        %v900 = vadd.f32 %v898, %v899
        %v901 = vrot.slane %v900, 2
        %v902 = vadd.f32 %v900, %v901
        %v903 = vrot.slane %v902, 1
        %v904 = vadd.f32 %v902, %v903
        %v905 = vmul.f32 %v827, -2.0
        %v906 = vmul.f32 %v832, -2.0
        %v907 = vmul.f32 %v837, -2.0
        %v908 = vmul.f32 %v842, -2.0
        %v909 = vmul.f32 %v847, -2.0
        %v910 = vmul.f32 %v852, -2.0
        %v911 = vmul.f32 %v857, -2.0
        %v912 = vmul.f32 %v862, -2.0
        %v913 = vadd.f32 %v905, %v875
        %v914 = vadd.f32 %v906, %v878
        %v915 = vadd.f32 %v907, %v881
        %v916 = vadd.f32 %v908, %v884
        %v917 = vadd.f32 %v909, %v887
        %v918 = vadd.f32 %v910, %v890
        %v919 = vadd.f32 %v911, %v893
        %v920 = vadd.f32 %v912, %v896
        %v921 = vadd.f32 %v913, %v904
        %v922 = vadd.f32 %v914, %v904
        %v923 = vadd.f32 %v915, %v904
        %v924 = vadd.f32 %v916, %v904
        %v925 = vadd.f32 %v917, %v904
        %v926 = vadd.f32 %v918, %v904
        %v927 = vadd.f32 %v919, %v904
        %v928 = vadd.f32 %v920, %v904
        %v929 = vmin.f32 %v921, %v925
        %v930 = vmin.f32 %v922, %v926
        %v931 = vmin.f32 %v923, %v927
        %v932 = vmin.f32 %v924, %v928
        %v933 = vmin.f32 %v929, %v930
        %v934 = vmin.f32 %v931, %v932
        %v935 = vmin.f32 %v933, %v934
        %v936 = vrot.slane %v935, 4
        %v937 = vmin.f32 %v935, %v936
        %v938 = vrot.slane %v937, 2
        %v939 = vmin.f32 %v937, %v938
        %v940 = vrot.slane %v939, 1
        %v941 = vmin.f32 %v939, %v940
        %v942 = vlaneseq
        %v943 = vshrl.u32 %v942, 7
        %v944 = vadd.s32 %v943, 8
        %v945 = vadd.s32 %v943, 16
        %v946 = vadd.s32 %v943, 24
        %v947 = vadd.s32 %v943, 32
        %v948 = vadd.s32 %v943, 40
        %v949 = vadd.s32 %v943, 48
        %v950 = vadd.s32 %v943, 56
        %vm951 = vcmp.eq.f32.partialorder %v921, %v941
        %vm952 = vcmp.eq.f32.partialorder %v922, %v941
        %vm953 = vcmp.eq.f32.partialorder %v923, %v941
        %vm954 = vcmp.eq.f32.partialorder %v924, %v941
        %vm955 = vcmp.eq.f32.partialorder %v925, %v941
        %vm956 = vcmp.eq.f32.partialorder %v926, %v941
        %vm957 = vcmp.eq.f32.partialorder %v927, %v941
        %vm958 = vcmp.eq.f32.partialorder %v928, %v941
        %v959 = vsel %vm951, %v943, 64
        %v960 = vsel %vm952, %v944, 64
        %v961 = vsel %vm953, %v945, 64
        %v962 = vsel %vm954, %v946, 64
        %v963 = vsel %vm955, %v947, 64
        %v964 = vsel %vm956, %v948, 64
        %v965 = vsel %vm957, %v949, 64
        %v966 = vsel %vm958, %v950, 64
        %vm967 = vcmp.lt.s32.totalorder %v959, %v963
        %v968 = vsel %vm967, %v959, %v963
        %vm969 = vcmp.lt.s32.totalorder %v960, %v964
        %v970 = vsel %vm969, %v960, %v964
        %vm971 = vcmp.lt.s32.totalorder %v961, %v965
        %v972 = vsel %vm971, %v961, %v965
        %vm973 = vcmp.lt.s32.totalorder %v962, %v966
        %v974 = vsel %vm973, %v962, %v966
        %vm975 = vcmp.lt.s32.totalorder %v968, %v970
        %v976 = vsel %vm975, %v968, %v970
        %vm977 = vcmp.lt.s32.totalorder %v972, %v974
        %v978 = vsel %vm977, %v972, %v974
        %vm979 = vcmp.lt.s32.totalorder %v976, %v978
        %v980 = vsel %vm979, %v976, %v978
        %v981 = vrot.slane %v980, 4
        %vm982 = vcmp.lt.s32.totalorder %v980, %v981
        %v983 = vsel %vm982, %v980, %v981
        %v984 = vrot.slane %v983, 2
        %vm985 = vcmp.lt.s32.totalorder %v983, %v984
        %v986 = vsel %vm985, %v983, %v984
        %v987 = vrot.slane %v986, 1
        %vm988 = vcmp.lt.s32.totalorder %v986, %v987
        %v989 = vsel %vm988, %v986, %v987
        %vm990 = vcmp.eq.s32.totalorder %v943, %v989
        %vm991 = vcmp.eq.s32.totalorder %v944, %v989
        %vm992 = vcmp.eq.s32.totalorder %v945, %v989
        %vm993 = vcmp.eq.s32.totalorder %v946, %v989
        %vm994 = vcmp.eq.s32.totalorder %v947, %v989
        %vm995 = vcmp.eq.s32.totalorder %v948, %v989
        %vm996 = vcmp.eq.s32.totalorder %v949, %v989
        %vm997 = vcmp.eq.s32.totalorder %v950, %v989
        %v998 = vmax.f32 %v941, 0.0
        %v999 = vadd.f32 %v998, 1e-08
        %v1000 = vrcp.pop %v999
        %v1001 = vmul.f32 1.0, %v1000
        %v1002 = vsel %vm990, 1, 0
        %v1003 = vsel %vm991, 1, 0
        %v1004 = vsel %vm992, 1, 0
        %v1005 = vsel %vm993, 1, 0
        %v1006 = vsel %vm994, 1, 0
        %v1007 = vsel %vm995, 1, 0
        %v1008 = vsel %vm996, 1, 0
        %v1009 = vsel %vm997, 1, 0
        %v1010 = vcvt.s32.f32 %v1002
        %v1011 = vcvt.s32.f32 %v1003
        %v1012 = vcvt.s32.f32 %v1004
        %v1013 = vcvt.s32.f32 %v1005
        %v1014 = vcvt.s32.f32 %v1006
        %v1015 = vcvt.s32.f32 %v1007
        %v1016 = vcvt.s32.f32 %v1008
        %v1017 = vcvt.s32.f32 %v1009
        %v1018 = vmul.f32 %v1010, %v1001
        %v1019 = vmul.f32 %v1011, %v1001
        %v1020 = vmul.f32 %v1012, %v1001
        %v1021 = vmul.f32 %v1013, %v1001
        %v1022 = vmul.f32 %v1014, %v1001
        %v1023 = vmul.f32 %v1015, %v1001
        %v1024 = vmul.f32 %v1016, %v1001
        %v1025 = vmul.f32 %v1017, %v1001
        %v1026 = vadd.f32 %v1018, 0.0
        %v1027 = vadd.f32 %v1019, 0.0
        %v1028 = vadd.f32 %v1020, 0.0
        %v1029 = vadd.f32 %v1021, 0.0
        %v1030 = vadd.f32 %v1022, 0.0
        %v1031 = vadd.f32 %v1023, 0.0
        %v1032 = vadd.f32 %v1024, 0.0
        %v1033 = vadd.f32 %v1025, 0.0
        %v1034 = vadd.f32 %v1001, 0.0
        %v1035 = vsel %vm990, inf, %v921
        %v1036 = vsel %vm991, inf, %v922
        %v1037 = vsel %vm992, inf, %v923
        %v1038 = vsel %vm993, inf, %v924
        %v1039 = vsel %vm994, inf, %v925
        %v1040 = vsel %vm995, inf, %v926
        %v1041 = vsel %vm996, inf, %v927
        %v1042 = vsel %vm997, inf, %v928
        %v1043 = vmin.f32 %v1035, %v1039
        %v1044 = vmin.f32 %v1036, %v1040
        %v1045 = vmin.f32 %v1037, %v1041
        %v1046 = vmin.f32 %v1038, %v1042
        %v1047 = vmin.f32 %v1043, %v1044
        %v1048 = vmin.f32 %v1045, %v1046
        %v1049 = vmin.f32 %v1047, %v1048
        %v1050 = vrot.slane %v1049, 4
        %v1051 = vmin.f32 %v1049, %v1050
        %v1052 = vrot.slane %v1051, 2
        %v1053 = vmin.f32 %v1051, %v1052
        %v1054 = vrot.slane %v1053, 1
        %v1055 = vmin.f32 %v1053, %v1054
        %vm1056 = vcmp.eq.f32.partialorder %v1035, %v1055
        %vm1057 = vcmp.eq.f32.partialorder %v1036, %v1055
        %vm1058 = vcmp.eq.f32.partialorder %v1037, %v1055
        %vm1059 = vcmp.eq.f32.partialorder %v1038, %v1055
        %vm1060 = vcmp.eq.f32.partialorder %v1039, %v1055
        %vm1061 = vcmp.eq.f32.partialorder %v1040, %v1055
        %vm1062 = vcmp.eq.f32.partialorder %v1041, %v1055
        %vm1063 = vcmp.eq.f32.partialorder %v1042, %v1055
        %v1064 = vsel %vm1056, %v943, 64
        %v1065 = vsel %vm1057, %v944, 64
        %v1066 = vsel %vm1058, %v945, 64
        %v1067 = vsel %vm1059, %v946, 64
        %v1068 = vsel %vm1060, %v947, 64
        %v1069 = vsel %vm1061, %v948, 64
        %v1070 = vsel %vm1062, %v949, 64
        %v1071 = vsel %vm1063, %v950, 64
        %vm1072 = vcmp.lt.s32.totalorder %v1064, %v1068
        %v1073 = vsel %vm1072, %v1064, %v1068
        %vm1074 = vcmp.lt.s32.totalorder %v1065, %v1069
        %v1075 = vsel %vm1074, %v1065, %v1069
        %vm1076 = vcmp.lt.s32.totalorder %v1066, %v1070
        %v1077 = vsel %vm1076, %v1066, %v1070
        %vm1078 = vcmp.lt.s32.totalorder %v1067, %v1071
        %v1079 = vsel %vm1078, %v1067, %v1071
        %vm1080 = vcmp.lt.s32.totalorder %v1073, %v1075
        %v1081 = vsel %vm1080, %v1073, %v1075
        %vm1082 = vcmp.lt.s32.totalorder %v1077, %v1079
        %v1083 = vsel %vm1082, %v1077, %v1079
        %vm1084 = vcmp.lt.s32.totalorder %v1081, %v1083
        %v1085 = vsel %vm1084, %v1081, %v1083
        %v1086 = vrot.slane %v1085, 4
        %vm1087 = vcmp.lt.s32.totalorder %v1085, %v1086
        %v1088 = vsel %vm1087, %v1085, %v1086
        %v1089 = vrot.slane %v1088, 2
        %vm1090 = vcmp.lt.s32.totalorder %v1088, %v1089
        %v1091 = vsel %vm1090, %v1088, %v1089
        %v1092 = vrot.slane %v1091, 1
        %vm1093 = vcmp.lt.s32.totalorder %v1091, %v1092
        %v1094 = vsel %vm1093, %v1091, %v1092
        %vm1095 = vcmp.eq.s32.totalorder %v943, %v1094
        %vm1096 = vcmp.eq.s32.totalorder %v944, %v1094
        %vm1097 = vcmp.eq.s32.totalorder %v945, %v1094
        %vm1098 = vcmp.eq.s32.totalorder %v946, %v1094
        %vm1099 = vcmp.eq.s32.totalorder %v947, %v1094
        %vm1100 = vcmp.eq.s32.totalorder %v948, %v1094
        %vm1101 = vcmp.eq.s32.totalorder %v949, %v1094
        %vm1102 = vcmp.eq.s32.totalorder %v950, %v1094
        %v1103 = vmax.f32 %v1055, 0.0
        %v1104 = vadd.f32 %v1103, 1e-08
        %v1105 = vrcp.pop %v1104
        %v1106 = vmul.f32 1.0, %v1105
        %v1107 = vsel %vm1095, 1, 0
        %v1108 = vsel %vm1096, 1, 0
        %v1109 = vsel %vm1097, 1, 0
        %v1110 = vsel %vm1098, 1, 0
        %v1111 = vsel %vm1099, 1, 0
        %v1112 = vsel %vm1100, 1, 0
        %v1113 = vsel %vm1101, 1, 0
        %v1114 = vsel %vm1102, 1, 0
        %v1115 = vcvt.s32.f32 %v1107
        %v1116 = vcvt.s32.f32 %v1108
        %v1117 = vcvt.s32.f32 %v1109
        %v1118 = vcvt.s32.f32 %v1110
        %v1119 = vcvt.s32.f32 %v1111
        %v1120 = vcvt.s32.f32 %v1112
        %v1121 = vcvt.s32.f32 %v1113
        %v1122 = vcvt.s32.f32 %v1114
        %v1123 = vmul.f32 %v1115, %v1106
        %v1124 = vmul.f32 %v1116, %v1106
        %v1125 = vmul.f32 %v1117, %v1106
        %v1126 = vmul.f32 %v1118, %v1106
        %v1127 = vmul.f32 %v1119, %v1106
        %v1128 = vmul.f32 %v1120, %v1106
        %v1129 = vmul.f32 %v1121, %v1106
        %v1130 = vmul.f32 %v1122, %v1106
        %v1131 = vadd.f32 %v1026, %v1123
        %v1132 = vadd.f32 %v1027, %v1124
        %v1133 = vadd.f32 %v1028, %v1125
        %v1134 = vadd.f32 %v1029, %v1126
        %v1135 = vadd.f32 %v1030, %v1127
        %v1136 = vadd.f32 %v1031, %v1128
        %v1137 = vadd.f32 %v1032, %v1129
        %v1138 = vadd.f32 %v1033, %v1130
        %v1139 = vadd.f32 %v1034, %v1106
        %v1140 = vsel %vm1095, inf, %v1035
        %v1141 = vsel %vm1096, inf, %v1036
        %v1142 = vsel %vm1097, inf, %v1037
        %v1143 = vsel %vm1098, inf, %v1038
        %v1144 = vsel %vm1099, inf, %v1039
        %v1145 = vsel %vm1100, inf, %v1040
        %v1146 = vsel %vm1101, inf, %v1041
        %v1147 = vsel %vm1102, inf, %v1042
        %v1148 = vmin.f32 %v1140, %v1144
        %v1149 = vmin.f32 %v1141, %v1145
        %v1150 = vmin.f32 %v1142, %v1146
        %v1151 = vmin.f32 %v1143, %v1147
        %v1152 = vmin.f32 %v1148, %v1149
        %v1153 = vmin.f32 %v1150, %v1151
        %v1154 = vmin.f32 %v1152, %v1153
        %v1155 = vrot.slane %v1154, 4
        %v1156 = vmin.f32 %v1154, %v1155
        %v1157 = vrot.slane %v1156, 2
        %v1158 = vmin.f32 %v1156, %v1157
        %v1159 = vrot.slane %v1158, 1
        %v1160 = vmin.f32 %v1158, %v1159
        %vm1161 = vcmp.eq.f32.partialorder %v1140, %v1160
        %vm1162 = vcmp.eq.f32.partialorder %v1141, %v1160
        %vm1163 = vcmp.eq.f32.partialorder %v1142, %v1160
        %vm1164 = vcmp.eq.f32.partialorder %v1143, %v1160
        %vm1165 = vcmp.eq.f32.partialorder %v1144, %v1160
        %vm1166 = vcmp.eq.f32.partialorder %v1145, %v1160
        %vm1167 = vcmp.eq.f32.partialorder %v1146, %v1160
        %vm1168 = vcmp.eq.f32.partialorder %v1147, %v1160
        %v1169 = vsel %vm1161, %v943, 64
        %v1170 = vsel %vm1162, %v944, 64
        %v1171 = vsel %vm1163, %v945, 64
        %v1172 = vsel %vm1164, %v946, 64
        %v1173 = vsel %vm1165, %v947, 64
        %v1174 = vsel %vm1166, %v948, 64
        %v1175 = vsel %vm1167, %v949, 64
        %v1176 = vsel %vm1168, %v950, 64
        %vm1177 = vcmp.lt.s32.totalorder %v1169, %v1173
        %v1178 = vsel %vm1177, %v1169, %v1173
        %vm1179 = vcmp.lt.s32.totalorder %v1170, %v1174
        %v1180 = vsel %vm1179, %v1170, %v1174
        %vm1181 = vcmp.lt.s32.totalorder %v1171, %v1175
        %v1182 = vsel %vm1181, %v1171, %v1175
        %vm1183 = vcmp.lt.s32.totalorder %v1172, %v1176
        %v1184 = vsel %vm1183, %v1172, %v1176
        %vm1185 = vcmp.lt.s32.totalorder %v1178, %v1180
        %v1186 = vsel %vm1185, %v1178, %v1180
        %vm1187 = vcmp.lt.s32.totalorder %v1182, %v1184
        %v1188 = vsel %vm1187, %v1182, %v1184
        %vm1189 = vcmp.lt.s32.totalorder %v1186, %v1188
        %v1190 = vsel %vm1189, %v1186, %v1188
        %v1191 = vrot.slane %v1190, 4
        %vm1192 = vcmp.lt.s32.totalorder %v1190, %v1191
        %v1193 = vsel %vm1192, %v1190, %v1191
        %v1194 = vrot.slane %v1193, 2
        %vm1195 = vcmp.lt.s32.totalorder %v1193, %v1194
        %v1196 = vsel %vm1195, %v1193, %v1194
        %v1197 = vrot.slane %v1196, 1
        %vm1198 = vcmp.lt.s32.totalorder %v1196, %v1197
        %v1199 = vsel %vm1198, %v1196, %v1197
        %vm1200 = vcmp.eq.s32.totalorder %v943, %v1199
        %vm1201 = vcmp.eq.s32.totalorder %v944, %v1199
        %vm1202 = vcmp.eq.s32.totalorder %v945, %v1199
        %vm1203 = vcmp.eq.s32.totalorder %v946, %v1199
        %vm1204 = vcmp.eq.s32.totalorder %v947, %v1199
        %vm1205 = vcmp.eq.s32.totalorder %v948, %v1199
        %vm1206 = vcmp.eq.s32.totalorder %v949, %v1199
        %vm1207 = vcmp.eq.s32.totalorder %v950, %v1199
        %v1208 = vmax.f32 %v1160, 0.0
        %v1209 = vadd.f32 %v1208, 1e-08
        %v1210 = vrcp.pop %v1209
        %v1211 = vmul.f32 1.0, %v1210
        %v1212 = vsel %vm1200, 1, 0
        %v1213 = vsel %vm1201, 1, 0
        %v1214 = vsel %vm1202, 1, 0
        %v1215 = vsel %vm1203, 1, 0
        %v1216 = vsel %vm1204, 1, 0
        %v1217 = vsel %vm1205, 1, 0
        %v1218 = vsel %vm1206, 1, 0
        %v1219 = vsel %vm1207, 1, 0
        %v1220 = vcvt.s32.f32 %v1212
        %v1221 = vcvt.s32.f32 %v1213
        %v1222 = vcvt.s32.f32 %v1214
        %v1223 = vcvt.s32.f32 %v1215
        %v1224 = vcvt.s32.f32 %v1216
        %v1225 = vcvt.s32.f32 %v1217
        %v1226 = vcvt.s32.f32 %v1218
        %v1227 = vcvt.s32.f32 %v1219
        %v1228 = vmul.f32 %v1220, %v1211
        %v1229 = vmul.f32 %v1221, %v1211
        %v1230 = vmul.f32 %v1222, %v1211
        %v1231 = vmul.f32 %v1223, %v1211
        %v1232 = vmul.f32 %v1224, %v1211
        %v1233 = vmul.f32 %v1225, %v1211
        %v1234 = vmul.f32 %v1226, %v1211
        %v1235 = vmul.f32 %v1227, %v1211
        %v1236 = vadd.f32 %v1131, %v1228
        %v1237 = vadd.f32 %v1132, %v1229
        %v1238 = vadd.f32 %v1133, %v1230
        %v1239 = vadd.f32 %v1134, %v1231
        %v1240 = vadd.f32 %v1135, %v1232
        %v1241 = vadd.f32 %v1136, %v1233
        %v1242 = vadd.f32 %v1137, %v1234
        %v1243 = vadd.f32 %v1138, %v1235
        %v1244 = vadd.f32 %v1139, %v1211
        %v1245 = vpack.c.bf16 %v1237, %v1236
        %v1246 = vpack.c.bf16 %v1239, %v1238
        %v1247 = vpack.c.bf16 %v1241, %v1240
        %v1248 = vpack.c.bf16 %v1243, %v1242
        %v1249 = vrcp.pop %v1244
        %vm1250 = vcmask 523264
        %v1252 = vsel %vm1250, %v711, 0
        %1254 = vmatprep.subr.bf16.mxu0 0
        %1255 = vmatpush1.bf16.msra.mxu0 %v1245
        %1256 = vmatprep.subr.bf16.mxu0 0
        %1257 = vmatpush1.bf16.msra.mxu0 %v1246
        %1258 = vmatprep.subr.bf16.mxu0 0
        %1259 = vmatpush1.bf16.msra.mxu0 %v1247
        %1260 = vmatprep.subr.bf16.mxu0 0
        %1261 = vmatpush1.bf16.msra.mxu0 %v1248
        %1262 = vmatprep.subr.bf16.mxu0 0
        %1263 = vmatpush1.bf16.msra.mxu0 0
        %1264 = vmatprep.subr.bf16.mxu0 0
        %1265 = vmatpush1.bf16.msra.mxu0 0
        %1266 = vmatprep.subr.bf16.mxu0 0
        %1267 = vmatpush1.bf16.msra.mxu0 0
        %1268 = vmatprep.subr.bf16.mxu0 0
        %1269 = vmatpush1.bf16.msra.mxu0 0
        %1270 = vmatprep.subr.bf16.mxu0 0
        %1271 = vmatpush1.bf16.msra.mxu0 0
        %1272 = vmatprep.subr.bf16.mxu0 0
        %1273 = vmatpush1.bf16.msra.mxu0 0
        %1274 = vmatprep.subr.bf16.mxu0 0
        %1275 = vmatpush1.bf16.msra.mxu0 0
        %1276 = vmatprep.subr.bf16.mxu0 0
        %1277 = vmatpush1.bf16.msra.mxu0 0
        %1278 = vmatprep.subr.bf16.mxu0 0
        %1279 = vmatpush1.bf16.msra.mxu0 0
        %1280 = vmatprep.subr.bf16.mxu0 0
        %1281 = vmatpush1.bf16.msra.mxu0 0
        %1282 = vmatprep.subr.bf16.mxu0 0
        %1283 = vmatpush1.bf16.msra.mxu0 0
        %1284 = vmatprep.subr.bf16.mxu0 0
        %1285 = vmatpush1.bf16.msra.mxu0 0
        %1286 = vmatprep.mubr.bf16.mxu0 0
        %1287 = vmatmul.mubr.bf16.gmra.mrb[0].mxu0 %v1252
        %v1288 = vpop.f32.mrb[0].mxu0
        %v1289 = vadd.f32 0.0, %v1288
        %v1290 = vpop.f32.mrb[0].mxu0
        %v1291 = vpop.f32.mrb[0].mxu0
        %v1292 = vpop.f32.mrb[0].mxu0
        %1293 = vdwg.mxu0
        %v1294 = vmul.f32 %v1289, %v1249
        %v1295 = vpack.c.bf16 %v1294, %v1294
        %v1298 = vunpack.c.l.b16 %v717
        %v1299 = vunpack.c.l.b16 %v718
        %v1300 = vpack.c.b16 %v1299, %v1298
        %vm1301 = vcmask 31744
        %v1303 = vsel %vm1301, %v1300, 0
        %vm1305 = vcmask 1041408
        %v1307 = vsel %vm1305, %v713, 0
        %1309 = vmatprep.subr.bf16.mxu0 0
        %1310 = vmatpush1.bf16.msra.mxu0 %v1307
        %1311 = vmatprep.subr.bf16.mxu0 0
        %1312 = vmatpush1.bf16.msra.mxu0 0
        %1313 = vmatprep.subr.bf16.mxu0 0
        %1314 = vmatpush1.bf16.msra.mxu0 0
        %1315 = vmatprep.subr.bf16.mxu0 0
        %1316 = vmatpush1.bf16.msra.mxu0 0
        %1317 = vmatprep.subr.bf16.mxu0 0
        %1318 = vmatpush1.bf16.msra.mxu0 0
        %1319 = vmatprep.subr.bf16.mxu0 0
        %1320 = vmatpush1.bf16.msra.mxu0 0
        %1321 = vmatprep.subr.bf16.mxu0 0
        %1322 = vmatpush1.bf16.msra.mxu0 0
        %1323 = vmatprep.subr.bf16.mxu0 0
        %1324 = vmatpush1.bf16.msra.mxu0 0
        %1325 = vmatprep.subr.bf16.mxu0 0
        %1326 = vmatpush1.bf16.msra.mxu0 0
        %1327 = vmatprep.subr.bf16.mxu0 0
        %1328 = vmatpush1.bf16.msra.mxu0 0
        %1329 = vmatprep.subr.bf16.mxu0 0
        %1330 = vmatpush1.bf16.msra.mxu0 0
        %1331 = vmatprep.subr.bf16.mxu0 0
        %1332 = vmatpush1.bf16.msra.mxu0 0
        %1333 = vmatprep.subr.bf16.mxu0 0
        %1334 = vmatpush1.bf16.msra.mxu0 0
        %1335 = vmatprep.subr.bf16.mxu0 0
        %1336 = vmatpush1.bf16.msra.mxu0 0
        %1337 = vmatprep.subr.bf16.mxu0 0
        %1338 = vmatpush1.bf16.msra.mxu0 0
        %1339 = vmatprep.subr.bf16.mxu0 0
        %1340 = vmatpush1.bf16.msra.mxu0 0
        %1341 = vmatprep.mubr.bf16.mxu0 0
        %1342 = vmatmul.mubr.bf16.gmra.mrb[0].mxu0 %v1303
        %v1343 = vpop.f32.mrb[0].mxu0
        %v1344 = vadd.f32 0.0, %v1343
        %v1345 = vpop.f32.mrb[0].mxu0
        %v1346 = vpop.f32.mrb[0].mxu0
        %v1347 = vadd.f32 0.0, %v1346
        %v1348 = vpop.f32.mrb[0].mxu0
        %1349 = vdwg.mxu0
        %v1352 = vunpack.c.l.b16 %v715
        %v1353 = vunpack.c.l.b16 %v716
        %v1354 = vpack.c.b16 %v1353, %v1352
        %vm1355 = vcmask 48128
        %v1357 = vsel %vm1355, %v1354, 0
        %v1360 = vsel %vm756, %v1295, 0
        %1362 = vmatprep.subr.bf16.mxu0 0
        %1363 = vmatpush1.bf16.msra.mxu0 %v1360
        %1364 = vmatprep.subr.bf16.mxu0 0
        %1365 = vmatpush1.bf16.msra.mxu0 0
        %1366 = vmatprep.subr.bf16.mxu0 0
        %1367 = vmatpush1.bf16.msra.mxu0 0
        %1368 = vmatprep.subr.bf16.mxu0 0
        %1369 = vmatpush1.bf16.msra.mxu0 0
        %1370 = vmatprep.subr.bf16.mxu0 0
        %1371 = vmatpush1.bf16.msra.mxu0 0
        %1372 = vmatprep.subr.bf16.mxu0 0
        %1373 = vmatpush1.bf16.msra.mxu0 0
        %1374 = vmatprep.subr.bf16.mxu0 0
        %1375 = vmatpush1.bf16.msra.mxu0 0
        %1376 = vmatprep.subr.bf16.mxu0 0
        %1377 = vmatpush1.bf16.msra.mxu0 0
        %1378 = vmatprep.subr.bf16.mxu0 0
        %1379 = vmatpush1.bf16.msra.mxu0 0
        %1380 = vmatprep.subr.bf16.mxu0 0
        %1381 = vmatpush1.bf16.msra.mxu0 0
        %1382 = vmatprep.subr.bf16.mxu0 0
        %1383 = vmatpush1.bf16.msra.mxu0 0
        %1384 = vmatprep.subr.bf16.mxu0 0
        %1385 = vmatpush1.bf16.msra.mxu0 0
        %1386 = vmatprep.subr.bf16.mxu0 0
        %1387 = vmatpush1.bf16.msra.mxu0 0
        %1388 = vmatprep.subr.bf16.mxu0 0
        %1389 = vmatpush1.bf16.msra.mxu0 0
        %1390 = vmatprep.subr.bf16.mxu0 0
        %1391 = vmatpush1.bf16.msra.mxu0 0
        %1392 = vmatprep.subr.bf16.mxu0 0
        %1393 = vmatpush1.bf16.msra.mxu0 0
        %1394 = vmatprep.mubr.bf16.mxu0 0
        %1395 = vmatmul.mubr.bf16.gmra.mrb[0].mxu0 %v1357
        %v1396 = vpop.f32.mrb[0].mxu0
        %v1397 = vadd.f32 %v1344, %v1396
        %v1398 = vpop.f32.mrb[0].mxu0
        %v1399 = vpop.f32.mrb[0].mxu0
        %v1400 = vadd.f32 %v1347, %v1399
        %v1401 = vpop.f32.mrb[0].mxu0
        %1402 = vdwg.mxu0
        %1404 = vset.pattern.permute.xlu0 0
        %1405 = vperm.xlu0 %1404, %v719
        %v1406 = vpop.permute.xlu0 %1405
        %1409 = vset.pattern.permute.xlu0 0
        %1410 = vperm.xlu0 %1409, %v720
        %v1411 = vpop.permute.xlu0 %1410
        %v1413 = vadd.f32 %v1397, %v1406
        %v1414 = vadd.f32 %v1400, %v1411
        %v1415 = vmax.f32 %v1413, 0.0
        %v1416 = vmax.f32 %v1414, 0.0
        %v1417 = vpack.c.bf16 %v1416, %v1415
        %1419 = vset.pattern.permute.xlu0 0
        %1420 = vperm.xlu0 %1419, %v722
        %v1421 = vpop.permute.xlu0 %1420
        %vm1423 = vcmask 130048
        %v1425 = vsel %vm1423, %v721, 0
        %1427 = vmatprep.subr.bf16.mxu0 0
        %1428 = vmatpush1.bf16.msra.mxu0 %v1417
        %1429 = vmatprep.subr.bf16.mxu0 0
        %1430 = vmatpush1.bf16.msra.mxu0 0
        %1431 = vmatprep.subr.bf16.mxu0 0
        %1432 = vmatpush1.bf16.msra.mxu0 0
        %1433 = vmatprep.subr.bf16.mxu0 0
        %1434 = vmatpush1.bf16.msra.mxu0 0
        %1435 = vmatprep.subr.bf16.mxu0 0
        %1436 = vmatpush1.bf16.msra.mxu0 0
        %1437 = vmatprep.subr.bf16.mxu0 0
        %1438 = vmatpush1.bf16.msra.mxu0 0
        %1439 = vmatprep.subr.bf16.mxu0 0
        %1440 = vmatpush1.bf16.msra.mxu0 0
        %1441 = vmatprep.subr.bf16.mxu0 0
        %1442 = vmatpush1.bf16.msra.mxu0 0
        %1443 = vmatprep.subr.bf16.mxu0 0
        %1444 = vmatpush1.bf16.msra.mxu0 0
        %1445 = vmatprep.subr.bf16.mxu0 0
        %1446 = vmatpush1.bf16.msra.mxu0 0
        %1447 = vmatprep.subr.bf16.mxu0 0
        %1448 = vmatpush1.bf16.msra.mxu0 0
        %1449 = vmatprep.subr.bf16.mxu0 0
        %1450 = vmatpush1.bf16.msra.mxu0 0
        %1451 = vmatprep.subr.bf16.mxu0 0
        %1452 = vmatpush1.bf16.msra.mxu0 0
        %1453 = vmatprep.subr.bf16.mxu0 0
        %1454 = vmatpush1.bf16.msra.mxu0 0
        %1455 = vmatprep.subr.bf16.mxu0 0
        %1456 = vmatpush1.bf16.msra.mxu0 0
        %1457 = vmatprep.subr.bf16.mxu0 0
        %1458 = vmatpush1.bf16.msra.mxu0 0
        %1459 = vmatprep.mubr.bf16.mxu0 0
        %1460 = vmatmul.mubr.bf16.gmra.mrb[0].mxu0 %v1425
        %v1461 = vpop.f32.mrb[0].mxu0
        %v1462 = vadd.f32 %v1421, %v1461
        %v1463 = vpop.f32.mrb[0].mxu0
        %v1464 = vpop.f32.mrb[0].mxu0
        %v1465 = vpop.f32.mrb[0].mxu0
        %1466 = vdwg.mxu0
        %v1467 = vmax.f32 %v1462, 0.0
        %1468 = vst [vmem:[%s656] sm:$0xff] %v1467
        %v1470 = vsel %vm1250, %v712, 0
        %1472 = vmatprep.subr.bf16.mxu0 0
        %1473 = vmatpush1.bf16.msra.mxu0 %v1245
        %1474 = vmatprep.subr.bf16.mxu0 0
        %1475 = vmatpush1.bf16.msra.mxu0 %v1246
        %1476 = vmatprep.subr.bf16.mxu0 0
        %1477 = vmatpush1.bf16.msra.mxu0 %v1247
        %1478 = vmatprep.subr.bf16.mxu0 0
        %1479 = vmatpush1.bf16.msra.mxu0 %v1248
        %1480 = vmatprep.subr.bf16.mxu0 0
        %1481 = vmatpush1.bf16.msra.mxu0 0
        %1482 = vmatprep.subr.bf16.mxu0 0
        %1483 = vmatpush1.bf16.msra.mxu0 0
        %1484 = vmatprep.subr.bf16.mxu0 0
        %1485 = vmatpush1.bf16.msra.mxu0 0
        %1486 = vmatprep.subr.bf16.mxu0 0
        %1487 = vmatpush1.bf16.msra.mxu0 0
        %1488 = vmatprep.subr.bf16.mxu0 0
        %1489 = vmatpush1.bf16.msra.mxu0 0
        %1490 = vmatprep.subr.bf16.mxu0 0
        %1491 = vmatpush1.bf16.msra.mxu0 0
        %1492 = vmatprep.subr.bf16.mxu0 0
        %1493 = vmatpush1.bf16.msra.mxu0 0
        %1494 = vmatprep.subr.bf16.mxu0 0
        %1495 = vmatpush1.bf16.msra.mxu0 0
        %1496 = vmatprep.subr.bf16.mxu0 0
        %1497 = vmatpush1.bf16.msra.mxu0 0
        %1498 = vmatprep.subr.bf16.mxu0 0
        %1499 = vmatpush1.bf16.msra.mxu0 0
        %1500 = vmatprep.subr.bf16.mxu0 0
        %1501 = vmatpush1.bf16.msra.mxu0 0
        %1502 = vmatprep.subr.bf16.mxu0 0
        %1503 = vmatpush1.bf16.msra.mxu0 0
        %1504 = vmatprep.mubr.bf16.mxu0 0
        %1505 = vmatmul.mubr.bf16.gmra.mrb[0].mxu0 %v1470
        %v1506 = vpop.f32.mrb[0].mxu0
        %v1507 = vadd.f32 0.0, %v1506
        %v1508 = vpop.f32.mrb[0].mxu0
        %v1509 = vpop.f32.mrb[0].mxu0
        %v1510 = vpop.f32.mrb[0].mxu0
        %1511 = vdwg.mxu0
        %v1512 = vmul.f32 %v1507, %v1249
        %v1513 = vpack.c.bf16 %v1512, %v1512
        %v1516 = vunpack.c.l.b16 %v725
        %v1517 = vunpack.c.l.b16 %v726
        %v1518 = vpack.c.b16 %v1517, %v1516
        %v1520 = vsel %vm1301, %v1518, 0
        %v1523 = vsel %vm1305, %v714, 0
        %1525 = vmatprep.subr.bf16.mxu0 0
        %1526 = vmatpush1.bf16.msra.mxu0 %v1523
        %1527 = vmatprep.subr.bf16.mxu0 0
        %1528 = vmatpush1.bf16.msra.mxu0 0
        %1529 = vmatprep.subr.bf16.mxu0 0
        %1530 = vmatpush1.bf16.msra.mxu0 0
        %1531 = vmatprep.subr.bf16.mxu0 0
        %1532 = vmatpush1.bf16.msra.mxu0 0
        %1533 = vmatprep.subr.bf16.mxu0 0
        %1534 = vmatpush1.bf16.msra.mxu0 0
        %1535 = vmatprep.subr.bf16.mxu0 0
        %1536 = vmatpush1.bf16.msra.mxu0 0
        %1537 = vmatprep.subr.bf16.mxu0 0
        %1538 = vmatpush1.bf16.msra.mxu0 0
        %1539 = vmatprep.subr.bf16.mxu0 0
        %1540 = vmatpush1.bf16.msra.mxu0 0
        %1541 = vmatprep.subr.bf16.mxu0 0
        %1542 = vmatpush1.bf16.msra.mxu0 0
        %1543 = vmatprep.subr.bf16.mxu0 0
        %1544 = vmatpush1.bf16.msra.mxu0 0
        %1545 = vmatprep.subr.bf16.mxu0 0
        %1546 = vmatpush1.bf16.msra.mxu0 0
        %1547 = vmatprep.subr.bf16.mxu0 0
        %1548 = vmatpush1.bf16.msra.mxu0 0
        %1549 = vmatprep.subr.bf16.mxu0 0
        %1550 = vmatpush1.bf16.msra.mxu0 0
        %1551 = vmatprep.subr.bf16.mxu0 0
        %1552 = vmatpush1.bf16.msra.mxu0 0
        %1553 = vmatprep.subr.bf16.mxu0 0
        %1554 = vmatpush1.bf16.msra.mxu0 0
        %1555 = vmatprep.subr.bf16.mxu0 0
        %1556 = vmatpush1.bf16.msra.mxu0 0
        %1557 = vmatprep.mubr.bf16.mxu0 0
        %1558 = vmatmul.mubr.bf16.gmra.mrb[0].mxu0 %v1520
        %v1559 = vpop.f32.mrb[0].mxu0
        %v1560 = vadd.f32 0.0, %v1559
        %v1561 = vpop.f32.mrb[0].mxu0
        %v1562 = vpop.f32.mrb[0].mxu0
        %v1563 = vadd.f32 0.0, %v1562
        %v1564 = vpop.f32.mrb[0].mxu0
        %1565 = vdwg.mxu0
        %v1568 = vunpack.c.l.b16 %v723
        %v1569 = vunpack.c.l.b16 %v724
        %v1570 = vpack.c.b16 %v1569, %v1568
        %v1572 = vsel %vm1355, %v1570, 0
        %v1575 = vsel %vm756, %v1513, 0
        %1577 = vmatprep.subr.bf16.mxu0 0
        %1578 = vmatpush1.bf16.msra.mxu0 %v1575
        %1579 = vmatprep.subr.bf16.mxu0 0
        %1580 = vmatpush1.bf16.msra.mxu0 0
        %1581 = vmatprep.subr.bf16.mxu0 0
        %1582 = vmatpush1.bf16.msra.mxu0 0
        %1583 = vmatprep.subr.bf16.mxu0 0
        %1584 = vmatpush1.bf16.msra.mxu0 0
        %1585 = vmatprep.subr.bf16.mxu0 0
        %1586 = vmatpush1.bf16.msra.mxu0 0
        %1587 = vmatprep.subr.bf16.mxu0 0
        %1588 = vmatpush1.bf16.msra.mxu0 0
        %1589 = vmatprep.subr.bf16.mxu0 0
        %1590 = vmatpush1.bf16.msra.mxu0 0
        %1591 = vmatprep.subr.bf16.mxu0 0
        %1592 = vmatpush1.bf16.msra.mxu0 0
        %1593 = vmatprep.subr.bf16.mxu0 0
        %1594 = vmatpush1.bf16.msra.mxu0 0
        %1595 = vmatprep.subr.bf16.mxu0 0
        %1596 = vmatpush1.bf16.msra.mxu0 0
        %1597 = vmatprep.subr.bf16.mxu0 0
        %1598 = vmatpush1.bf16.msra.mxu0 0
        %1599 = vmatprep.subr.bf16.mxu0 0
        %1600 = vmatpush1.bf16.msra.mxu0 0
        %1601 = vmatprep.subr.bf16.mxu0 0
        %1602 = vmatpush1.bf16.msra.mxu0 0
        %1603 = vmatprep.subr.bf16.mxu0 0
        %1604 = vmatpush1.bf16.msra.mxu0 0
        %1605 = vmatprep.subr.bf16.mxu0 0
        %1606 = vmatpush1.bf16.msra.mxu0 0
        %1607 = vmatprep.subr.bf16.mxu0 0
        %1608 = vmatpush1.bf16.msra.mxu0 0
        %1609 = vmatprep.mubr.bf16.mxu0 0
        %1610 = vmatmul.mubr.bf16.gmra.mrb[0].mxu0 %v1572
        %v1611 = vpop.f32.mrb[0].mxu0
        %v1612 = vadd.f32 %v1560, %v1611
        %v1613 = vpop.f32.mrb[0].mxu0
        %v1614 = vpop.f32.mrb[0].mxu0
        %v1615 = vadd.f32 %v1563, %v1614
        %v1616 = vpop.f32.mrb[0].mxu0
        %1617 = vdwg.mxu0
        %1619 = vset.pattern.permute.xlu0 0
        %1620 = vperm.xlu0 %1619, %v727
        %v1621 = vpop.permute.xlu0 %1620
        %1624 = vset.pattern.permute.xlu0 0
        %1625 = vperm.xlu0 %1624, %v728
        %v1626 = vpop.permute.xlu0 %1625
        %v1628 = vadd.f32 %v1612, %v1621
        %v1629 = vadd.f32 %v1615, %v1626
        %v1630 = vmax.f32 %v1628, 0.0
        %v1631 = vmax.f32 %v1629, 0.0
        %v1632 = vpack.c.bf16 %v1631, %v1630
        %1634 = vset.pattern.permute.xlu0 0
        %1635 = vperm.xlu0 %1634, %v730
        %v1636 = vpop.permute.xlu0 %1635
        %v1639 = vsel %vm1423, %v729, 0
        %1641 = vmatprep.subr.bf16.mxu0 0
        %1642 = vmatpush1.bf16.msra.mxu0 %v1632
        %1643 = vmatprep.subr.bf16.mxu0 0
        %1644 = vmatpush1.bf16.msra.mxu0 0
        %1645 = vmatprep.subr.bf16.mxu0 0
        %1646 = vmatpush1.bf16.msra.mxu0 0
        %1647 = vmatprep.subr.bf16.mxu0 0
        %1648 = vmatpush1.bf16.msra.mxu0 0
        %1649 = vmatprep.subr.bf16.mxu0 0
        %1650 = vmatpush1.bf16.msra.mxu0 0
        %1651 = vmatprep.subr.bf16.mxu0 0
        %1652 = vmatpush1.bf16.msra.mxu0 0
        %1653 = vmatprep.subr.bf16.mxu0 0
        %1654 = vmatpush1.bf16.msra.mxu0 0
        %1655 = vmatprep.subr.bf16.mxu0 0
        %1656 = vmatpush1.bf16.msra.mxu0 0
        %1657 = vmatprep.subr.bf16.mxu0 0
        %1658 = vmatpush1.bf16.msra.mxu0 0
        %1659 = vmatprep.subr.bf16.mxu0 0
        %1660 = vmatpush1.bf16.msra.mxu0 0
        %1661 = vmatprep.subr.bf16.mxu0 0
        %1662 = vmatpush1.bf16.msra.mxu0 0
        %1663 = vmatprep.subr.bf16.mxu0 0
        %1664 = vmatpush1.bf16.msra.mxu0 0
        %1665 = vmatprep.subr.bf16.mxu0 0
        %1666 = vmatpush1.bf16.msra.mxu0 0
        %1667 = vmatprep.subr.bf16.mxu0 0
        %1668 = vmatpush1.bf16.msra.mxu0 0
        %1669 = vmatprep.subr.bf16.mxu0 0
        %1670 = vmatpush1.bf16.msra.mxu0 0
        %1671 = vmatprep.subr.bf16.mxu0 0
        %1672 = vmatpush1.bf16.msra.mxu0 0
        %1673 = vmatprep.mubr.bf16.mxu0 0
        %1674 = vmatmul.mubr.bf16.gmra.mrb[0].mxu0 %v1639
        %v1675 = vpop.f32.mrb[0].mxu0
        %v1676 = vadd.f32 %v1636, %v1675
        %v1677 = vpop.f32.mrb[0].mxu0
        %v1678 = vpop.f32.mrb[0].mxu0
        %v1679 = vpop.f32.mrb[0].mxu0
        %1680 = vdwg.mxu0
        %v1681 = vmax.f32 %v1676, 0.0
        %1682 = vst [vmem:[%s663] sm:$0xff] %v1681
        %s1683 = sand.u32 %s429, 1
        %s1684 = scalar_lea.sflag [#allocation3], %s1683
        %s1685 = sand.u32 %s429, 1
        %s1686 = smul.addr %s1685, 8
        %s1687 = scalar_lea.vmem [#allocation2], %s1686
        %s1688 = sand.u32 %s457, 1
        %s1689 = scalar_lea.sflag [#allocation5], %s1688
        %s1690 = sand.u32 %s457, 1
        %s1691 = smul.addr %s1690, 8
        %s1692 = scalar_lea.vmem [#allocation4], %s1691
        // Predicated region
        $region85: #{tpu_custom_call.1} parent=83 // pred_check
          %p1693 = pneg %p439
        $region86: #{tpu_custom_call.1} parent=83 // pred_check_branch
          %1695 = sbr.rel (%p1693) target = $region88
        $region87: #{tpu_custom_call.1} parent=83 // pred_region
          %s1697 = ssub.s32 128, 128
          %1698 = vsyncadd %s1684, %s1697
          %s1699 = smul.addr %s39, 2
          %s1700 = sadd.s32 %s40, %s1699
          %s1701 = smul.addr %s1700, 128
          %s1702 = scalar_lea.hbm %s16, %s1701
          %s1704 = sshll.u32 %s1687, 4
          %s1705 = int_to_ptr.vmem [resolvable:$true] %s1704
          %1707 = dma.vmem_to_hbm [thread:$0]  %s1705, 128, %s1702, %s1684
        $region88: #{tpu_custom_call.1} parent=83 // pred_fallthru
          _
        // Predicated region
        $region89: #{tpu_custom_call.1} parent=83 // pred_check
          %p1708 = pneg %p467
        $region90: #{tpu_custom_call.1} parent=83 // pred_check_branch
          %1710 = sbr.rel (%p1708) target = $region92
        $region91: #{tpu_custom_call.1} parent=83 // pred_region
          %s1712 = ssub.s32 128, 128
          %1713 = vsyncadd %s1689, %s1712
          %s1714 = smul.addr %s39, 2
          %s1715 = sadd.s32 %s40, %s1714
          %s1716 = smul.addr %s1715, 128
          %s1717 = scalar_lea.hbm %s17, %s1716
          %s1719 = sshll.u32 %s1692, 4
          %s1720 = int_to_ptr.vmem [resolvable:$true] %s1719
          %1722 = dma.vmem_to_hbm [thread:$0]  %s1720, 128, %s1717, %s1689
        $region92: #{tpu_custom_call.1} parent=83 // pred_fallthru
          _
      $region84: #{tpu_custom_call.1} parent=5 // pred_fallthru
        _
      %p1723 = scmp.le.s32.totalorder 2, %s30
      // Predicated region
      $region93: #{tpu_custom_call.1} parent=5 // pred_check
        %p1724 = pneg %p1723
      $region94: #{tpu_custom_call.1} parent=5 // pred_check_branch
        %1726 = sbr.rel (%p1724) target = $region96
      $region95: #{tpu_custom_call.1} parent=5 // pred_region
        %s1727 = ssub.s32 %s30, 2
        // Predicated region
        $region97: #{tpu_custom_call.1} parent=95 // pred_check
          %p1728 = pneg %p445
        $region98: #{tpu_custom_call.1} parent=95 // pred_check_branch
          %1730 = sbr.rel (%p1728) target = $region100
        $region99: #{tpu_custom_call.1} parent=95 // pred_region
          %s1731 = sand.u32 %s430, 1
          %s1732 = scalar_lea.sflag [#allocation3], %s1731
          %s1733 = sand.u32 %s430, 1
          %s1734 = smul.addr %s1733, 8
          %s1735 = scalar_lea.vmem [#allocation2], %s1734
          %1736 = dma.done %s1732, 128
        $region100: #{tpu_custom_call.1} parent=95 // pred_fallthru
          _
        // Predicated region
        $region101: #{tpu_custom_call.1} parent=95 // pred_check
          %p1737 = pneg %p473
        $region102: #{tpu_custom_call.1} parent=95 // pred_check_branch
          %1739 = sbr.rel (%p1737) target = $region104
        $region103: #{tpu_custom_call.1} parent=95 // pred_region
          %s1740 = sand.u32 %s458, 1
          %s1741 = scalar_lea.sflag [#allocation5], %s1740
          %s1742 = sand.u32 %s458, 1
          %s1743 = smul.addr %s1742, 8
          %s1744 = scalar_lea.vmem [#allocation4], %s1743
          %1745 = dma.done %s1741, 128
        $region104: #{tpu_custom_call.1} parent=95 // pred_fallthru
          _
      $region96: #{tpu_custom_call.1} parent=5 // pred_fallthru
        _
    $region6: #{tpu_custom_call.1} parent=1 // loop_footer
      %s34 = sadd.s32 1, %s30
    $region7: #{tpu_custom_call.1} parent=1 // loop_footer_branch
      %29 = sbr.rel target = $region3
    $region8: #{tpu_custom_call.1} parent=1 // loop_exit
      _
    %1746 = vsyncpa [#allocation3], 1
    %s1747 = scalar_lea.sflag [#allocation3], 1
    %1748 = vsyncpa %s1747, 1
    %1749 = vsyncpa [#allocation5], 1
    %s1750 = scalar_lea.sflag [#allocation5], 1
    %1751 = vsyncpa %s1750, 1

// kernel: tpu_custom_call.1
$region0: #{tpu_custom_call.1}
  #allocation0 [shape = 'u32[]', space=smem, size = 0x4, offset = 0x4, fixed_abs, tag = 'smem constant byte address 0x4 - core index']
  #allocation1 [shape = 'u32[144,128]{1,0:T(1,128)}', space=vmem, size = 0x12000, scoped, tag = 'internal scratch']
  %s0 = inlined_call_operand.vmem [shape: f32[2,3,256], index: 0, kind: input, shape index: {}]
  %s1 = inlined_call_operand.vmem [shape: f32[2,64,3], index: 1, kind: input, shape index: {}]
  %s2 = inlined_call_operand.vmem [shape: bf16[2,6,64], index: 2, kind: input, shape index: {}]
  %s3 = inlined_call_operand.vmem [shape: bf16[2,6,64], index: 3, kind: input, shape index: {}]
  %s4 = inlined_call_operand.vmem [shape: bf16[2,4,256], index: 4, kind: input, shape index: {}]
  %s5 = inlined_call_operand.vmem [shape: bf16[2,4,256], index: 5, kind: input, shape index: {}]
  %s6 = inlined_call_operand.vmem [shape: bf16[16,6], index: 6, kind: input, shape index: {}]
  %s7 = inlined_call_operand.vmem [shape: bf16[16,4], index: 7, kind: input, shape index: {}]
  %s8 = inlined_call_operand.vmem [shape: f32[16,1], index: 8, kind: input, shape index: {}]
  %s9 = inlined_call_operand.vmem [shape: bf16[8,16], index: 9, kind: input, shape index: {}]
  %s10 = inlined_call_operand.vmem [shape: f32[8,1], index: 10, kind: input, shape index: {}]
  %s11 = inlined_call_operand.vmem [shape: bf16[16,6], index: 11, kind: input, shape index: {}]
  %s12 = inlined_call_operand.vmem [shape: bf16[16,4], index: 12, kind: input, shape index: {}]
  %s13 = inlined_call_operand.vmem [shape: f32[16,1], index: 13, kind: input, shape index: {}]
  %s14 = inlined_call_operand.vmem [shape: bf16[8,16], index: 14, kind: input, shape index: {}]
  %s15 = inlined_call_operand.vmem [shape: f32[8,1], index: 15, kind: input, shape index: {}]
  %s16 = inlined_call_operand.hbm [shape: f32[2,8,256], index: 16, kind: output, shape index: {0}]
  %s17 = inlined_call_operand.hbm [shape: f32[2,8,256], index: 17, kind: output, shape index: {1}]
  %18 = xla_tuple %s16, %s17
  %s19 = sld [smem:[#allocation0]]
  $region105: #{tpu_custom_call.1} parent=0
    _
  %s21 = ssub.s32 1, %s19
  %s22 = scalar_select 0, %s21, %s19
  $region1: #{tpu_custom_call.1} parent=0
    #allocation2 [shape = 'u8[8192]{0}', space=vmem, size = 0x2000, scoped, tag = 'output window, operand 0']
    #allocation3 [shape = 's32[2]{0}', space=sflag, size = 0x8, scoped, tag = 'scoped memory for tpu_custom_call.1']
    #allocation4 [shape = 'u8[8192]{0}', space=vmem, size = 0x2000, scoped, tag = 'output window, operand 1']
    #allocation5 [shape = 's32[2]{0}', space=sflag, size = 0x8, scoped, tag = 'scoped memory for tpu_custom_call.1']
    %23 = vsyncpa [#allocation3], 0
    %s24 = scalar_lea.sflag [#allocation3], 1
    %25 = vsyncpa %s24, 0
    %26 = vsyncpa [#allocation5], 0
    %s27 = scalar_lea.sflag [#allocation5], 1
    %28 = vsyncpa %s27, 0
    loop: start=0, step=1, limit=6
    $region2: #{tpu_custom_call.1} parent=1 // loop_pre_header
      _
    $region3: #{tpu_custom_call.1} parent=1 // loop_header
      %s30 = sphi 0, %s34
      %p31 = scmp.ge.s32.totalorder %s30, 6
      %s37 = sphi 0, %s49
      %s38 = sphi 0, %s45
      %s39 = sphi 0, %s37
      %s40 = sphi 0, %s38
      %s41 = sphi 0, %s39
      %s42 = sphi 0, %s40
      %s54 = sphi 0, %s56
      %s57 = sphi 0, %s54
      %s58 = sphi 0, %s57
      %s74 = sphi 0, %s58
      %s80 = sphi 0, %s82
      %s83 = sphi 0, %s80
      %s84 = sphi 0, %s83
      %s100 = sphi 0, %s84
      %s106 = sphi 0, %s108
      %s109 = sphi 0, %s106
      %s110 = sphi 0, %s109
      %s126 = sphi 0, %s110
      %s132 = sphi 0, %s134
      %s135 = sphi 0, %s132
      %s136 = sphi 0, %s135
      %s152 = sphi 0, %s136
      %s160 = sphi 0, %s162
      %s163 = sphi 0, %s160
      %s164 = sphi 0, %s163
      %s180 = sphi 0, %s164
      %s188 = sphi 0, %s190
      %s191 = sphi 0, %s188
      %s192 = sphi 0, %s191
      %s208 = sphi 0, %s192
      %s212 = sphi 0, %s212
      %s214 = sphi 0, %s212
      %s215 = sphi 0, %s214
      %s229 = sphi 0, %s215
      %s233 = sphi 0, %s233
      %s235 = sphi 0, %s233
      %s236 = sphi 0, %s235
      %s250 = sphi 0, %s236
      %s254 = sphi 0, %s254
      %s256 = sphi 0, %s254
      %s257 = sphi 0, %s256
      %s271 = sphi 0, %s257
      %s275 = sphi 0, %s275
      %s277 = sphi 0, %s275
      %s278 = sphi 0, %s277
      %s292 = sphi 0, %s278
      %s296 = sphi 0, %s296
      %s298 = sphi 0, %s296
      %s299 = sphi 0, %s298
      %s313 = sphi 0, %s299
      %s317 = sphi 0, %s317
      %s319 = sphi 0, %s317
      %s320 = sphi 0, %s319
      %s334 = sphi 0, %s320
      %s338 = sphi 0, %s338
      %s340 = sphi 0, %s338
      %s341 = sphi 0, %s340
      %s355 = sphi 0, %s341
      %s359 = sphi 0, %s359
      %s361 = sphi 0, %s359
      %s362 = sphi 0, %s361
      %s376 = sphi 0, %s362
      %s380 = sphi 0, %s380
      %s382 = sphi 0, %s380
      %s383 = sphi 0, %s382
      %s397 = sphi 0, %s383
      %s401 = sphi 0, %s401
      %s403 = sphi 0, %s401
      %s404 = sphi 0, %s403
      %s418 = sphi 0, %s404
      %s426 = sphi 0, %s428
      %s429 = sphi 0, %s426
      %s430 = sphi 0, %s429
      %s446 = sphi 0, %s430
      %s454 = sphi 0, %s456
      %s457 = sphi 0, %s454
      %s458 = sphi 0, %s457
      %s474 = sphi 0, %s458
    $region4: #{tpu_custom_call.1} parent=1 // loop_header_branch
      %33 = sbr.rel (%p31) target = $region8
    $region5: #{tpu_custom_call.1} parent=1 // loop_body
      %s35 = ssub.s32 %s30, 1
      %s36 = ssub.s32 %s30, 2
      %s43 = sadd.s32 1, %s38
      %p44 = scmp.ge.s32.totalorder %s43, 2
      %s45 = scalar_select %p44, 0, %s43
      %s46 = sadd.s32 1, %s37
      %s47 = scalar_select %p44, %s46, %s37
      %p48 = scmp.ge.s32.totalorder %s47, 2
      %s49 = scalar_select %p48, 0, %s47
      %s50 = ssub.s32 %s37, %s49
      %s51 = ssub.s32 %s38, %s45
      %s52 = sor.u32 %s50, %s51
      %p53 = scmp.eq.s32.totalorder %s52, 0
      %s55 = sadd.s32 %s54, 1
      %s56 = scalar_select %p53, %s54, %s55
      %p59 = pneg %p53
      %p60 = scmp.eq.s32.totalorder %s30, 3
      %p61 = por %p59, %p60
      %p62 = scmp.ne.s32.totalorder %s54, %s57
      %p63 = scmp.eq.s32.totalorder %s30, 0
      %p64 = por %p62, %p63
      %p65 = scmp.ne.s32.totalorder %s54, %s57
      %p66 = scmp.eq.s32.totalorder %s35, 3
      %p67 = por %p65, %p66
      %p68 = scmp.ne.s32.totalorder %s57, %s58
      %p69 = scmp.eq.s32.totalorder %s35, 0
      %p70 = por %p68, %p69
      %p71 = scmp.ne.s32.totalorder %s57, %s58
      %p72 = scmp.eq.s32.totalorder %s36, 3
      %p73 = por %p71, %p72
      %p75 = scmp.ne.s32.totalorder %s58, %s74
      %p76 = scmp.eq.s32.totalorder %s36, 0
      %p77 = por %p75, %p76
      %s78 = ssub.s32 %s37, %s49
      %p79 = scmp.eq.s32.totalorder %s78, 0
      %s81 = sadd.s32 %s80, 1
      %s82 = scalar_select %p79, %s80, %s81
      %p85 = pneg %p79
      %p86 = scmp.eq.s32.totalorder %s30, 3
      %p87 = por %p85, %p86
      %p88 = scmp.ne.s32.totalorder %s80, %s83
      %p89 = scmp.eq.s32.totalorder %s30, 0
      %p90 = por %p88, %p89
      %p91 = scmp.ne.s32.totalorder %s80, %s83
      %p92 = scmp.eq.s32.totalorder %s35, 3
      %p93 = por %p91, %p92
      %p94 = scmp.ne.s32.totalorder %s83, %s84
      %p95 = scmp.eq.s32.totalorder %s35, 0
      %p96 = por %p94, %p95
      %p97 = scmp.ne.s32.totalorder %s83, %s84
      %p98 = scmp.eq.s32.totalorder %s36, 3
      %p99 = por %p97, %p98
      %p101 = scmp.ne.s32.totalorder %s84, %s100
      %p102 = scmp.eq.s32.totalorder %s36, 0
      %p103 = por %p101, %p102
      %s104 = ssub.s32 %s37, %s49
      %p105 = scmp.eq.s32.totalorder %s104, 0
      %s107 = sadd.s32 %s106, 1
      %s108 = scalar_select %p105, %s106, %s107
      %p111 = pneg %p105
      %p112 = scmp.eq.s32.totalorder %s30, 3
      %p113 = por %p111, %p112
      %p114 = scmp.ne.s32.totalorder %s106, %s109
      %p115 = scmp.eq.s32.totalorder %s30, 0
      %p116 = por %p114, %p115
      %p117 = scmp.ne.s32.totalorder %s106, %s109
      %p118 = scmp.eq.s32.totalorder %s35, 3
      %p119 = por %p117, %p118
      %p120 = scmp.ne.s32.totalorder %s109, %s110
      %p121 = scmp.eq.s32.totalorder %s35, 0
      %p122 = por %p120, %p121
      %p123 = scmp.ne.s32.totalorder %s109, %s110
      %p124 = scmp.eq.s32.totalorder %s36, 3
      %p125 = por %p123, %p124
      %p127 = scmp.ne.s32.totalorder %s110, %s126
      %p128 = scmp.eq.s32.totalorder %s36, 0
      %p129 = por %p127, %p128
      %s130 = ssub.s32 %s37, %s49
      %p131 = scmp.eq.s32.totalorder %s130, 0
      %s133 = sadd.s32 %s132, 1
      %s134 = scalar_select %p131, %s132, %s133
      %p137 = pneg %p131
      %p138 = scmp.eq.s32.totalorder %s30, 3
      %p139 = por %p137, %p138
      %p140 = scmp.ne.s32.totalorder %s132, %s135
      %p141 = scmp.eq.s32.totalorder %s30, 0
      %p142 = por %p140, %p141
      %p143 = scmp.ne.s32.totalorder %s132, %s135
      %p144 = scmp.eq.s32.totalorder %s35, 3
      %p145 = por %p143, %p144
      %p146 = scmp.ne.s32.totalorder %s135, %s136
      %p147 = scmp.eq.s32.totalorder %s35, 0
      %p148 = por %p146, %p147
      %p149 = scmp.ne.s32.totalorder %s135, %s136
      %p150 = scmp.eq.s32.totalorder %s36, 3
      %p151 = por %p149, %p150
      %p153 = scmp.ne.s32.totalorder %s136, %s152
      %p154 = scmp.eq.s32.totalorder %s36, 0
      %p155 = por %p153, %p154
      %s156 = ssub.s32 %s37, %s49
      %s157 = ssub.s32 %s38, %s45
      %s158 = sor.u32 %s156, %s157
      %p159 = scmp.eq.s32.totalorder %s158, 0
      %s161 = sadd.s32 %s160, 1
      %s162 = scalar_select %p159, %s160, %s161
      %p165 = pneg %p159
      %p166 = scmp.eq.s32.totalorder %s30, 3
      %p167 = por %p165, %p166
      %p168 = scmp.ne.s32.totalorder %s160, %s163
      %p169 = scmp.eq.s32.totalorder %s30, 0
      %p170 = por %p168, %p169
      %p171 = scmp.ne.s32.totalorder %s160, %s163
      %p172 = scmp.eq.s32.totalorder %s35, 3
      %p173 = por %p171, %p172
      %p174 = scmp.ne.s32.totalorder %s163, %s164
      %p175 = scmp.eq.s32.totalorder %s35, 0
      %p176 = por %p174, %p175
      %p177 = scmp.ne.s32.totalorder %s163, %s164
      %p178 = scmp.eq.s32.totalorder %s36, 3
      %p179 = por %p177, %p178
      %p181 = scmp.ne.s32.totalorder %s164, %s180
      %p182 = scmp.eq.s32.totalorder %s36, 0
      %p183 = por %p181, %p182
      %s184 = ssub.s32 %s37, %s49
      %s185 = ssub.s32 %s38, %s45
      %s186 = sor.u32 %s184, %s185
      %p187 = scmp.eq.s32.totalorder %s186, 0
      %s189 = sadd.s32 %s188, 1
      %s190 = scalar_select %p187, %s188, %s189
      %p193 = pneg %p187
      %p194 = scmp.eq.s32.totalorder %s30, 3
      %p195 = por %p193, %p194
      %p196 = scmp.ne.s32.totalorder %s188, %s191
      %p197 = scmp.eq.s32.totalorder %s30, 0
      %p198 = por %p196, %p197
      %p199 = scmp.ne.s32.totalorder %s188, %s191
      %p200 = scmp.eq.s32.totalorder %s35, 3
      %p201 = por %p199, %p200
      %p202 = scmp.ne.s32.totalorder %s191, %s192
      %p203 = scmp.eq.s32.totalorder %s35, 0
      %p204 = por %p202, %p203
      %p205 = scmp.ne.s32.totalorder %s191, %s192
      %p206 = scmp.eq.s32.totalorder %s36, 3
      %p207 = por %p205, %p206
      %p209 = scmp.ne.s32.totalorder %s192, %s208
      %p210 = scmp.eq.s32.totalorder %s36, 0
      %p211 = por %p209, %p210
      %s213 = sadd.s32 %s212, 1
      %p216 = scmp.eq.s32.totalorder %s30, 3
      %p217 = scmp.ne.s32.totalorder %s212, %s214
      %p218 = scmp.eq.s32.totalorder %s30, 0
      %p219 = por %p217, %p218
      %p220 = scmp.ne.s32.totalorder %s212, %s214
      %p221 = scmp.eq.s32.totalorder %s35, 3
      %p222 = por %p220, %p221
      %p223 = scmp.ne.s32.totalorder %s214, %s215
      %p224 = scmp.eq.s32.totalorder %s35, 0
      %p225 = por %p223, %p224
      %p226 = scmp.ne.s32.totalorder %s214, %s215
      %p227 = scmp.eq.s32.totalorder %s36, 3
      %p228 = por %p226, %p227
      %p230 = scmp.ne.s32.totalorder %s215, %s229
      %p231 = scmp.eq.s32.totalorder %s36, 0
      %p232 = por %p230, %p231
      %s234 = sadd.s32 %s233, 1
      %p237 = scmp.eq.s32.totalorder %s30, 3
      %p238 = scmp.ne.s32.totalorder %s233, %s235
      %p239 = scmp.eq.s32.totalorder %s30, 0
      %p240 = por %p238, %p239
      %p241 = scmp.ne.s32.totalorder %s233, %s235
      %p242 = scmp.eq.s32.totalorder %s35, 3
      %p243 = por %p241, %p242
      %p244 = scmp.ne.s32.totalorder %s235, %s236
      %p245 = scmp.eq.s32.totalorder %s35, 0
      %p246 = por %p244, %p245
      %p247 = scmp.ne.s32.totalorder %s235, %s236
      %p248 = scmp.eq.s32.totalorder %s36, 3
      %p249 = por %p247, %p248
      %p251 = scmp.ne.s32.totalorder %s236, %s250
      %p252 = scmp.eq.s32.totalorder %s36, 0
      %p253 = por %p251, %p252
      %s255 = sadd.s32 %s254, 1
      %p258 = scmp.eq.s32.totalorder %s30, 3
      %p259 = scmp.ne.s32.totalorder %s254, %s256
      %p260 = scmp.eq.s32.totalorder %s30, 0
      %p261 = por %p259, %p260
      %p262 = scmp.ne.s32.totalorder %s254, %s256
      %p263 = scmp.eq.s32.totalorder %s35, 3
      %p264 = por %p262, %p263
      %p265 = scmp.ne.s32.totalorder %s256, %s257
      %p266 = scmp.eq.s32.totalorder %s35, 0
      %p267 = por %p265, %p266
      %p268 = scmp.ne.s32.totalorder %s256, %s257
      %p269 = scmp.eq.s32.totalorder %s36, 3
      %p270 = por %p268, %p269
      %p272 = scmp.ne.s32.totalorder %s257, %s271
      %p273 = scmp.eq.s32.totalorder %s36, 0
      %p274 = por %p272, %p273
      %s276 = sadd.s32 %s275, 1
      %p279 = scmp.eq.s32.totalorder %s30, 3
      %p280 = scmp.ne.s32.totalorder %s275, %s277
      %p281 = scmp.eq.s32.totalorder %s30, 0
      %p282 = por %p280, %p281
      %p283 = scmp.ne.s32.totalorder %s275, %s277
      %p284 = scmp.eq.s32.totalorder %s35, 3
      %p285 = por %p283, %p284
      %p286 = scmp.ne.s32.totalorder %s277, %s278
      %p287 = scmp.eq.s32.totalorder %s35, 0
      %p288 = por %p286, %p287
      %p289 = scmp.ne.s32.totalorder %s277, %s278
      %p290 = scmp.eq.s32.totalorder %s36, 3
      %p291 = por %p289, %p290
      %p293 = scmp.ne.s32.totalorder %s278, %s292
      %p294 = scmp.eq.s32.totalorder %s36, 0
      %p295 = por %p293, %p294
      %s297 = sadd.s32 %s296, 1
      %p300 = scmp.eq.s32.totalorder %s30, 3
      %p301 = scmp.ne.s32.totalorder %s296, %s298
      %p302 = scmp.eq.s32.totalorder %s30, 0
      %p303 = por %p301, %p302
      %p304 = scmp.ne.s32.totalorder %s296, %s298
      %p305 = scmp.eq.s32.totalorder %s35, 3
      %p306 = por %p304, %p305
      %p307 = scmp.ne.s32.totalorder %s298, %s299
      %p308 = scmp.eq.s32.totalorder %s35, 0
      %p309 = por %p307, %p308
      %p310 = scmp.ne.s32.totalorder %s298, %s299
      %p311 = scmp.eq.s32.totalorder %s36, 3
      %p312 = por %p310, %p311
      %p314 = scmp.ne.s32.totalorder %s299, %s313
      %p315 = scmp.eq.s32.totalorder %s36, 0
      %p316 = por %p314, %p315
      %s318 = sadd.s32 %s317, 1
      %p321 = scmp.eq.s32.totalorder %s30, 3
      %p322 = scmp.ne.s32.totalorder %s317, %s319
      %p323 = scmp.eq.s32.totalorder %s30, 0
      %p324 = por %p322, %p323
      %p325 = scmp.ne.s32.totalorder %s317, %s319
      %p326 = scmp.eq.s32.totalorder %s35, 3
      %p327 = por %p325, %p326
      %p328 = scmp.ne.s32.totalorder %s319, %s320
      %p329 = scmp.eq.s32.totalorder %s35, 0
      %p330 = por %p328, %p329
      %p331 = scmp.ne.s32.totalorder %s319, %s320
      %p332 = scmp.eq.s32.totalorder %s36, 3
      %p333 = por %p331, %p332
      %p335 = scmp.ne.s32.totalorder %s320, %s334
      %p336 = scmp.eq.s32.totalorder %s36, 0
      %p337 = por %p335, %p336
      %s339 = sadd.s32 %s338, 1
      %p342 = scmp.eq.s32.totalorder %s30, 3
      %p343 = scmp.ne.s32.totalorder %s338, %s340
      %p344 = scmp.eq.s32.totalorder %s30, 0
      %p345 = por %p343, %p344
      %p346 = scmp.ne.s32.totalorder %s338, %s340
      %p347 = scmp.eq.s32.totalorder %s35, 3
      %p348 = por %p346, %p347
      %p349 = scmp.ne.s32.totalorder %s340, %s341
      %p350 = scmp.eq.s32.totalorder %s35, 0
      %p351 = por %p349, %p350
      %p352 = scmp.ne.s32.totalorder %s340, %s341
      %p353 = scmp.eq.s32.totalorder %s36, 3
      %p354 = por %p352, %p353
      %p356 = scmp.ne.s32.totalorder %s341, %s355
      %p357 = scmp.eq.s32.totalorder %s36, 0
      %p358 = por %p356, %p357
      %s360 = sadd.s32 %s359, 1
      %p363 = scmp.eq.s32.totalorder %s30, 3
      %p364 = scmp.ne.s32.totalorder %s359, %s361
      %p365 = scmp.eq.s32.totalorder %s30, 0
      %p366 = por %p364, %p365
      %p367 = scmp.ne.s32.totalorder %s359, %s361
      %p368 = scmp.eq.s32.totalorder %s35, 3
      %p369 = por %p367, %p368
      %p370 = scmp.ne.s32.totalorder %s361, %s362
      %p371 = scmp.eq.s32.totalorder %s35, 0
      %p372 = por %p370, %p371
      %p373 = scmp.ne.s32.totalorder %s361, %s362
      %p374 = scmp.eq.s32.totalorder %s36, 3
      %p375 = por %p373, %p374
      %p377 = scmp.ne.s32.totalorder %s362, %s376
      %p378 = scmp.eq.s32.totalorder %s36, 0
      %p379 = por %p377, %p378
      %s381 = sadd.s32 %s380, 1
      %p384 = scmp.eq.s32.totalorder %s30, 3
      %p385 = scmp.ne.s32.totalorder %s380, %s382
      %p386 = scmp.eq.s32.totalorder %s30, 0
      %p387 = por %p385, %p386
      %p388 = scmp.ne.s32.totalorder %s380, %s382
      %p389 = scmp.eq.s32.totalorder %s35, 3
      %p390 = por %p388, %p389
      %p391 = scmp.ne.s32.totalorder %s382, %s383
      %p392 = scmp.eq.s32.totalorder %s35, 0
      %p393 = por %p391, %p392
      %p394 = scmp.ne.s32.totalorder %s382, %s383
      %p395 = scmp.eq.s32.totalorder %s36, 3
      %p396 = por %p394, %p395
      %p398 = scmp.ne.s32.totalorder %s383, %s397
      %p399 = scmp.eq.s32.totalorder %s36, 0
      %p400 = por %p398, %p399
      %s402 = sadd.s32 %s401, 1
      %p405 = scmp.eq.s32.totalorder %s30, 3
      %p406 = scmp.ne.s32.totalorder %s401, %s403
      %p407 = scmp.eq.s32.totalorder %s30, 0
      %p408 = por %p406, %p407
      %p409 = scmp.ne.s32.totalorder %s401, %s403
      %p410 = scmp.eq.s32.totalorder %s35, 3
      %p411 = por %p409, %p410
      %p412 = scmp.ne.s32.totalorder %s403, %s404
      %p413 = scmp.eq.s32.totalorder %s35, 0
      %p414 = por %p412, %p413
      %p415 = scmp.ne.s32.totalorder %s403, %s404
      %p416 = scmp.eq.s32.totalorder %s36, 3
      %p417 = por %p415, %p416
      %p419 = scmp.ne.s32.totalorder %s404, %s418
      %p420 = scmp.eq.s32.totalorder %s36, 0
      %p421 = por %p419, %p420
      %s422 = ssub.s32 %s37, %s49
      %s423 = ssub.s32 %s38, %s45
      %s424 = sor.u32 %s422, %s423
      %p425 = scmp.eq.s32.totalorder %s424, 0
      %s427 = sadd.s32 %s426, 1
      %s428 = scalar_select %p425, %s426, %s427
      %p431 = pneg %p425
      %p432 = scmp.eq.s32.totalorder %s30, 3
      %p433 = por %p431, %p432
      %p434 = scmp.ne.s32.totalorder %s426, %s429
      %p435 = scmp.eq.s32.totalorder %s30, 0
      %p436 = por %p434, %p435
      %p437 = scmp.ne.s32.totalorder %s426, %s429
      %p438 = scmp.eq.s32.totalorder %s35, 3
      %p439 = por %p437, %p438
      %p440 = scmp.ne.s32.totalorder %s429, %s430
      %p441 = scmp.eq.s32.totalorder %s35, 0
      %p442 = por %p440, %p441
      %p443 = scmp.ne.s32.totalorder %s429, %s430
      %p444 = scmp.eq.s32.totalorder %s36, 3
      %p445 = por %p443, %p444
      %p447 = scmp.ne.s32.totalorder %s430, %s446
      %p448 = scmp.eq.s32.totalorder %s36, 0
      %p449 = por %p447, %p448
      %s450 = ssub.s32 %s37, %s49
      %s451 = ssub.s32 %s38, %s45
      %s452 = sor.u32 %s450, %s451
      %p453 = scmp.eq.s32.totalorder %s452, 0
      %s455 = sadd.s32 %s454, 1
      %s456 = scalar_select %p453, %s454, %s455
      %p459 = pneg %p453
      %p460 = scmp.eq.s32.totalorder %s30, 3
      %p461 = por %p459, %p460
      %p462 = scmp.ne.s32.totalorder %s454, %s457
      %p463 = scmp.eq.s32.totalorder %s30, 0
      %p464 = por %p462, %p463
      %p465 = scmp.ne.s32.totalorder %s454, %s457
      %p466 = scmp.eq.s32.totalorder %s35, 3
      %p467 = por %p465, %p466
      %p468 = scmp.ne.s32.totalorder %s457, %s458
      %p469 = scmp.eq.s32.totalorder %s35, 0
      %p470 = por %p468, %p469
      %p471 = scmp.ne.s32.totalorder %s457, %s458
      %p472 = scmp.eq.s32.totalorder %s36, 3
      %p473 = por %p471, %p472
      %p475 = scmp.ne.s32.totalorder %s458, %s474
      %p476 = scmp.eq.s32.totalorder %s36, 0
      %p477 = por %p475, %p476
      %p478 = scmp.le.s32.totalorder 1, %s30
      %p479 = scmp.lt.s32.totalorder %s30, 5
      %p480 = pnand %p478, %p479
      %p481 = pneg %p480
      // Predicated region
      $region9: #{tpu_custom_call.1} parent=5 // pred_check
        _
      $region10: #{tpu_custom_call.1} parent=5 // pred_check_branch
        %483 = sbr.rel (%p480) target = $region12
      $region11: #{tpu_custom_call.1} parent=5 // pred_region
        %s484 = ssub.s32 %s30, 1
        // Predicated region
        $region13: #{tpu_custom_call.1} parent=11 // pred_check
          %p485 = pneg %p225
        $region14: #{tpu_custom_call.1} parent=11 // pred_check_branch
          %487 = sbr.rel (%p485) target = $region16
        $region15: #{tpu_custom_call.1} parent=11 // pred_region
          _
        $region16: #{tpu_custom_call.1} parent=11 // pred_fallthru
          _
        // Predicated region
        $region17: #{tpu_custom_call.1} parent=11 // pred_check
          %p488 = pneg %p246
        $region18: #{tpu_custom_call.1} parent=11 // pred_check_branch
          %490 = sbr.rel (%p488) target = $region20
        $region19: #{tpu_custom_call.1} parent=11 // pred_region
          _
        $region20: #{tpu_custom_call.1} parent=11 // pred_fallthru
          _
        // Predicated region
        $region21: #{tpu_custom_call.1} parent=11 // pred_check
          %p491 = pneg %p267
        $region22: #{tpu_custom_call.1} parent=11 // pred_check_branch
          %493 = sbr.rel (%p491) target = $region24
        $region23: #{tpu_custom_call.1} parent=11 // pred_region
          _
        $region24: #{tpu_custom_call.1} parent=11 // pred_fallthru
          _
        // Predicated region
        $region25: #{tpu_custom_call.1} parent=11 // pred_check
          %p494 = pneg %p288
        $region26: #{tpu_custom_call.1} parent=11 // pred_check_branch
          %496 = sbr.rel (%p494) target = $region28
        $region27: #{tpu_custom_call.1} parent=11 // pred_region
          _
        $region28: #{tpu_custom_call.1} parent=11 // pred_fallthru
          _
        // Predicated region
        $region29: #{tpu_custom_call.1} parent=11 // pred_check
          %p497 = pneg %p309
        $region30: #{tpu_custom_call.1} parent=11 // pred_check_branch
          %499 = sbr.rel (%p497) target = $region32
        $region31: #{tpu_custom_call.1} parent=11 // pred_region
          _
        $region32: #{tpu_custom_call.1} parent=11 // pred_fallthru
          _
        // Predicated region
        $region33: #{tpu_custom_call.1} parent=11 // pred_check
          %p500 = pneg %p330
        $region34: #{tpu_custom_call.1} parent=11 // pred_check_branch
          %502 = sbr.rel (%p500) target = $region36
        $region35: #{tpu_custom_call.1} parent=11 // pred_region
          _
        $region36: #{tpu_custom_call.1} parent=11 // pred_fallthru
          _
        // Predicated region
        $region37: #{tpu_custom_call.1} parent=11 // pred_check
          %p503 = pneg %p351
        $region38: #{tpu_custom_call.1} parent=11 // pred_check_branch
          %505 = sbr.rel (%p503) target = $region40
        $region39: #{tpu_custom_call.1} parent=11 // pred_region
          _
        $region40: #{tpu_custom_call.1} parent=11 // pred_fallthru
          _
        // Predicated region
        $region41: #{tpu_custom_call.1} parent=11 // pred_check
          %p506 = pneg %p372
        $region42: #{tpu_custom_call.1} parent=11 // pred_check_branch
          %508 = sbr.rel (%p506) target = $region44
        $region43: #{tpu_custom_call.1} parent=11 // pred_region
          _
        $region44: #{tpu_custom_call.1} parent=11 // pred_fallthru
          _
        // Predicated region
        $region45: #{tpu_custom_call.1} parent=11 // pred_check
          %p509 = pneg %p393
        $region46: #{tpu_custom_call.1} parent=11 // pred_check_branch
          %511 = sbr.rel (%p509) target = $region48
        $region47: #{tpu_custom_call.1} parent=11 // pred_region
          _
        $region48: #{tpu_custom_call.1} parent=11 // pred_fallthru
          _
        // Predicated region
        $region49: #{tpu_custom_call.1} parent=11 // pred_check
          %p512 = pneg %p414
        $region50: #{tpu_custom_call.1} parent=11 // pred_check_branch
          %514 = sbr.rel (%p512) target = $region52
        $region51: #{tpu_custom_call.1} parent=11 // pred_region
          _
        $region52: #{tpu_custom_call.1} parent=11 // pred_fallthru
          _
      $region12: #{tpu_custom_call.1} parent=5 // pred_fallthru
        _
      %p515 = scmp.lt.s32.totalorder %s30, 4
      // Predicated region
      $region53: #{tpu_custom_call.1} parent=5 // pred_check
        %p516 = pneg %p515
      $region54: #{tpu_custom_call.1} parent=5 // pred_check_branch
        %518 = sbr.rel (%p516) target = $region56
      $region55: #{tpu_custom_call.1} parent=5 // pred_region
        // Predicated region
        $region57: #{tpu_custom_call.1} parent=55 // pred_check
          %p519 = pneg %p64
        $region58: #{tpu_custom_call.1} parent=55 // pred_check_branch
          %521 = sbr.rel (%p519) target = $region60
        $region59: #{tpu_custom_call.1} parent=55 // pred_region
          %p522 = scmp.lt.s32.totalorder %s37, 1
          %s523 = scalar_select %p522, %s37, 1
          %p524 = scmp.lt.s32.totalorder %s38, 1
          %s525 = scalar_select %p524, %s38, 1
          %s526 = smul.addr %s523, 2
          %s527 = sadd.s32 %s525, %s526
          %s528 = smul.addr %s527, 4
          %s529 = scalar_lea.vmem %s0, %s528
        $region60: #{tpu_custom_call.1} parent=55 // pred_fallthru
          _
        // Predicated region
        $region61: #{tpu_custom_call.1} parent=55 // pred_check
          %p530 = pneg %p90
        $region62: #{tpu_custom_call.1} parent=55 // pred_check_branch
          %532 = sbr.rel (%p530) target = $region64
        $region63: #{tpu_custom_call.1} parent=55 // pred_region
          %p533 = scmp.lt.s32.totalorder %s37, 1
          %s534 = scalar_select %p533, %s37, 1
          %s535 = smul.addr %s534, 8
          %s536 = smul.addr %s535, 8
          %s537 = scalar_lea.vmem %s1, %s536
        $region64: #{tpu_custom_call.1} parent=55 // pred_fallthru
          _
        // Predicated region
        $region65: #{tpu_custom_call.1} parent=55 // pred_check
          %p538 = pneg %p116
        $region66: #{tpu_custom_call.1} parent=55 // pred_check_branch
          %540 = sbr.rel (%p538) target = $region68
        $region67: #{tpu_custom_call.1} parent=55 // pred_region
          %p541 = scmp.lt.s32.totalorder %s37, 1
          %s542 = scalar_select %p541, %s37, 1
          %s543 = smul.addr %s542, 4
          %s544 = scalar_lea.vmem %s2, %s543
        $region68: #{tpu_custom_call.1} parent=55 // pred_fallthru
          _
        // Predicated region
        $region69: #{tpu_custom_call.1} parent=55 // pred_check
          %p545 = pneg %p142
        $region70: #{tpu_custom_call.1} parent=55 // pred_check_branch
          %547 = sbr.rel (%p545) target = $region72
        $region71: #{tpu_custom_call.1} parent=55 // pred_region
          %p548 = scmp.lt.s32.totalorder %s37, 1
          %s549 = scalar_select %p548, %s37, 1
          %s550 = smul.addr %s549, 4
          %s551 = scalar_lea.vmem %s3, %s550
        $region72: #{tpu_custom_call.1} parent=55 // pred_fallthru
          _
        // Predicated region
        $region73: #{tpu_custom_call.1} parent=55 // pred_check
          %p552 = pneg %p170
        $region74: #{tpu_custom_call.1} parent=55 // pred_check_branch
          %554 = sbr.rel (%p552) target = $region76
        $region75: #{tpu_custom_call.1} parent=55 // pred_region
          %p555 = scmp.lt.s32.totalorder %s37, 1
          %s556 = scalar_select %p555, %s37, 1
          %p557 = scmp.lt.s32.totalorder %s38, 1
          %s558 = scalar_select %p557, %s38, 1
          %s559 = smul.addr %s556, 2
          %s560 = sadd.s32 %s558, %s559
          %s561 = smul.addr %s560, 2
          %s562 = scalar_lea.vmem %s4, %s561
        $region76: #{tpu_custom_call.1} parent=55 // pred_fallthru
          _
        // Predicated region
        $region77: #{tpu_custom_call.1} parent=55 // pred_check
          %p563 = pneg %p198
        $region78: #{tpu_custom_call.1} parent=55 // pred_check_branch
          %565 = sbr.rel (%p563) target = $region80
        $region79: #{tpu_custom_call.1} parent=55 // pred_region
          %p566 = scmp.lt.s32.totalorder %s37, 1
          %s567 = scalar_select %p566, %s37, 1
          %p568 = scmp.lt.s32.totalorder %s38, 1
          %s569 = scalar_select %p568, %s38, 1
          %s570 = smul.addr %s567, 2
          %s571 = sadd.s32 %s569, %s570
          %s572 = smul.addr %s571, 2
          %s573 = scalar_lea.vmem %s5, %s572
        $region80: #{tpu_custom_call.1} parent=55 // pred_fallthru
          _
      $region56: #{tpu_custom_call.1} parent=5 // pred_fallthru
        _
      %p574 = scmp.le.s32.totalorder 1, %s30
      %p575 = scmp.lt.s32.totalorder %s30, 5
      %p576 = pnand %p574, %p575
      %p577 = pneg %p576
      // Predicated region
      $region81: #{tpu_custom_call.1} parent=5 // pred_check
        _
      $region82: #{tpu_custom_call.1} parent=5 // pred_check_branch
        %579 = sbr.rel (%p576) target = $region84
      $region83: #{tpu_custom_call.1} parent=5 // pred_region
        %s580 = ssub.s32 %s30, 1
        %p581 = scmp.lt.s32.totalorder %s39, 1
        %s582 = scalar_select %p581, %s39, 1
        %p583 = scmp.lt.s32.totalorder %s40, 1
        %s584 = scalar_select %p583, %s40, 1
        %s585 = smul.addr %s582, 2
        %s586 = sadd.s32 %s584, %s585
        %s587 = smul.addr %s586, 4
        %s588 = scalar_lea.vmem %s0, %s587
        %p589 = pneg %p70
        %p590 = pneg %p67
        %p591 = scmp.lt.s32.totalorder %s39, 1
        %s592 = scalar_select %p591, %s39, 1
        %s593 = smul.addr %s592, 8
        %s594 = smul.addr %s593, 8
        %s595 = scalar_lea.vmem %s1, %s594
        %p596 = pneg %p96
        %p597 = pneg %p93
        %p598 = scmp.lt.s32.totalorder %s39, 1
        %s599 = scalar_select %p598, %s39, 1
        %s600 = smul.addr %s599, 4
        %s601 = scalar_lea.vmem %s2, %s600
        %p602 = pneg %p122
        %p603 = pneg %p119
        %p604 = scmp.lt.s32.totalorder %s39, 1
        %s605 = scalar_select %p604, %s39, 1
        %s606 = smul.addr %s605, 4
        %s607 = scalar_lea.vmem %s3, %s606
        %p608 = pneg %p148
        %p609 = pneg %p145
        %p610 = scmp.lt.s32.totalorder %s39, 1
        %s611 = scalar_select %p610, %s39, 1
        %p612 = scmp.lt.s32.totalorder %s40, 1
        %s613 = scalar_select %p612, %s40, 1
        %s614 = smul.addr %s611, 2
        %s615 = sadd.s32 %s613, %s614
        %s616 = smul.addr %s615, 2
        %s617 = scalar_lea.vmem %s4, %s616
        %p618 = pneg %p176
        %p619 = pneg %p173
        %p620 = scmp.lt.s32.totalorder %s39, 1
        %s621 = scalar_select %p620, %s39, 1
        %p622 = scmp.lt.s32.totalorder %s40, 1
        %s623 = scalar_select %p622, %s40, 1
        %s624 = smul.addr %s621, 2
        %s625 = sadd.s32 %s623, %s624
        %s626 = smul.addr %s625, 2
        %s627 = scalar_lea.vmem %s5, %s626
        %p628 = pneg %p204
        %p629 = pneg %p201
        %p630 = pneg %p225
        %p631 = pneg %p222
        %p632 = pneg %p246
        %p633 = pneg %p243
        %p634 = pneg %p267
        %p635 = pneg %p264
        %p636 = pneg %p288
        %p637 = pneg %p285
        %p638 = pneg %p309
        %p639 = pneg %p306
        %p640 = pneg %p330
        %p641 = pneg %p327
        %p642 = pneg %p351
        %p643 = pneg %p348
        %p644 = pneg %p372
        %p645 = pneg %p369
        %p646 = pneg %p393
        %p647 = pneg %p390
        %p648 = pneg %p414
        %p649 = pneg %p411
        %p650 = pneg %p442
        %p651 = pneg %p439
        %s652 = sand.u32 %s429, 1
        %s653 = scalar_lea.sflag [#allocation3], %s652
        %s654 = sand.u32 %s429, 1
        %s655 = smul.addr %s654, 8
        %s656 = scalar_lea.vmem [#allocation2], %s655
        %p657 = pneg %p470
        %p658 = pneg %p467
        %s659 = sand.u32 %s457, 1
        %s660 = scalar_lea.sflag [#allocation5], %s659
        %s661 = sand.u32 %s457, 1
        %s662 = smul.addr %s661, 8
        %s663 = scalar_lea.vmem [#allocation4], %s662
        %p664 = scmp.lt.s32.totalorder %s39, 1
        %s665 = scalar_select %p664, %s39, 1
        %p666 = scmp.lt.s32.totalorder %s40, 1
        %s667 = scalar_select %p666, %s40, 1
        %s668 = smul.addr %s665, 2
        %s669 = sadd.s32 %s667, %s668
        %s670 = smul.addr %s669, 4
        %s671 = scalar_lea.vmem %s0, %s670
        %p672 = scmp.lt.s32.totalorder %s39, 1
        %s673 = scalar_select %p672, %s39, 1
        %s674 = smul.addr %s673, 8
        %s675 = smul.addr %s674, 8
        %s676 = scalar_lea.vmem %s1, %s675
        %p677 = scmp.lt.s32.totalorder %s39, 1
        %s678 = scalar_select %p677, %s39, 1
        %s679 = smul.addr %s678, 4
        %s680 = scalar_lea.vmem %s2, %s679
        %p681 = scmp.lt.s32.totalorder %s39, 1
        %s682 = scalar_select %p681, %s39, 1
        %s683 = smul.addr %s682, 4
        %s684 = scalar_lea.vmem %s3, %s683
        %p685 = scmp.lt.s32.totalorder %s39, 1
        %s686 = scalar_select %p685, %s39, 1
        %p687 = scmp.lt.s32.totalorder %s40, 1
        %s688 = scalar_select %p687, %s40, 1
        %s689 = smul.addr %s686, 2
        %s690 = sadd.s32 %s688, %s689
        %s691 = smul.addr %s690, 2
        %s692 = scalar_lea.vmem %s4, %s691
        %p693 = scmp.lt.s32.totalorder %s39, 1
        %s694 = scalar_select %p693, %s39, 1
        %p695 = scmp.lt.s32.totalorder %s40, 1
        %s696 = scalar_select %p695, %s40, 1
        %s697 = smul.addr %s694, 2
        %s698 = sadd.s32 %s696, %s697
        %s699 = smul.addr %s698, 2
        %s700 = scalar_lea.vmem %s5, %s699
        %v702 = vld [vmem:[%s671] sm:$0x7]
        %v703 = vld [vmem:[%s676] sm:$0xff]
        %v704 = vld [vmem:[%s676 + $0x8] sm:$0xff]
        %v705 = vld [vmem:[%s676 + $0x10] sm:$0xff]
        %v706 = vld [vmem:[%s676 + $0x18] sm:$0xff]
        %v707 = vld [vmem:[%s676 + $0x20] sm:$0xff]
        %v708 = vld [vmem:[%s676 + $0x28] sm:$0xff]
        %v709 = vld [vmem:[%s676 + $0x30] sm:$0xff]
        %v710 = vld [vmem:[%s676 + $0x38] sm:$0xff]
        %v711 = vld [vmem:[%s680] sm:$0x7]
        %v712 = vld [vmem:[%s684] sm:$0x7]
        %v713 = vld [vmem:[%s692] sm:$0x3]
        %v714 = vld [vmem:[%s700] sm:$0x3]
        %v715 = vld [vmem:[%s6] sm:$0xf]
        %v716 = vld [vmem:[%s6 + $0x4] sm:$0xf]
        %v717 = vld [vmem:[%s7] sm:$0xf]
        %v718 = vld [vmem:[%s7 + $0x4] sm:$0xf]
        %v719 = vld [vmem:[%s8] sm:$0xff]
        %v720 = vld [vmem:[%s8 + $0x8] sm:$0xff]
        %v721 = vld [vmem:[%s9] sm:$0xf]
        %v722 = vld [vmem:[%s10] sm:$0xff]
        %v723 = vld [vmem:[%s11] sm:$0xf]
        %v724 = vld [vmem:[%s11 + $0x4] sm:$0xf]
        %v725 = vld [vmem:[%s12] sm:$0xf]
        %v726 = vld [vmem:[%s12 + $0x4] sm:$0xf]
        %v727 = vld [vmem:[%s13] sm:$0xff]
        %v728 = vld [vmem:[%s13 + $0x8] sm:$0xff]
        %v729 = vld [vmem:[%s14] sm:$0xf]
        %v730 = vld [vmem:[%s15] sm:$0xff]
        %vm731 = vcmask 23552
        %v733 = vsel %vm731, %v703, 0
        %v736 = vsel %vm731, %v704, 0
        %v739 = vsel %vm731, %v705, 0
        %v742 = vsel %vm731, %v706, 0
        %v745 = vsel %vm731, %v707, 0
        %v748 = vsel %vm731, %v708, 0
        %v751 = vsel %vm731, %v709, 0
        %v754 = vsel %vm731, %v710, 0
        %vm756 = vcmask 1042432
        %v758 = vsel %vm756, %v702, 0
        %760 = vmatprep.subr.mxu0 0.0
        %761 = vmatpush1.msra.mxu0 %v758
        %762 = vmatprep.subr.mxu0 0.0
        %763 = vmatpush1.msra.mxu0 0.0
        %764 = vmatprep.subr.mxu0 0.0
        %765 = vmatpush1.msra.mxu0 0.0
        %766 = vmatprep.subr.mxu0 0.0
        %767 = vmatpush1.msra.mxu0 0.0
        %768 = vmatprep.subr.mxu0 0.0
        %769 = vmatpush1.msra.mxu0 0.0
        %770 = vmatprep.subr.mxu0 0.0
        %771 = vmatpush1.msra.mxu0 0.0
        %772 = vmatprep.subr.mxu0 0.0
        %773 = vmatpush1.msra.mxu0 0.0
        %774 = vmatprep.subr.mxu0 0.0
        %775 = vmatpush1.msra.mxu0 0.0
        %776 = vmatprep.subr.mxu0 0.0
        %777 = vmatpush1.msra.mxu0 0.0
        %778 = vmatprep.subr.mxu0 0.0
        %779 = vmatpush1.msra.mxu0 0.0
        %780 = vmatprep.subr.mxu0 0.0
        %781 = vmatpush1.msra.mxu0 0.0
        %782 = vmatprep.subr.mxu0 0.0
        %783 = vmatpush1.msra.mxu0 0.0
        %784 = vmatprep.subr.mxu0 0.0
        %785 = vmatpush1.msra.mxu0 0.0
        %786 = vmatprep.subr.mxu0 0.0
        %787 = vmatpush1.msra.mxu0 0.0
        %788 = vmatprep.subr.mxu0 0.0
        %789 = vmatpush1.msra.mxu0 0.0
        %790 = vmatprep.subr.mxu0 0.0
        %791 = vmatpush1.msra.mxu0 0.0
        %792 = vmatprep.subr.mxu0 0.0
        %793 = vmatpush1.msra.mxu0 0.0
        %794 = vmatprep.subr.mxu0 0.0
        %795 = vmatpush1.msra.mxu0 0.0
        %796 = vmatprep.subr.mxu0 0.0
        %797 = vmatpush1.msra.mxu0 0.0
        %798 = vmatprep.subr.mxu0 0.0
        %799 = vmatpush1.msra.mxu0 0.0
        %800 = vmatprep.subr.mxu0 0.0
        %801 = vmatpush1.msra.mxu0 0.0
        %802 = vmatprep.subr.mxu0 0.0
        %803 = vmatpush1.msra.mxu0 0.0
        %804 = vmatprep.subr.mxu0 0.0
        %805 = vmatpush1.msra.mxu0 0.0
        %806 = vmatprep.subr.mxu0 0.0
        %807 = vmatpush1.msra.mxu0 0.0
        %808 = vmatprep.subr.mxu0 0.0
        %809 = vmatpush1.msra.mxu0 0.0
        %810 = vmatprep.subr.mxu0 0.0
        %811 = vmatpush1.msra.mxu0 0.0
        %812 = vmatprep.subr.mxu0 0.0
        %813 = vmatpush1.msra.mxu0 0.0
        %814 = vmatprep.subr.mxu0 0.0
        %815 = vmatpush1.msra.mxu0 0.0
        %816 = vmatprep.subr.mxu0 0.0
        %817 = vmatpush1.msra.mxu0 0.0
        %818 = vmatprep.subr.mxu0 0.0
        %819 = vmatpush1.msra.mxu0 0.0
        %820 = vmatprep.subr.mxu0 0.0
        %821 = vmatpush1.msra.mxu0 0.0
        %822 = vmatprep.subr.mxu0 0.0
        %823 = vmatpush1.msra.mxu0 0.0
        %824 = vmatprep.mubr.f32.mxu0 0.0
        %825 = vmatmul.mubr.f32.gmra.mrb[0].mxu0 %v733
        %v826 = vpop.f32.mrb[0].mxu0
        %v827 = vadd.f32 0.0, %v826
        %v828 = vpop.f32.mrb[0].mxu0
        %829 = vmatprep.mubr.f32.mxu0 0.0
        %830 = vmatmul.mubr.f32.gmra.mrb[0].mxu0 %v736
        %v831 = vpop.f32.mrb[0].mxu0
        %v832 = vadd.f32 0.0, %v831
        %v833 = vpop.f32.mrb[0].mxu0
        %834 = vmatprep.mubr.f32.mxu0 0.0
        %835 = vmatmul.mubr.f32.gmra.mrb[0].mxu0 %v739
        %v836 = vpop.f32.mrb[0].mxu0
        %v837 = vadd.f32 0.0, %v836
        %v838 = vpop.f32.mrb[0].mxu0
        %839 = vmatprep.mubr.f32.mxu0 0.0
        %840 = vmatmul.mubr.f32.gmra.mrb[0].mxu0 %v742
        %v841 = vpop.f32.mrb[0].mxu0
        %v842 = vadd.f32 0.0, %v841
        %v843 = vpop.f32.mrb[0].mxu0
        %844 = vmatprep.mubr.f32.mxu0 0.0
        %845 = vmatmul.mubr.f32.gmra.mrb[0].mxu0 %v745
        %v846 = vpop.f32.mrb[0].mxu0
        %v847 = vadd.f32 0.0, %v846
        %v848 = vpop.f32.mrb[0].mxu0
        %849 = vmatprep.mubr.f32.mxu0 0.0
        %850 = vmatmul.mubr.f32.gmra.mrb[0].mxu0 %v748
        %v851 = vpop.f32.mrb[0].mxu0
        %v852 = vadd.f32 0.0, %v851
        %v853 = vpop.f32.mrb[0].mxu0
        %854 = vmatprep.mubr.f32.mxu0 0.0
        %855 = vmatmul.mubr.f32.gmra.mrb[0].mxu0 %v751
        %v856 = vpop.f32.mrb[0].mxu0
        %v857 = vadd.f32 0.0, %v856
        %v858 = vpop.f32.mrb[0].mxu0
        %859 = vmatprep.mubr.f32.mxu0 0.0
        %860 = vmatmul.mubr.f32.gmra.mrb[0].mxu0 %v754
        %v861 = vpop.f32.mrb[0].mxu0
        %v862 = vadd.f32 0.0, %v861
        %v863 = vpop.f32.mrb[0].mxu0
        %864 = vdwg.mxu0
        %v865 = vmul.f32 %v703, %v703
        %v866 = vmul.f32 %v704, %v704
        %v867 = vmul.f32 %v705, %v705
        %v868 = vmul.f32 %v706, %v706
        %v869 = vmul.f32 %v707, %v707
        %v870 = vmul.f32 %v708, %v708
        %v871 = vmul.f32 %v709, %v709
        %v872 = vmul.f32 %v710, %v710
        %v873 = vsel %vm731, %v865, 0.0
        %874 = vadd.xlane.f32.xlu0 %v873
        %v875 = vpop.xlane.xlu0 %874
        %v876 = vsel %vm731, %v866, 0.0
        %877 = vadd.xlane.f32.xlu0 %v876
        %v878 = vpop.xlane.xlu0 %877
        %v879 = vsel %vm731, %v867, 0.0
        %880 = vadd.xlane.f32.xlu0 %v879
        %v881 = vpop.xlane.xlu0 %880
        %v882 = vsel %vm731, %v868, 0.0
        %883 = vadd.xlane.f32.xlu0 %v882
        %v884 = vpop.xlane.xlu0 %883
        %v885 = vsel %vm731, %v869, 0.0
        %886 = vadd.xlane.f32.xlu0 %v885
        %v887 = vpop.xlane.xlu0 %886
        %v888 = vsel %vm731, %v870, 0.0
        %889 = vadd.xlane.f32.xlu0 %v888
        %v890 = vpop.xlane.xlu0 %889
        %v891 = vsel %vm731, %v871, 0.0
        %892 = vadd.xlane.f32.xlu0 %v891
        %v893 = vpop.xlane.xlu0 %892
        %v894 = vsel %vm731, %v872, 0.0
        %895 = vadd.xlane.f32.xlu0 %v894
        %v896 = vpop.xlane.xlu0 %895
        %v897 = vmul.f32 %v702, %v702
        %v898 = vsel %vm756, %v897, 0.0
        %v899 = vrot.slane %v898, 4
        %v900 = vadd.f32 %v898, %v899
        %v901 = vrot.slane %v900, 2
        %v902 = vadd.f32 %v900, %v901
        %v903 = vrot.slane %v902, 1
        %v904 = vadd.f32 %v902, %v903
        %v905 = vmul.f32 %v827, -2.0
        %v906 = vmul.f32 %v832, -2.0
        %v907 = vmul.f32 %v837, -2.0
        %v908 = vmul.f32 %v842, -2.0
        %v909 = vmul.f32 %v847, -2.0
        %v910 = vmul.f32 %v852, -2.0
        %v911 = vmul.f32 %v857, -2.0
        %v912 = vmul.f32 %v862, -2.0
        %v913 = vadd.f32 %v905, %v875
        %v914 = vadd.f32 %v906, %v878
        %v915 = vadd.f32 %v907, %v881
        %v916 = vadd.f32 %v908, %v884
        %v917 = vadd.f32 %v909, %v887
        %v918 = vadd.f32 %v910, %v890
        %v919 = vadd.f32 %v911, %v893
        %v920 = vadd.f32 %v912, %v896
        %v921 = vadd.f32 %v913, %v904
        %v922 = vadd.f32 %v914, %v904
        %v923 = vadd.f32 %v915, %v904
        %v924 = vadd.f32 %v916, %v904
        %v925 = vadd.f32 %v917, %v904
        %v926 = vadd.f32 %v918, %v904
        %v927 = vadd.f32 %v919, %v904
        %v928 = vadd.f32 %v920, %v904
        %v929 = vmin.f32 %v921, %v925
        %v930 = vmin.f32 %v922, %v926
        %v931 = vmin.f32 %v923, %v927
        %v932 = vmin.f32 %v924, %v928
        %v933 = vmin.f32 %v929, %v930
        %v934 = vmin.f32 %v931, %v932
        %v935 = vmin.f32 %v933, %v934
        %v936 = vrot.slane %v935, 4
        %v937 = vmin.f32 %v935, %v936
        %v938 = vrot.slane %v937, 2
        %v939 = vmin.f32 %v937, %v938
        %v940 = vrot.slane %v939, 1
        %v941 = vmin.f32 %v939, %v940
        %v942 = vlaneseq
        %v943 = vshrl.u32 %v942, 7
        %v944 = vadd.s32 %v943, 8
        %v945 = vadd.s32 %v943, 16
        %v946 = vadd.s32 %v943, 24
        %v947 = vadd.s32 %v943, 32
        %v948 = vadd.s32 %v943, 40
        %v949 = vadd.s32 %v943, 48
        %v950 = vadd.s32 %v943, 56
        %vm951 = vcmp.eq.f32.partialorder %v921, %v941
        %vm952 = vcmp.eq.f32.partialorder %v922, %v941
        %vm953 = vcmp.eq.f32.partialorder %v923, %v941
        %vm954 = vcmp.eq.f32.partialorder %v924, %v941
        %vm955 = vcmp.eq.f32.partialorder %v925, %v941
        %vm956 = vcmp.eq.f32.partialorder %v926, %v941
        %vm957 = vcmp.eq.f32.partialorder %v927, %v941
        %vm958 = vcmp.eq.f32.partialorder %v928, %v941
        %v959 = vsel %vm951, %v943, 64
        %v960 = vsel %vm952, %v944, 64
        %v961 = vsel %vm953, %v945, 64
        %v962 = vsel %vm954, %v946, 64
        %v963 = vsel %vm955, %v947, 64
        %v964 = vsel %vm956, %v948, 64
        %v965 = vsel %vm957, %v949, 64
        %v966 = vsel %vm958, %v950, 64
        %vm967 = vcmp.lt.s32.totalorder %v959, %v963
        %v968 = vsel %vm967, %v959, %v963
        %vm969 = vcmp.lt.s32.totalorder %v960, %v964
        %v970 = vsel %vm969, %v960, %v964
        %vm971 = vcmp.lt.s32.totalorder %v961, %v965
        %v972 = vsel %vm971, %v961, %v965
        %vm973 = vcmp.lt.s32.totalorder %v962, %v966
        %v974 = vsel %vm973, %v962, %v966
        %vm975 = vcmp.lt.s32.totalorder %v968, %v970
        %v976 = vsel %vm975, %v968, %v970
        %vm977 = vcmp.lt.s32.totalorder %v972, %v974
        %v978 = vsel %vm977, %v972, %v974
        %vm979 = vcmp.lt.s32.totalorder %v976, %v978
        %v980 = vsel %vm979, %v976, %v978
        %v981 = vrot.slane %v980, 4
        %vm982 = vcmp.lt.s32.totalorder %v980, %v981
        %v983 = vsel %vm982, %v980, %v981
        %v984 = vrot.slane %v983, 2
        %vm985 = vcmp.lt.s32.totalorder %v983, %v984
        %v986 = vsel %vm985, %v983, %v984
        %v987 = vrot.slane %v986, 1
        %vm988 = vcmp.lt.s32.totalorder %v986, %v987
        %v989 = vsel %vm988, %v986, %v987
        %vm990 = vcmp.eq.s32.totalorder %v943, %v989
        %vm991 = vcmp.eq.s32.totalorder %v944, %v989
        %vm992 = vcmp.eq.s32.totalorder %v945, %v989
        %vm993 = vcmp.eq.s32.totalorder %v946, %v989
        %vm994 = vcmp.eq.s32.totalorder %v947, %v989
        %vm995 = vcmp.eq.s32.totalorder %v948, %v989
        %vm996 = vcmp.eq.s32.totalorder %v949, %v989
        %vm997 = vcmp.eq.s32.totalorder %v950, %v989
        %v998 = vmax.f32 %v941, 0.0
        %v999 = vadd.f32 %v998, 1e-08
        %v1000 = vrcp.pop %v999
        %v1001 = vmul.f32 1.0, %v1000
        %v1002 = vsel %vm990, 1, 0
        %v1003 = vsel %vm991, 1, 0
        %v1004 = vsel %vm992, 1, 0
        %v1005 = vsel %vm993, 1, 0
        %v1006 = vsel %vm994, 1, 0
        %v1007 = vsel %vm995, 1, 0
        %v1008 = vsel %vm996, 1, 0
        %v1009 = vsel %vm997, 1, 0
        %v1010 = vcvt.s32.f32 %v1002
        %v1011 = vcvt.s32.f32 %v1003
        %v1012 = vcvt.s32.f32 %v1004
        %v1013 = vcvt.s32.f32 %v1005
        %v1014 = vcvt.s32.f32 %v1006
        %v1015 = vcvt.s32.f32 %v1007
        %v1016 = vcvt.s32.f32 %v1008
        %v1017 = vcvt.s32.f32 %v1009
        %v1018 = vmul.f32 %v1010, %v1001
        %v1019 = vmul.f32 %v1011, %v1001
        %v1020 = vmul.f32 %v1012, %v1001
        %v1021 = vmul.f32 %v1013, %v1001
        %v1022 = vmul.f32 %v1014, %v1001
        %v1023 = vmul.f32 %v1015, %v1001
        %v1024 = vmul.f32 %v1016, %v1001
        %v1025 = vmul.f32 %v1017, %v1001
        %v1026 = vadd.f32 %v1018, 0.0
        %v1027 = vadd.f32 %v1019, 0.0
        %v1028 = vadd.f32 %v1020, 0.0
        %v1029 = vadd.f32 %v1021, 0.0
        %v1030 = vadd.f32 %v1022, 0.0
        %v1031 = vadd.f32 %v1023, 0.0
        %v1032 = vadd.f32 %v1024, 0.0
        %v1033 = vadd.f32 %v1025, 0.0
        %v1034 = vadd.f32 %v1001, 0.0
        %v1035 = vsel %vm990, inf, %v921
        %v1036 = vsel %vm991, inf, %v922
        %v1037 = vsel %vm992, inf, %v923
        %v1038 = vsel %vm993, inf, %v924
        %v1039 = vsel %vm994, inf, %v925
        %v1040 = vsel %vm995, inf, %v926
        %v1041 = vsel %vm996, inf, %v927
        %v1042 = vsel %vm997, inf, %v928
        %v1043 = vmin.f32 %v1035, %v1039
        %v1044 = vmin.f32 %v1036, %v1040
        %v1045 = vmin.f32 %v1037, %v1041
        %v1046 = vmin.f32 %v1038, %v1042
        %v1047 = vmin.f32 %v1043, %v1044
        %v1048 = vmin.f32 %v1045, %v1046
        %v1049 = vmin.f32 %v1047, %v1048
        %v1050 = vrot.slane %v1049, 4
        %v1051 = vmin.f32 %v1049, %v1050
        %v1052 = vrot.slane %v1051, 2
        %v1053 = vmin.f32 %v1051, %v1052
        %v1054 = vrot.slane %v1053, 1
        %v1055 = vmin.f32 %v1053, %v1054
        %vm1056 = vcmp.eq.f32.partialorder %v1035, %v1055
        %vm1057 = vcmp.eq.f32.partialorder %v1036, %v1055
        %vm1058 = vcmp.eq.f32.partialorder %v1037, %v1055
        %vm1059 = vcmp.eq.f32.partialorder %v1038, %v1055
        %vm1060 = vcmp.eq.f32.partialorder %v1039, %v1055
        %vm1061 = vcmp.eq.f32.partialorder %v1040, %v1055
        %vm1062 = vcmp.eq.f32.partialorder %v1041, %v1055
        %vm1063 = vcmp.eq.f32.partialorder %v1042, %v1055
        %v1064 = vsel %vm1056, %v943, 64
        %v1065 = vsel %vm1057, %v944, 64
        %v1066 = vsel %vm1058, %v945, 64
        %v1067 = vsel %vm1059, %v946, 64
        %v1068 = vsel %vm1060, %v947, 64
        %v1069 = vsel %vm1061, %v948, 64
        %v1070 = vsel %vm1062, %v949, 64
        %v1071 = vsel %vm1063, %v950, 64
        %vm1072 = vcmp.lt.s32.totalorder %v1064, %v1068
        %v1073 = vsel %vm1072, %v1064, %v1068
        %vm1074 = vcmp.lt.s32.totalorder %v1065, %v1069
        %v1075 = vsel %vm1074, %v1065, %v1069
        %vm1076 = vcmp.lt.s32.totalorder %v1066, %v1070
        %v1077 = vsel %vm1076, %v1066, %v1070
        %vm1078 = vcmp.lt.s32.totalorder %v1067, %v1071
        %v1079 = vsel %vm1078, %v1067, %v1071
        %vm1080 = vcmp.lt.s32.totalorder %v1073, %v1075
        %v1081 = vsel %vm1080, %v1073, %v1075
        %vm1082 = vcmp.lt.s32.totalorder %v1077, %v1079
        %v1083 = vsel %vm1082, %v1077, %v1079
        %vm1084 = vcmp.lt.s32.totalorder %v1081, %v1083
        %v1085 = vsel %vm1084, %v1081, %v1083
        %v1086 = vrot.slane %v1085, 4
        %vm1087 = vcmp.lt.s32.totalorder %v1085, %v1086
        %v1088 = vsel %vm1087, %v1085, %v1086
        %v1089 = vrot.slane %v1088, 2
        %vm1090 = vcmp.lt.s32.totalorder %v1088, %v1089
        %v1091 = vsel %vm1090, %v1088, %v1089
        %v1092 = vrot.slane %v1091, 1
        %vm1093 = vcmp.lt.s32.totalorder %v1091, %v1092
        %v1094 = vsel %vm1093, %v1091, %v1092
        %vm1095 = vcmp.eq.s32.totalorder %v943, %v1094
        %vm1096 = vcmp.eq.s32.totalorder %v944, %v1094
        %vm1097 = vcmp.eq.s32.totalorder %v945, %v1094
        %vm1098 = vcmp.eq.s32.totalorder %v946, %v1094
        %vm1099 = vcmp.eq.s32.totalorder %v947, %v1094
        %vm1100 = vcmp.eq.s32.totalorder %v948, %v1094
        %vm1101 = vcmp.eq.s32.totalorder %v949, %v1094
        %vm1102 = vcmp.eq.s32.totalorder %v950, %v1094
        %v1103 = vmax.f32 %v1055, 0.0
        %v1104 = vadd.f32 %v1103, 1e-08
        %v1105 = vrcp.pop %v1104
        %v1106 = vmul.f32 1.0, %v1105
        %v1107 = vsel %vm1095, 1, 0
        %v1108 = vsel %vm1096, 1, 0
        %v1109 = vsel %vm1097, 1, 0
        %v1110 = vsel %vm1098, 1, 0
        %v1111 = vsel %vm1099, 1, 0
        %v1112 = vsel %vm1100, 1, 0
        %v1113 = vsel %vm1101, 1, 0
        %v1114 = vsel %vm1102, 1, 0
        %v1115 = vcvt.s32.f32 %v1107
        %v1116 = vcvt.s32.f32 %v1108
        %v1117 = vcvt.s32.f32 %v1109
        %v1118 = vcvt.s32.f32 %v1110
        %v1119 = vcvt.s32.f32 %v1111
        %v1120 = vcvt.s32.f32 %v1112
        %v1121 = vcvt.s32.f32 %v1113
        %v1122 = vcvt.s32.f32 %v1114
        %v1123 = vmul.f32 %v1115, %v1106
        %v1124 = vmul.f32 %v1116, %v1106
        %v1125 = vmul.f32 %v1117, %v1106
        %v1126 = vmul.f32 %v1118, %v1106
        %v1127 = vmul.f32 %v1119, %v1106
        %v1128 = vmul.f32 %v1120, %v1106
        %v1129 = vmul.f32 %v1121, %v1106
        %v1130 = vmul.f32 %v1122, %v1106
        %v1131 = vadd.f32 %v1026, %v1123
        %v1132 = vadd.f32 %v1027, %v1124
        %v1133 = vadd.f32 %v1028, %v1125
        %v1134 = vadd.f32 %v1029, %v1126
        %v1135 = vadd.f32 %v1030, %v1127
        %v1136 = vadd.f32 %v1031, %v1128
        %v1137 = vadd.f32 %v1032, %v1129
        %v1138 = vadd.f32 %v1033, %v1130
        %v1139 = vadd.f32 %v1034, %v1106
        %v1140 = vsel %vm1095, inf, %v1035
        %v1141 = vsel %vm1096, inf, %v1036
        %v1142 = vsel %vm1097, inf, %v1037
        %v1143 = vsel %vm1098, inf, %v1038
        %v1144 = vsel %vm1099, inf, %v1039
        %v1145 = vsel %vm1100, inf, %v1040
        %v1146 = vsel %vm1101, inf, %v1041
        %v1147 = vsel %vm1102, inf, %v1042
        %v1148 = vmin.f32 %v1140, %v1144
        %v1149 = vmin.f32 %v1141, %v1145
        %v1150 = vmin.f32 %v1142, %v1146
        %v1151 = vmin.f32 %v1143, %v1147
        %v1152 = vmin.f32 %v1148, %v1149
        %v1153 = vmin.f32 %v1150, %v1151
        %v1154 = vmin.f32 %v1152, %v1153
        %v1155 = vrot.slane %v1154, 4
        %v1156 = vmin.f32 %v1154, %v1155
        %v1157 = vrot.slane %v1156, 2
        %v1158 = vmin.f32 %v1156, %v1157
        %v1159 = vrot.slane %v1158, 1
        %v1160 = vmin.f32 %v1158, %v1159
        %vm1161 = vcmp.eq.f32.partialorder %v1140, %v1160
        %vm1162 = vcmp.eq.f32.partialorder %v1141, %v1160
        %vm1163 = vcmp.eq.f32.partialorder %v1142, %v1160
        %vm1164 = vcmp.eq.f32.partialorder %v1143, %v1160
        %vm1165 = vcmp.eq.f32.partialorder %v1144, %v1160
        %vm1166 = vcmp.eq.f32.partialorder %v1145, %v1160
        %vm1167 = vcmp.eq.f32.partialorder %v1146, %v1160
        %vm1168 = vcmp.eq.f32.partialorder %v1147, %v1160
        %v1169 = vsel %vm1161, %v943, 64
        %v1170 = vsel %vm1162, %v944, 64
        %v1171 = vsel %vm1163, %v945, 64
        %v1172 = vsel %vm1164, %v946, 64
        %v1173 = vsel %vm1165, %v947, 64
        %v1174 = vsel %vm1166, %v948, 64
        %v1175 = vsel %vm1167, %v949, 64
        %v1176 = vsel %vm1168, %v950, 64
        %vm1177 = vcmp.lt.s32.totalorder %v1169, %v1173
        %v1178 = vsel %vm1177, %v1169, %v1173
        %vm1179 = vcmp.lt.s32.totalorder %v1170, %v1174
        %v1180 = vsel %vm1179, %v1170, %v1174
        %vm1181 = vcmp.lt.s32.totalorder %v1171, %v1175
        %v1182 = vsel %vm1181, %v1171, %v1175
        %vm1183 = vcmp.lt.s32.totalorder %v1172, %v1176
        %v1184 = vsel %vm1183, %v1172, %v1176
        %vm1185 = vcmp.lt.s32.totalorder %v1178, %v1180
        %v1186 = vsel %vm1185, %v1178, %v1180
        %vm1187 = vcmp.lt.s32.totalorder %v1182, %v1184
        %v1188 = vsel %vm1187, %v1182, %v1184
        %vm1189 = vcmp.lt.s32.totalorder %v1186, %v1188
        %v1190 = vsel %vm1189, %v1186, %v1188
        %v1191 = vrot.slane %v1190, 4
        %vm1192 = vcmp.lt.s32.totalorder %v1190, %v1191
        %v1193 = vsel %vm1192, %v1190, %v1191
        %v1194 = vrot.slane %v1193, 2
        %vm1195 = vcmp.lt.s32.totalorder %v1193, %v1194
        %v1196 = vsel %vm1195, %v1193, %v1194
        %v1197 = vrot.slane %v1196, 1
        %vm1198 = vcmp.lt.s32.totalorder %v1196, %v1197
        %v1199 = vsel %vm1198, %v1196, %v1197
        %vm1200 = vcmp.eq.s32.totalorder %v943, %v1199
        %vm1201 = vcmp.eq.s32.totalorder %v944, %v1199
        %vm1202 = vcmp.eq.s32.totalorder %v945, %v1199
        %vm1203 = vcmp.eq.s32.totalorder %v946, %v1199
        %vm1204 = vcmp.eq.s32.totalorder %v947, %v1199
        %vm1205 = vcmp.eq.s32.totalorder %v948, %v1199
        %vm1206 = vcmp.eq.s32.totalorder %v949, %v1199
        %vm1207 = vcmp.eq.s32.totalorder %v950, %v1199
        %v1208 = vmax.f32 %v1160, 0.0
        %v1209 = vadd.f32 %v1208, 1e-08
        %v1210 = vrcp.pop %v1209
        %v1211 = vmul.f32 1.0, %v1210
        %v1212 = vsel %vm1200, 1, 0
        %v1213 = vsel %vm1201, 1, 0
        %v1214 = vsel %vm1202, 1, 0
        %v1215 = vsel %vm1203, 1, 0
        %v1216 = vsel %vm1204, 1, 0
        %v1217 = vsel %vm1205, 1, 0
        %v1218 = vsel %vm1206, 1, 0
        %v1219 = vsel %vm1207, 1, 0
        %v1220 = vcvt.s32.f32 %v1212
        %v1221 = vcvt.s32.f32 %v1213
        %v1222 = vcvt.s32.f32 %v1214
        %v1223 = vcvt.s32.f32 %v1215
        %v1224 = vcvt.s32.f32 %v1216
        %v1225 = vcvt.s32.f32 %v1217
        %v1226 = vcvt.s32.f32 %v1218
        %v1227 = vcvt.s32.f32 %v1219
        %v1228 = vmul.f32 %v1220, %v1211
        %v1229 = vmul.f32 %v1221, %v1211
        %v1230 = vmul.f32 %v1222, %v1211
        %v1231 = vmul.f32 %v1223, %v1211
        %v1232 = vmul.f32 %v1224, %v1211
        %v1233 = vmul.f32 %v1225, %v1211
        %v1234 = vmul.f32 %v1226, %v1211
        %v1235 = vmul.f32 %v1227, %v1211
        %v1236 = vadd.f32 %v1131, %v1228
        %v1237 = vadd.f32 %v1132, %v1229
        %v1238 = vadd.f32 %v1133, %v1230
        %v1239 = vadd.f32 %v1134, %v1231
        %v1240 = vadd.f32 %v1135, %v1232
        %v1241 = vadd.f32 %v1136, %v1233
        %v1242 = vadd.f32 %v1137, %v1234
        %v1243 = vadd.f32 %v1138, %v1235
        %v1244 = vadd.f32 %v1139, %v1211
        %v1245 = vpack.c.bf16 %v1237, %v1236
        %v1246 = vpack.c.bf16 %v1239, %v1238
        %v1247 = vpack.c.bf16 %v1241, %v1240
        %v1248 = vpack.c.bf16 %v1243, %v1242
        %v1249 = vrcp.pop %v1244
        %vm1250 = vcmask 523264
        %v1252 = vsel %vm1250, %v711, 0
        %1254 = vmatprep.subr.bf16.mxu0 0
        %1255 = vmatpush1.bf16.msra.mxu0 %v1245
        %1256 = vmatprep.subr.bf16.mxu0 0
        %1257 = vmatpush1.bf16.msra.mxu0 %v1246
        %1258 = vmatprep.subr.bf16.mxu0 0
        %1259 = vmatpush1.bf16.msra.mxu0 %v1247
        %1260 = vmatprep.subr.bf16.mxu0 0
        %1261 = vmatpush1.bf16.msra.mxu0 %v1248
        %1262 = vmatprep.subr.bf16.mxu0 0
        %1263 = vmatpush1.bf16.msra.mxu0 0
        %1264 = vmatprep.subr.bf16.mxu0 0
        %1265 = vmatpush1.bf16.msra.mxu0 0
        %1266 = vmatprep.subr.bf16.mxu0 0
        %1267 = vmatpush1.bf16.msra.mxu0 0
        %1268 = vmatprep.subr.bf16.mxu0 0
        %1269 = vmatpush1.bf16.msra.mxu0 0
        %1270 = vmatprep.subr.bf16.mxu0 0
        %1271 = vmatpush1.bf16.msra.mxu0 0
        %1272 = vmatprep.subr.bf16.mxu0 0
        %1273 = vmatpush1.bf16.msra.mxu0 0
        %1274 = vmatprep.subr.bf16.mxu0 0
        %1275 = vmatpush1.bf16.msra.mxu0 0
        %1276 = vmatprep.subr.bf16.mxu0 0
        %1277 = vmatpush1.bf16.msra.mxu0 0
        %1278 = vmatprep.subr.bf16.mxu0 0
        %1279 = vmatpush1.bf16.msra.mxu0 0
        %1280 = vmatprep.subr.bf16.mxu0 0
        %1281 = vmatpush1.bf16.msra.mxu0 0
        %1282 = vmatprep.subr.bf16.mxu0 0
        %1283 = vmatpush1.bf16.msra.mxu0 0
        %1284 = vmatprep.subr.bf16.mxu0 0
        %1285 = vmatpush1.bf16.msra.mxu0 0
        %1286 = vmatprep.mubr.bf16.mxu0 0
        %1287 = vmatmul.mubr.bf16.gmra.mrb[0].mxu0 %v1252
        %v1288 = vpop.f32.mrb[0].mxu0
        %v1289 = vadd.f32 0.0, %v1288
        %v1290 = vpop.f32.mrb[0].mxu0
        %v1291 = vpop.f32.mrb[0].mxu0
        %v1292 = vpop.f32.mrb[0].mxu0
        %1293 = vdwg.mxu0
        %v1294 = vmul.f32 %v1289, %v1249
        %v1295 = vpack.c.bf16 %v1294, %v1294
        %v1298 = vunpack.c.l.b16 %v717
        %v1299 = vunpack.c.l.b16 %v718
        %v1300 = vpack.c.b16 %v1299, %v1298
        %vm1301 = vcmask 31744
        %v1303 = vsel %vm1301, %v1300, 0
        %vm1305 = vcmask 1041408
        %v1307 = vsel %vm1305, %v713, 0
        %1309 = vmatprep.subr.bf16.mxu0 0
        %1310 = vmatpush1.bf16.msra.mxu0 %v1307
        %1311 = vmatprep.subr.bf16.mxu0 0
        %1312 = vmatpush1.bf16.msra.mxu0 0
        %1313 = vmatprep.subr.bf16.mxu0 0
        %1314 = vmatpush1.bf16.msra.mxu0 0
        %1315 = vmatprep.subr.bf16.mxu0 0
        %1316 = vmatpush1.bf16.msra.mxu0 0
        %1317 = vmatprep.subr.bf16.mxu0 0
        %1318 = vmatpush1.bf16.msra.mxu0 0
        %1319 = vmatprep.subr.bf16.mxu0 0
        %1320 = vmatpush1.bf16.msra.mxu0 0
        %1321 = vmatprep.subr.bf16.mxu0 0
        %1322 = vmatpush1.bf16.msra.mxu0 0
        %1323 = vmatprep.subr.bf16.mxu0 0
        %1324 = vmatpush1.bf16.msra.mxu0 0
        %1325 = vmatprep.subr.bf16.mxu0 0
        %1326 = vmatpush1.bf16.msra.mxu0 0
        %1327 = vmatprep.subr.bf16.mxu0 0
        %1328 = vmatpush1.bf16.msra.mxu0 0
        %1329 = vmatprep.subr.bf16.mxu0 0
        %1330 = vmatpush1.bf16.msra.mxu0 0
        %1331 = vmatprep.subr.bf16.mxu0 0
        %1332 = vmatpush1.bf16.msra.mxu0 0
        %1333 = vmatprep.subr.bf16.mxu0 0
        %1334 = vmatpush1.bf16.msra.mxu0 0
        %1335 = vmatprep.subr.bf16.mxu0 0
        %1336 = vmatpush1.bf16.msra.mxu0 0
        %1337 = vmatprep.subr.bf16.mxu0 0
        %1338 = vmatpush1.bf16.msra.mxu0 0
        %1339 = vmatprep.subr.bf16.mxu0 0
        %1340 = vmatpush1.bf16.msra.mxu0 0
        %1341 = vmatprep.mubr.bf16.mxu0 0
        %1342 = vmatmul.mubr.bf16.gmra.mrb[0].mxu0 %v1303
        %v1343 = vpop.f32.mrb[0].mxu0
        %v1344 = vadd.f32 0.0, %v1343
        %v1345 = vpop.f32.mrb[0].mxu0
        %v1346 = vpop.f32.mrb[0].mxu0
        %v1347 = vadd.f32 0.0, %v1346
        %v1348 = vpop.f32.mrb[0].mxu0
        %1349 = vdwg.mxu0
        %v1352 = vunpack.c.l.b16 %v715
        %v1353 = vunpack.c.l.b16 %v716
        %v1354 = vpack.c.b16 %v1353, %v1352
        %vm1355 = vcmask 48128
        %v1357 = vsel %vm1355, %v1354, 0
        %v1360 = vsel %vm756, %v1295, 0
        %1362 = vmatprep.subr.bf16.mxu0 0
        %1363 = vmatpush1.bf16.msra.mxu0 %v1360
        %1364 = vmatprep.subr.bf16.mxu0 0
        %1365 = vmatpush1.bf16.msra.mxu0 0
        %1366 = vmatprep.subr.bf16.mxu0 0
        %1367 = vmatpush1.bf16.msra.mxu0 0
        %1368 = vmatprep.subr.bf16.mxu0 0
        %1369 = vmatpush1.bf16.msra.mxu0 0
        %1370 = vmatprep.subr.bf16.mxu0 0
        %1371 = vmatpush1.bf16.msra.mxu0 0
        %1372 = vmatprep.subr.bf16.mxu0 0
        %1373 = vmatpush1.bf16.msra.mxu0 0
        %1374 = vmatprep.subr.bf16.mxu0 0
        %1375 = vmatpush1.bf16.msra.mxu0 0
        %1376 = vmatprep.subr.bf16.mxu0 0
        %1377 = vmatpush1.bf16.msra.mxu0 0
        %1378 = vmatprep.subr.bf16.mxu0 0
        %1379 = vmatpush1.bf16.msra.mxu0 0
        %1380 = vmatprep.subr.bf16.mxu0 0
        %1381 = vmatpush1.bf16.msra.mxu0 0
        %1382 = vmatprep.subr.bf16.mxu0 0
        %1383 = vmatpush1.bf16.msra.mxu0 0
        %1384 = vmatprep.subr.bf16.mxu0 0
        %1385 = vmatpush1.bf16.msra.mxu0 0
        %1386 = vmatprep.subr.bf16.mxu0 0
        %1387 = vmatpush1.bf16.msra.mxu0 0
        %1388 = vmatprep.subr.bf16.mxu0 0
        %1389 = vmatpush1.bf16.msra.mxu0 0
        %1390 = vmatprep.subr.bf16.mxu0 0
        %1391 = vmatpush1.bf16.msra.mxu0 0
        %1392 = vmatprep.subr.bf16.mxu0 0
        %1393 = vmatpush1.bf16.msra.mxu0 0
        %1394 = vmatprep.mubr.bf16.mxu0 0
        %1395 = vmatmul.mubr.bf16.gmra.mrb[0].mxu0 %v1357
        %v1396 = vpop.f32.mrb[0].mxu0
        %v1397 = vadd.f32 %v1344, %v1396
        %v1398 = vpop.f32.mrb[0].mxu0
        %v1399 = vpop.f32.mrb[0].mxu0
        %v1400 = vadd.f32 %v1347, %v1399
        %v1401 = vpop.f32.mrb[0].mxu0
        %1402 = vdwg.mxu0
        %1404 = vset.pattern.permute.xlu0 0
        %1405 = vperm.xlu0 %1404, %v719
        %v1406 = vpop.permute.xlu0 %1405
        %1409 = vset.pattern.permute.xlu0 0
        %1410 = vperm.xlu0 %1409, %v720
        %v1411 = vpop.permute.xlu0 %1410
        %v1413 = vadd.f32 %v1397, %v1406
        %v1414 = vadd.f32 %v1400, %v1411
        %v1415 = vmax.f32 %v1413, 0.0
        %v1416 = vmax.f32 %v1414, 0.0
        %v1417 = vpack.c.bf16 %v1416, %v1415
        %1419 = vset.pattern.permute.xlu0 0
        %1420 = vperm.xlu0 %1419, %v722
        %v1421 = vpop.permute.xlu0 %1420
        %vm1423 = vcmask 130048
        %v1425 = vsel %vm1423, %v721, 0
        %1427 = vmatprep.subr.bf16.mxu0 0
        %1428 = vmatpush1.bf16.msra.mxu0 %v1417
        %1429 = vmatprep.subr.bf16.mxu0 0
        %1430 = vmatpush1.bf16.msra.mxu0 0
        %1431 = vmatprep.subr.bf16.mxu0 0
        %1432 = vmatpush1.bf16.msra.mxu0 0
        %1433 = vmatprep.subr.bf16.mxu0 0
        %1434 = vmatpush1.bf16.msra.mxu0 0
        %1435 = vmatprep.subr.bf16.mxu0 0
        %1436 = vmatpush1.bf16.msra.mxu0 0
        %1437 = vmatprep.subr.bf16.mxu0 0
        %1438 = vmatpush1.bf16.msra.mxu0 0
        %1439 = vmatprep.subr.bf16.mxu0 0
        %1440 = vmatpush1.bf16.msra.mxu0 0
        %1441 = vmatprep.subr.bf16.mxu0 0
        %1442 = vmatpush1.bf16.msra.mxu0 0
        %1443 = vmatprep.subr.bf16.mxu0 0
        %1444 = vmatpush1.bf16.msra.mxu0 0
        %1445 = vmatprep.subr.bf16.mxu0 0
        %1446 = vmatpush1.bf16.msra.mxu0 0
        %1447 = vmatprep.subr.bf16.mxu0 0
        %1448 = vmatpush1.bf16.msra.mxu0 0
        %1449 = vmatprep.subr.bf16.mxu0 0
        %1450 = vmatpush1.bf16.msra.mxu0 0
        %1451 = vmatprep.subr.bf16.mxu0 0
        %1452 = vmatpush1.bf16.msra.mxu0 0
        %1453 = vmatprep.subr.bf16.mxu0 0
        %1454 = vmatpush1.bf16.msra.mxu0 0
        %1455 = vmatprep.subr.bf16.mxu0 0
        %1456 = vmatpush1.bf16.msra.mxu0 0
        %1457 = vmatprep.subr.bf16.mxu0 0
        %1458 = vmatpush1.bf16.msra.mxu0 0
        %1459 = vmatprep.mubr.bf16.mxu0 0
        %1460 = vmatmul.mubr.bf16.gmra.mrb[0].mxu0 %v1425
        %v1461 = vpop.f32.mrb[0].mxu0
        %v1462 = vadd.f32 %v1421, %v1461
        %v1463 = vpop.f32.mrb[0].mxu0
        %v1464 = vpop.f32.mrb[0].mxu0
        %v1465 = vpop.f32.mrb[0].mxu0
        %1466 = vdwg.mxu0
        %v1467 = vmax.f32 %v1462, 0.0
        %1468 = vst [vmem:[%s656] sm:$0xff] %v1467
        %v1470 = vsel %vm1250, %v712, 0
        %1472 = vmatprep.subr.bf16.mxu0 0
        %1473 = vmatpush1.bf16.msra.mxu0 %v1245
        %1474 = vmatprep.subr.bf16.mxu0 0
        %1475 = vmatpush1.bf16.msra.mxu0 %v1246
        %1476 = vmatprep.subr.bf16.mxu0 0
        %1477 = vmatpush1.bf16.msra.mxu0 %v1247
        %1478 = vmatprep.subr.bf16.mxu0 0
        %1479 = vmatpush1.bf16.msra.mxu0 %v1248
        %1480 = vmatprep.subr.bf16.mxu0 0
        %1481 = vmatpush1.bf16.msra.mxu0 0
        %1482 = vmatprep.subr.bf16.mxu0 0
        %1483 = vmatpush1.bf16.msra.mxu0 0
        %1484 = vmatprep.subr.bf16.mxu0 0
        %1485 = vmatpush1.bf16.msra.mxu0 0
        %1486 = vmatprep.subr.bf16.mxu0 0
        %1487 = vmatpush1.bf16.msra.mxu0 0
        %1488 = vmatprep.subr.bf16.mxu0 0
        %1489 = vmatpush1.bf16.msra.mxu0 0
        %1490 = vmatprep.subr.bf16.mxu0 0
        %1491 = vmatpush1.bf16.msra.mxu0 0
        %1492 = vmatprep.subr.bf16.mxu0 0
        %1493 = vmatpush1.bf16.msra.mxu0 0
        %1494 = vmatprep.subr.bf16.mxu0 0
        %1495 = vmatpush1.bf16.msra.mxu0 0
        %1496 = vmatprep.subr.bf16.mxu0 0
        %1497 = vmatpush1.bf16.msra.mxu0 0
        %1498 = vmatprep.subr.bf16.mxu0 0
        %1499 = vmatpush1.bf16.msra.mxu0 0
        %1500 = vmatprep.subr.bf16.mxu0 0
        %1501 = vmatpush1.bf16.msra.mxu0 0
        %1502 = vmatprep.subr.bf16.mxu0 0
        %1503 = vmatpush1.bf16.msra.mxu0 0
        %1504 = vmatprep.mubr.bf16.mxu0 0
        %1505 = vmatmul.mubr.bf16.gmra.mrb[0].mxu0 %v1470
        %v1506 = vpop.f32.mrb[0].mxu0
        %v1507 = vadd.f32 0.0, %v1506
        %v1508 = vpop.f32.mrb[0].mxu0
        %v1509 = vpop.f32.mrb[0].mxu0
        %v1510 = vpop.f32.mrb[0].mxu0
        %1511 = vdwg.mxu0
        %v1512 = vmul.f32 %v1507, %v1249
        %v1513 = vpack.c.bf16 %v1512, %v1512
        %v1516 = vunpack.c.l.b16 %v725
        %v1517 = vunpack.c.l.b16 %v726
        %v1518 = vpack.c.b16 %v1517, %v1516
        %v1520 = vsel %vm1301, %v1518, 0
        %v1523 = vsel %vm1305, %v714, 0
        %1525 = vmatprep.subr.bf16.mxu0 0
        %1526 = vmatpush1.bf16.msra.mxu0 %v1523
        %1527 = vmatprep.subr.bf16.mxu0 0
        %1528 = vmatpush1.bf16.msra.mxu0 0
        %1529 = vmatprep.subr.bf16.mxu0 0
        %1530 = vmatpush1.bf16.msra.mxu0 0
        %1531 = vmatprep.subr.bf16.mxu0 0
        %1532 = vmatpush1.bf16.msra.mxu0 0
        %1533 = vmatprep.subr.bf16.mxu0 0
        %1534 = vmatpush1.bf16.msra.mxu0 0
        %1535 = vmatprep.subr.bf16.mxu0 0
        %1536 = vmatpush1.bf16.msra.mxu0 0
        %1537 = vmatprep.subr.bf16.mxu0 0
        %1538 = vmatpush1.bf16.msra.mxu0 0
        %1539 = vmatprep.subr.bf16.mxu0 0
        %1540 = vmatpush1.bf16.msra.mxu0 0
        %1541 = vmatprep.subr.bf16.mxu0 0
        %1542 = vmatpush1.bf16.msra.mxu0 0
        %1543 = vmatprep.subr.bf16.mxu0 0
        %1544 = vmatpush1.bf16.msra.mxu0 0
        %1545 = vmatprep.subr.bf16.mxu0 0
        %1546 = vmatpush1.bf16.msra.mxu0 0
        %1547 = vmatprep.subr.bf16.mxu0 0
        %1548 = vmatpush1.bf16.msra.mxu0 0
        %1549 = vmatprep.subr.bf16.mxu0 0
        %1550 = vmatpush1.bf16.msra.mxu0 0
        %1551 = vmatprep.subr.bf16.mxu0 0
        %1552 = vmatpush1.bf16.msra.mxu0 0
        %1553 = vmatprep.subr.bf16.mxu0 0
        %1554 = vmatpush1.bf16.msra.mxu0 0
        %1555 = vmatprep.subr.bf16.mxu0 0
        %1556 = vmatpush1.bf16.msra.mxu0 0
        %1557 = vmatprep.mubr.bf16.mxu0 0
        %1558 = vmatmul.mubr.bf16.gmra.mrb[0].mxu0 %v1520
        %v1559 = vpop.f32.mrb[0].mxu0
        %v1560 = vadd.f32 0.0, %v1559
        %v1561 = vpop.f32.mrb[0].mxu0
        %v1562 = vpop.f32.mrb[0].mxu0
        %v1563 = vadd.f32 0.0, %v1562
        %v1564 = vpop.f32.mrb[0].mxu0
        %1565 = vdwg.mxu0
        %v1568 = vunpack.c.l.b16 %v723
        %v1569 = vunpack.c.l.b16 %v724
        %v1570 = vpack.c.b16 %v1569, %v1568
        %v1572 = vsel %vm1355, %v1570, 0
        %v1575 = vsel %vm756, %v1513, 0
        %1577 = vmatprep.subr.bf16.mxu0 0
        %1578 = vmatpush1.bf16.msra.mxu0 %v1575
        %1579 = vmatprep.subr.bf16.mxu0 0
        %1580 = vmatpush1.bf16.msra.mxu0 0
        %1581 = vmatprep.subr.bf16.mxu0 0
        %1582 = vmatpush1.bf16.msra.mxu0 0
        %1583 = vmatprep.subr.bf16.mxu0 0
        %1584 = vmatpush1.bf16.msra.mxu0 0
        %1585 = vmatprep.subr.bf16.mxu0 0
        %1586 = vmatpush1.bf16.msra.mxu0 0
        %1587 = vmatprep.subr.bf16.mxu0 0
        %1588 = vmatpush1.bf16.msra.mxu0 0
        %1589 = vmatprep.subr.bf16.mxu0 0
        %1590 = vmatpush1.bf16.msra.mxu0 0
        %1591 = vmatprep.subr.bf16.mxu0 0
        %1592 = vmatpush1.bf16.msra.mxu0 0
        %1593 = vmatprep.subr.bf16.mxu0 0
        %1594 = vmatpush1.bf16.msra.mxu0 0
        %1595 = vmatprep.subr.bf16.mxu0 0
        %1596 = vmatpush1.bf16.msra.mxu0 0
        %1597 = vmatprep.subr.bf16.mxu0 0
        %1598 = vmatpush1.bf16.msra.mxu0 0
        %1599 = vmatprep.subr.bf16.mxu0 0
        %1600 = vmatpush1.bf16.msra.mxu0 0
        %1601 = vmatprep.subr.bf16.mxu0 0
        %1602 = vmatpush1.bf16.msra.mxu0 0
        %1603 = vmatprep.subr.bf16.mxu0 0
        %1604 = vmatpush1.bf16.msra.mxu0 0
        %1605 = vmatprep.subr.bf16.mxu0 0
        %1606 = vmatpush1.bf16.msra.mxu0 0
        %1607 = vmatprep.subr.bf16.mxu0 0
        %1608 = vmatpush1.bf16.msra.mxu0 0
        %1609 = vmatprep.mubr.bf16.mxu0 0
        %1610 = vmatmul.mubr.bf16.gmra.mrb[0].mxu0 %v1572
        %v1611 = vpop.f32.mrb[0].mxu0
        %v1612 = vadd.f32 %v1560, %v1611
        %v1613 = vpop.f32.mrb[0].mxu0
        %v1614 = vpop.f32.mrb[0].mxu0
        %v1615 = vadd.f32 %v1563, %v1614
        %v1616 = vpop.f32.mrb[0].mxu0
        %1617 = vdwg.mxu0
        %1619 = vset.pattern.permute.xlu0 0
        %1620 = vperm.xlu0 %1619, %v727
        %v1621 = vpop.permute.xlu0 %1620
        %1624 = vset.pattern.permute.xlu0 0
        %1625 = vperm.xlu0 %1624, %v728
        %v1626 = vpop.permute.xlu0 %1625
        %v1628 = vadd.f32 %v1612, %v1621
        %v1629 = vadd.f32 %v1615, %v1626
        %v1630 = vmax.f32 %v1628, 0.0
        %v1631 = vmax.f32 %v1629, 0.0
        %v1632 = vpack.c.bf16 %v1631, %v1630
        %1634 = vset.pattern.permute.xlu0 0
        %1635 = vperm.xlu0 %1634, %v730
        %v1636 = vpop.permute.xlu0 %1635
        %v1639 = vsel %vm1423, %v729, 0
        %1641 = vmatprep.subr.bf16.mxu0 0
        %1642 = vmatpush1.bf16.msra.mxu0 %v1632
        %1643 = vmatprep.subr.bf16.mxu0 0
        %1644 = vmatpush1.bf16.msra.mxu0 0
        %1645 = vmatprep.subr.bf16.mxu0 0
        %1646 = vmatpush1.bf16.msra.mxu0 0
        %1647 = vmatprep.subr.bf16.mxu0 0
        %1648 = vmatpush1.bf16.msra.mxu0 0
        %1649 = vmatprep.subr.bf16.mxu0 0
        %1650 = vmatpush1.bf16.msra.mxu0 0
        %1651 = vmatprep.subr.bf16.mxu0 0
        %1652 = vmatpush1.bf16.msra.mxu0 0
        %1653 = vmatprep.subr.bf16.mxu0 0
        %1654 = vmatpush1.bf16.msra.mxu0 0
        %1655 = vmatprep.subr.bf16.mxu0 0
        %1656 = vmatpush1.bf16.msra.mxu0 0
        %1657 = vmatprep.subr.bf16.mxu0 0
        %1658 = vmatpush1.bf16.msra.mxu0 0
        %1659 = vmatprep.subr.bf16.mxu0 0
        %1660 = vmatpush1.bf16.msra.mxu0 0
        %1661 = vmatprep.subr.bf16.mxu0 0
        %1662 = vmatpush1.bf16.msra.mxu0 0
        %1663 = vmatprep.subr.bf16.mxu0 0
        %1664 = vmatpush1.bf16.msra.mxu0 0
        %1665 = vmatprep.subr.bf16.mxu0 0
        %1666 = vmatpush1.bf16.msra.mxu0 0
        %1667 = vmatprep.subr.bf16.mxu0 0
        %1668 = vmatpush1.bf16.msra.mxu0 0
        %1669 = vmatprep.subr.bf16.mxu0 0
        %1670 = vmatpush1.bf16.msra.mxu0 0
        %1671 = vmatprep.subr.bf16.mxu0 0
        %1672 = vmatpush1.bf16.msra.mxu0 0
        %1673 = vmatprep.mubr.bf16.mxu0 0
        %1674 = vmatmul.mubr.bf16.gmra.mrb[0].mxu0 %v1639
        %v1675 = vpop.f32.mrb[0].mxu0
        %v1676 = vadd.f32 %v1636, %v1675
        %v1677 = vpop.f32.mrb[0].mxu0
        %v1678 = vpop.f32.mrb[0].mxu0
        %v1679 = vpop.f32.mrb[0].mxu0
        %1680 = vdwg.mxu0
        %v1681 = vmax.f32 %v1676, 0.0
        %1682 = vst [vmem:[%s663] sm:$0xff] %v1681
        %s1683 = sand.u32 %s429, 1
        %s1684 = scalar_lea.sflag [#allocation3], %s1683
        %s1685 = sand.u32 %s429, 1
        %s1686 = smul.addr %s1685, 8
        %s1687 = scalar_lea.vmem [#allocation2], %s1686
        %s1688 = sand.u32 %s457, 1
        %s1689 = scalar_lea.sflag [#allocation5], %s1688
        %s1690 = sand.u32 %s457, 1
        %s1691 = smul.addr %s1690, 8
        %s1692 = scalar_lea.vmem [#allocation4], %s1691
        // Predicated region
        $region85: #{tpu_custom_call.1} parent=83 // pred_check
          %p1693 = pneg %p439
        $region86: #{tpu_custom_call.1} parent=83 // pred_check_branch
          %1695 = sbr.rel (%p1693) target = $region88
        $region87: #{tpu_custom_call.1} parent=83 // pred_region
          %s1697 = ssub.s32 128, 128
          %1698 = vsyncadd %s1684, %s1697
          %s1699 = smul.addr %s39, 2
          %s1700 = sadd.s32 %s40, %s1699
          %s1701 = smul.addr %s1700, 128
          %s1702 = scalar_lea.hbm %s16, %s1701
          %s1704 = sshll.u32 %s1687, 4
          %s1705 = int_to_ptr.vmem [resolvable:$true] %s1704
          %1707 = dma.vmem_to_hbm [thread:$0]  %s1705, 128, %s1702, %s1684
        $region88: #{tpu_custom_call.1} parent=83 // pred_fallthru
          _
        // Predicated region
        $region89: #{tpu_custom_call.1} parent=83 // pred_check
          %p1708 = pneg %p467
        $region90: #{tpu_custom_call.1} parent=83 // pred_check_branch
          %1710 = sbr.rel (%p1708) target = $region92
        $region91: #{tpu_custom_call.1} parent=83 // pred_region
          %s1712 = ssub.s32 128, 128
          %1713 = vsyncadd %s1689, %s1712
          %s1714 = smul.addr %s39, 2
          %s1715 = sadd.s32 %s40, %s1714
          %s1716 = smul.addr %s1715, 128
          %s1717 = scalar_lea.hbm %s17, %s1716
          %s1719 = sshll.u32 %s1692, 4
          %s1720 = int_to_ptr.vmem [resolvable:$true] %s1719
          %1722 = dma.vmem_to_hbm [thread:$0]  %s1720, 128, %s1717, %s1689
        $region92: #{tpu_custom_call.1} parent=83 // pred_fallthru
          _
      $region84: #{tpu_custom_call.1} parent=5 // pred_fallthru
        _
      %p1723 = scmp.le.s32.totalorder 2, %s30
      // Predicated region
      $region93: #{tpu_custom_call.1} parent=5 // pred_check
        %p1724 = pneg %p1723
      $region94: #{tpu_custom_call.1} parent=5 // pred_check_branch
        %1726 = sbr.rel (%p1724) target = $region96
      $region95: #{tpu_custom_call.1} parent=5 // pred_region
        %s1727 = ssub.s32 %s30, 2
        // Predicated region
        $region97: #{tpu_custom_call.1} parent=95 // pred_check
          %p1728 = pneg %p445
        $region98: #{tpu_custom_call.1} parent=95 // pred_check_branch
          %1730 = sbr.rel (%p1728) target = $region100
        $region99: #{tpu_custom_call.1} parent=95 // pred_region
          %s1731 = sand.u32 %s430, 1
          %s1732 = scalar_lea.sflag [#allocation3], %s1731
          %s1733 = sand.u32 %s430, 1
          %s1734 = smul.addr %s1733, 8
          %s1735 = scalar_lea.vmem [#allocation2], %s1734
          %1736 = dma.done %s1732, 128
        $region100: #{tpu_custom_call.1} parent=95 // pred_fallthru
          _
        // Predicated region
        $region101: #{tpu_custom_call.1} parent=95 // pred_check
          %p1737 = pneg %p473
        $region102: #{tpu_custom_call.1} parent=95 // pred_check_branch
          %1739 = sbr.rel (%p1737) target = $region104
        $region103: #{tpu_custom_call.1} parent=95 // pred_region
          %s1740 = sand.u32 %s458, 1
          %s1741 = scalar_lea.sflag [#allocation5], %s1740
          %s1742 = sand.u32 %s458, 1
          %s1743 = smul.addr %s1742, 8
          %s1744 = scalar_lea.vmem [#allocation4], %s1743
          %1745 = dma.done %s1741, 128
        $region104: #{tpu_custom_call.1} parent=95 // pred_fallthru
          _
      $region96: #{tpu_custom_call.1} parent=5 // pred_fallthru
        _
    $region6: #{tpu_custom_call.1} parent=1 // loop_footer
      %s34 = sadd.s32 1, %s30
    $region7: #{tpu_custom_call.1} parent=1 // loop_footer_branch
      %29 = sbr.rel target = $region3
    $region8: #{tpu_custom_call.1} parent=1 // loop_exit
      _
    %1746 = vsyncpa [#allocation3], 1
    %s1747 = scalar_lea.sflag [#allocation3], 1
    %1748 = vsyncpa %s1747, 1
    %1749 = vsyncpa [#allocation5], 1
    %s1750 = scalar_lea.sflag [#allocation5], 1
    %1751 = vsyncpa %s1750, 1

</llo_original>
